<compile_context>
chip_gen: v5e
topology: v5e:2x2
jax: 0.10.0
libtpu: 0.0.40
codegen_flags: <defaults>
</compile_context>

<pallas_src>
import functools

import jax
import jax.numpy as jnp
from jax.experimental import pallas as pl
from jax.experimental.pallas import tpu as pltpu


def _round_up(n, m):
    return (n + m - 1) // m * m


def _mnist_kernel(n_layers, *refs):
    # refs = (x, targets, mat_0, bias_0, ..., mat_{n-1}, bias_{n-1},
    #         final_mat, final_bias, partial_loss_out)
    x_ref, y_ref = refs[0], refs[1]
    layer_refs = refs[2:2 + 2 * n_layers]
    fmat_ref, fbias_ref = refs[2 + 2 * n_layers], refs[3 + 2 * n_layers]
    loss_ref = refs[4 + 2 * n_layers]

    # x arrives f32 straight from HBM (no host-side pad/cast pass); the bf16
    # cast for the MXU happens here, in VMEM.
    h = x_ref[...].astype(jnp.bfloat16)                   # (TB, 784)
    for i in range(n_layers):
        w = layer_refs[2 * i][...]                        # (D_in, H_pad) bf16
        b = layer_refs[2 * i + 1][...]                    # (1, H_pad)    f32
        pre = jnp.dot(h, w, preferred_element_type=jnp.float32) + b
        h = jax.nn.sigmoid(pre).astype(jnp.bfloat16)      # elementwise in f32

    # Padded class lanes carry a -1e30 bias (baked host-side), so no in-kernel
    # class mask is needed and nothing in the pipeline is -inf.
    logits = jnp.dot(h, fmat_ref[...],
                     preferred_element_type=jnp.float32) + fbias_ref[...]
    tb, cp = logits.shape
    m = jnp.max(logits, axis=1, keepdims=True)
    lse = m + jnp.log(jnp.sum(jnp.exp(logits - m), axis=1, keepdims=True))
    log_probs = logits - lse                              # (TB, C_pad) f32

    # NLL partial sum for this tile; padded batch rows have target -1 and thus
    # never match a class lane -> contribute 0.
    cls = jax.lax.broadcasted_iota(jnp.int32, (tb, cp), 1)
    tgt = y_ref[...]                                      # (TB, 1) int32
    contrib = jnp.where(cls == tgt, -log_probs, 0.0)      # (TB, C_pad) f32
    partial = jnp.sum(contrib, axis=0, keepdims=True)     # (1, C_pad)

    # Lane- and sublane-dense (8, C_pad) output tile: partial sums in row 0.
    row = jax.lax.broadcasted_iota(jnp.int32, (8, cp), 0)
    loss_ref[...] = jnp.where(row == 0, partial, 0.0).reshape(1, 8, cp)


def mnist_loss(x, targets, params, n_layers, *, num_classes=10, tile_b=1024):
    """x: (B, 784) f32, targets: (B,) int, params: dict of unpadded weights."""
    B, D = x.shape

    # Big tiles amortize the per-grid-step overhead, but keep at least 2 grid
    # steps when the batch allows it: the "parallel" batch axis is what shards
    # across v7x's 2 TensorCores (v5e/v6e have 1 TC, where bigger is better).
    tb = max(8, min(tile_b, _round_up((B + 1) // 2, 8)))
    b_pad = _round_up(B, tb)
    num_tiles = b_pad // tb

    # x stays f32 and feature-unpadded (784) in HBM: a full-extent last block
    # dim is legal and Mosaic lane-pads in VMEM for free.  Only the batch axis
    # is padded (with zero rows / target -1), and only when needed.
    tgt32 = targets.astype(jnp.int32)
    if b_pad != B:
        x = jnp.pad(x, ((0, b_pad - B), (0, 0)))
        tgt32 = jnp.pad(tgt32, (0, b_pad - B), constant_values=-1)
    y_p = tgt32.reshape(b_pad, 1)

    inputs = [x, y_p]
    in_specs = [
        pl.BlockSpec((tb, D), lambda i: (i, 0)),
        pl.BlockSpec((tb, 1), lambda i: (i, 0)),
    ]
    resident = lambda i: (0, 0)                     # weights stay VMEM-resident

    feat = [D]
    d_in = D
    for li in range(n_layers):
        w = params[f"mat_{li}"]
        b = params[f"bias_{li}"]
        h_true = w.shape[1]
        h_pad = _round_up(h_true, 128)
        w_p = jnp.zeros((d_in, h_pad), jnp.bfloat16)
        w_p = w_p.at[:w.shape[0], :h_true].set(w.astype(jnp.bfloat16))
        b_p = jnp.zeros((1, h_pad), jnp.float32)
        b_p = b_p.at[0, :h_true].set(b.astype(jnp.float32))
        inputs += [w_p, b_p]
        in_specs += [pl.BlockSpec((d_in, h_pad), resident),
                     pl.BlockSpec((1, h_pad), resident)]
        d_in = h_pad
        feat.append(h_pad)

    fw = params["final_mat"]
    fb = params["final_bias"]
    c_pad = _round_up(num_classes, 128)             # 10 -> 128
    fw_p = jnp.zeros((d_in, c_pad), jnp.bfloat16)
    fw_p = fw_p.at[:fw.shape[0], :num_classes].set(fw.astype(jnp.bfloat16))
    # Padded class lanes get a large finite negative bias -> masked out of the
    # softmax with no in-kernel select and no -inf / NaN hazards.
    fb_p = jnp.full((1, c_pad), -1e30, jnp.float32)
    fb_p = fb_p.at[0, :num_classes].set(fb.astype(jnp.float32))
    inputs += [fw_p, fb_p]
    in_specs += [pl.BlockSpec((d_in, c_pad), resident),
                 pl.BlockSpec((1, c_pad), resident)]
    feat.append(c_pad)

    flops = sum(2 * b_pad * a * c for a, c in zip(feat[:-1], feat[1:]))
    transcendentals = b_pad * (sum(feat[1:-1]) + c_pad)
    bytes_accessed = (sum(int(v.size) * v.dtype.itemsize for v in inputs)
                      + num_tiles * 8 * c_pad * 4)

    partials = pl.pallas_call(
        functools.partial(_mnist_kernel, n_layers),
        out_shape=jax.ShapeDtypeStruct((num_tiles, 8, c_pad), jnp.float32),
        grid=(num_tiles,),
        in_specs=in_specs,
        out_specs=pl.BlockSpec((1, 8, c_pad), lambda i: (i, 0, 0)),
        compiler_params=pltpu.CompilerParams(
            dimension_semantics=("parallel",),
            vmem_limit_bytes=32 * 1024 * 1024),
        cost_estimate=pl.CostEstimate(flops=int(flops),
                                      transcendentals=int(transcendentals),
                                      bytes_accessed=int(bytes_accessed)),
    )(*inputs)

    # Finish the NLL mean over the true (un-padded) batch; this fuses into the
    # surrounding jit rather than dispatching as a separate eager op.
    return jnp.sum(partials) / jnp.float32(B)


def init_params(key, layer_size=20, n_layers=1):
    params = {}
    inp_size = 28 * 28
    for i in range(n_layers):
        key, sub = jax.random.split(key)
        params[f"mat_{i}"] = jax.random.normal(
            sub, (inp_size, layer_size), dtype=jnp.float32)
        params[f"bias_{i}"] = jnp.zeros((layer_size,), dtype=jnp.float32)
        inp_size = layer_size
    key, sub = jax.random.split(key)
    params["final_mat"] = jax.random.normal(sub, (inp_size, 10),
                                            dtype=jnp.float32)
    params["final_bias"] = jnp.zeros((10,), dtype=jnp.float32)
    return params


def reference_loss(x, targets, params, n_layers, match_bf16=True):
    cast = (lambda a: a.astype(jnp.bfloat16)) if match_bf16 else (lambda a: a)
    h = x
    for i in range(n_layers):
        pre = jnp.dot(cast(h), cast(params[f"mat_{i}"]),
                      preferred_element_type=jnp.float32) + params[f"bias_{i}"]
        h = jax.nn.sigmoid(pre)
    logits = jnp.dot(cast(h), cast(params["final_mat"]),
                     preferred_element_type=jnp.float32) + params["final_bias"]
    log_probs = jax.nn.log_softmax(logits, axis=1)
    return -jnp.mean(log_probs[jnp.arange(x.shape[0]), targets])


if __name__ == "__main__":
    key = jax.random.PRNGKey(0)
    n_layers = 2
    layer_size = 20
    batch = 500  # exercises a 2-step grid (2 x 256) + ragged batch padding

    kp, kx, ky = jax.random.split(key, 3)
    params = init_params(kp, layer_size=layer_size, n_layers=n_layers)
    # Synthetic "MNIST" batch: flattened 784-feature images + int labels,
    # equivalent to what loss.sample() + view(B, 28*28) produces in the module.
    # TODO(synk): loss.sample() data loading has no Pallas equivalent; inputs
    # are synthesized in-script.
    x = jax.random.normal(kx, (batch, 28 * 28), dtype=jnp.float32)
    targets = jax.random.randint(ky, (batch,), 0, 10, dtype=jnp.int32)

    # jit the whole thing (batch pad + pallas_call + final mean) as one program.
    loss_fn = jax.jit(functools.partial(mnist_loss, n_layers=n_layers))
    loss = jax.block_until_ready(loss_fn(x, targets, params))

    ref_bf16 = reference_loss(x, targets, params, n_layers, match_bf16=True)
    ref_f32 = reference_loss(x, targets, params, n_layers, match_bf16=False)
    assert bool(jnp.isfinite(loss)), loss
    assert jnp.allclose(loss, ref_bf16, rtol=2e-3, atol=2e-3), (loss, ref_bf16)
    assert jnp.allclose(loss, ref_f32, rtol=1e-1, atol=2e-1), (loss, ref_f32)

    print("KERNEL_OK")
</pallas_src>

<mosaic_0001>
module attributes {stable_mosaic.version = 11 : i64} {
  func.func @_mnist_kernel(%arg0: i32, %arg1: memref<256x784xf32, #tpu.memory_space<vmem>>, %arg2: memref<256x1xi32, #tpu.memory_space<vmem>>, %arg3: memref<784x128xbf16, #tpu.memory_space<vmem>>, %arg4: memref<1x128xf32, #tpu.memory_space<vmem>>, %arg5: memref<128x128xbf16, #tpu.memory_space<vmem>>, %arg6: memref<1x128xf32, #tpu.memory_space<vmem>>, %arg7: memref<128x128xbf16, #tpu.memory_space<vmem>>, %arg8: memref<1x128xf32, #tpu.memory_space<vmem>>, %arg9: memref<1x8x128xf32, #tpu.memory_space<vmem>>) attributes {dimension_semantics = [#tpu.dimension_semantics<parallel>], iteration_bounds = array<i64: 2>, scalar_prefetch = 0 : i64, scratch_operands = 0 : i64, tpu.core_type = #tpu.core_type<tc>, window_params = [{transform_indices = @transform_0, window_bounds = array<i64: 256, 784>}, {transform_indices = @transform_1, window_bounds = array<i64: 256, 1>}, {pipeline_mode = #tpu.pipeline_mode<synchronous>, transform_indices = @transform_2, window_bounds = array<i64: 784, 128>}, {pipeline_mode = #tpu.pipeline_mode<synchronous>, transform_indices = @transform_3, window_bounds = array<i64: 1, 128>}, {pipeline_mode = #tpu.pipeline_mode<synchronous>, transform_indices = @transform_4, window_bounds = array<i64: 128, 128>}, {pipeline_mode = #tpu.pipeline_mode<synchronous>, transform_indices = @transform_5, window_bounds = array<i64: 1, 128>}, {pipeline_mode = #tpu.pipeline_mode<synchronous>, transform_indices = @transform_6, window_bounds = array<i64: 128, 128>}, {pipeline_mode = #tpu.pipeline_mode<synchronous>, transform_indices = @transform_7, window_bounds = array<i64: 1, 128>}, {transform_indices = @transform_8, window_bounds = array<i64: 1, 8, 128>}]} {
    %c0 = arith.constant 0 : index
    %c0_0 = arith.constant 0 : index
    %0 = vector.load %arg1[%c0, %c0_0] : memref<256x784xf32, #tpu.memory_space<vmem>>, vector<256x784xf32>
    %1 = arith.truncf %0 : vector<256x784xf32> to vector<256x784xbf16>
    %c0_1 = arith.constant 0 : index
    %c0_2 = arith.constant 0 : index
    %2 = vector.load %arg3[%c0_1, %c0_2] : memref<784x128xbf16, #tpu.memory_space<vmem>>, vector<784x128xbf16>
    %c0_3 = arith.constant 0 : index
    %c0_4 = arith.constant 0 : index
    %3 = vector.load %arg4[%c0_3, %c0_4] : memref<1x128xf32, #tpu.memory_space<vmem>>, vector<1x128xf32>
    %cst = arith.constant dense<0.000000e+00> : vector<256x128xf32>
    %4 = tpu.matmul %1, %2, %cst {dimension_numbers = #tpu.dot_dimension_numbers<[1], [0], [0], [1], [0, 0, 1, 1], [], []>} : vector<256x784xbf16>, vector<784x128xbf16>, vector<256x128xf32> -> vector<256x128xf32>
    %5 = vector.broadcast %3 : vector<1x128xf32> to vector<256x128xf32>
    %6 = arith.addf %4, %5 : vector<256x128xf32>
    %7 = arith.negf %6 : vector<256x128xf32>
    %8 = math.exp %7 : vector<256x128xf32>
    %cst_5 = arith.constant 1.000000e+00 : f32
    %9 = vector.broadcast %cst_5 : f32 to vector<256x128xf32>
    %10 = arith.addf %9, %8 : vector<256x128xf32>
    %11 = arith.divf %9, %10 : vector<256x128xf32>
    %12 = arith.truncf %11 : vector<256x128xf32> to vector<256x128xbf16>
    %c0_6 = arith.constant 0 : index
    %c0_7 = arith.constant 0 : index
    %13 = vector.load %arg5[%c0_6, %c0_7] : memref<128x128xbf16, #tpu.memory_space<vmem>>, vector<128x128xbf16>
    %c0_8 = arith.constant 0 : index
    %c0_9 = arith.constant 0 : index
    %14 = vector.load %arg6[%c0_8, %c0_9] : memref<1x128xf32, #tpu.memory_space<vmem>>, vector<1x128xf32>
    %cst_10 = arith.constant dense<0.000000e+00> : vector<256x128xf32>
    %15 = tpu.matmul %12, %13, %cst_10 {dimension_numbers = #tpu.dot_dimension_numbers<[1], [0], [0], [1], [0, 0, 1, 1], [], []>} : vector<256x128xbf16>, vector<128x128xbf16>, vector<256x128xf32> -> vector<256x128xf32>
    %16 = vector.broadcast %14 : vector<1x128xf32> to vector<256x128xf32>
    %17 = arith.addf %15, %16 : vector<256x128xf32>
    %18 = arith.negf %17 : vector<256x128xf32>
    %19 = math.exp %18 : vector<256x128xf32>
    %cst_11 = arith.constant 1.000000e+00 : f32
    %20 = vector.broadcast %cst_11 : f32 to vector<256x128xf32>
    %21 = arith.addf %20, %19 : vector<256x128xf32>
    %22 = arith.divf %20, %21 : vector<256x128xf32>
    %23 = arith.truncf %22 : vector<256x128xf32> to vector<256x128xbf16>
    %c0_12 = arith.constant 0 : index
    %c0_13 = arith.constant 0 : index
    %24 = vector.load %arg7[%c0_12, %c0_13] : memref<128x128xbf16, #tpu.memory_space<vmem>>, vector<128x128xbf16>
    %cst_14 = arith.constant dense<0.000000e+00> : vector<256x128xf32>
    %25 = tpu.matmul %23, %24, %cst_14 {dimension_numbers = #tpu.dot_dimension_numbers<[1], [0], [0], [1], [0, 0, 1, 1], [], []>} : vector<256x128xbf16>, vector<128x128xbf16>, vector<256x128xf32> -> vector<256x128xf32>
    %c0_15 = arith.constant 0 : index
    %c0_16 = arith.constant 0 : index
    %26 = vector.load %arg8[%c0_15, %c0_16] : memref<1x128xf32, #tpu.memory_space<vmem>>, vector<1x128xf32>
    %27 = vector.broadcast %26 : vector<1x128xf32> to vector<256x128xf32>
    %28 = arith.addf %25, %27 : vector<256x128xf32>
    %cst_17 = arith.constant dense<0xFF800000> : vector<256xf32>
    %29 = vector.multi_reduction <maximumf>, %28, %cst_17 [1] : vector<256x128xf32> to vector<256xf32>
    %30 = vector.shape_cast %29 : vector<256xf32> to vector<256x1xf32>
    %31 = vector.broadcast %30 : vector<256x1xf32> to vector<256x128xf32>
    %32 = arith.subf %28, %31 : vector<256x128xf32>
    %33 = math.exp %32 : vector<256x128xf32>
    %cst_18 = arith.constant dense<0.000000e+00> : vector<256xf32>
    %34 = vector.multi_reduction <add>, %33, %cst_18 [1] : vector<256x128xf32> to vector<256xf32>
    %35 = vector.shape_cast %34 : vector<256xf32> to vector<256x1xf32>
    %36 = math.log %35 : vector<256x1xf32>
    %37 = arith.addf %30, %36 : vector<256x1xf32>
    %38 = vector.broadcast %37 : vector<256x1xf32> to vector<256x128xf32>
    %39 = arith.subf %28, %38 : vector<256x128xf32>
    %40 = tpu.iota {dimensions = array<i32: 1>} : vector<256x128xi32>
    %c0_19 = arith.constant 0 : index
    %c0_20 = arith.constant 0 : index
    %41 = vector.load %arg2[%c0_19, %c0_20] : memref<256x1xi32, #tpu.memory_space<vmem>>, vector<256x1xi32>
    %42 = vector.broadcast %41 : vector<256x1xi32> to vector<256x128xi32>
    %43 = arith.cmpi eq, %40, %42 : vector<256x128xi32>
    %cst_21 = arith.constant 0.000000e+00 : f32
    %44 = vector.broadcast %cst_21 : f32 to vector<256x128xf32>
    %45 = arith.subf %44, %39 : vector<256x128xf32>
    %cst_22 = arith.constant 0.000000e+00 : f32
    %46 = vector.broadcast %cst_22 : f32 to vector<256x128xf32>
    %47 = arith.select %43, %45, %46 : vector<256x128xi1>, vector<256x128xf32>
    %cst_23 = arith.constant dense<0.000000e+00> : vector<128xf32>
    %48 = vector.multi_reduction <add>, %47, %cst_23 [0] : vector<256x128xf32> to vector<128xf32>
    %49 = vector.shape_cast %48 : vector<128xf32> to vector<1x128xf32>
    %50 = tpu.iota {dimensions = array<i32: 0>} : vector<8x128xi32>
    %c0_i32 = arith.constant 0 : i32
    %51 = vector.broadcast %c0_i32 : i32 to vector<8x128xi32>
    %52 = arith.cmpi eq, %50, %51 : vector<8x128xi32>
    %cst_24 = arith.constant 0.000000e+00 : f32
    %53 = vector.shape_cast %49 : vector<1x128xf32> to vector<1x128xf32>
    %54 = vector.broadcast %53 : vector<1x128xf32> to vector<8x128xf32>
    %55 = vector.broadcast %cst_24 : f32 to vector<8x128xf32>
    %56 = arith.select %52, %54, %55 : vector<8x128xi1>, vector<8x128xf32>
    %57 = vector.shape_cast %56 : vector<8x128xf32> to vector<1x8x128xf32>
    %c0_25 = arith.constant 0 : index
    %c0_26 = arith.constant 0 : index
    %c0_27 = arith.constant 0 : index
    %58 = vector.load %arg9[%c0_25, %c0_26, %c0_27] : memref<1x8x128xf32, #tpu.memory_space<vmem>>, vector<1x8x128xf32>
    tpu.vector_store %arg9[%c0_25, %c0_26, %c0_27], %57 {strides = array<i32>} : memref<1x8x128xf32, #tpu.memory_space<vmem>>, vector<1x8x128xf32>,
    return
  }
  func.func @transform_0(%arg0: i32) -> (i32, i32) {
    %c0_i32 = arith.constant 0 : i32
    %c0_i32_0 = arith.constant 0 : i32
    return %arg0, %c0_i32 : i32, i32
  }
  func.func @transform_1(%arg0: i32) -> (i32, i32) {
    %c0_i32 = arith.constant 0 : i32
    %c0_i32_0 = arith.constant 0 : i32
    return %arg0, %c0_i32 : i32, i32
  }
  func.func @transform_2(%arg0: i32) -> (i32, i32) {
    %c0_i32 = arith.constant 0 : i32
    %c0_i32_0 = arith.constant 0 : i32
    %c0_i32_1 = arith.constant 0 : i32
    return %c0_i32, %c0_i32_0 : i32, i32
  }
  func.func @transform_3(%arg0: i32) -> (i32, i32) {
    %c0_i32 = arith.constant 0 : i32
    %c0_i32_0 = arith.constant 0 : i32
    %c0_i32_1 = arith.constant 0 : i32
    return %c0_i32, %c0_i32_0 : i32, i32
  }
  func.func @transform_4(%arg0: i32) -> (i32, i32) {
    %c0_i32 = arith.constant 0 : i32
    %c0_i32_0 = arith.constant 0 : i32
    %c0_i32_1 = arith.constant 0 : i32
    return %c0_i32, %c0_i32_0 : i32, i32
  }
  func.func @transform_5(%arg0: i32) -> (i32, i32) {
    %c0_i32 = arith.constant 0 : i32
    %c0_i32_0 = arith.constant 0 : i32
    %c0_i32_1 = arith.constant 0 : i32
    return %c0_i32, %c0_i32_0 : i32, i32
  }
  func.func @transform_6(%arg0: i32) -> (i32, i32) {
    %c0_i32 = arith.constant 0 : i32
    %c0_i32_0 = arith.constant 0 : i32
    %c0_i32_1 = arith.constant 0 : i32
    return %c0_i32, %c0_i32_0 : i32, i32
  }
  func.func @transform_7(%arg0: i32) -> (i32, i32) {
    %c0_i32 = arith.constant 0 : i32
    %c0_i32_0 = arith.constant 0 : i32
    %c0_i32_1 = arith.constant 0 : i32
    return %c0_i32, %c0_i32_0 : i32, i32
  }
  func.func @transform_8(%arg0: i32) -> (i32, i32, i32) {
    %c0_i32 = arith.constant 0 : i32
    %c0_i32_0 = arith.constant 0 : i32
    %c0_i32_1 = arith.constant 0 : i32
    return %arg0, %c0_i32, %c0_i32_0 : i32, i32, i32
  }
}

</mosaic_0001>

<llo_original>
// kernel: mnist_loss.1
$region0: #{mnist_loss.1}
  #allocation0 [shape = 'u32[]', space=smem, size = 0x4, offset = 0x4, fixed_abs, tag = 'smem constant byte address 0x4 - core index']
  #allocation1 [shape = 'u32[72,128]{1,0:T(1,128)}', space=vmem, size = 0x9000, scoped, tag = 'internal scratch']
  %s0 = inlined_call_operand.vmem [shape: f32[512,784], index: 0, kind: input, shape index: {}]
  %s1 = inlined_call_operand.vmem [shape: s32[512,1], index: 1, kind: input, shape index: {}]
  %s2 = inlined_call_operand.vmem [shape: bf16[784,128], index: 2, kind: input, shape index: {}]
  %s3 = inlined_call_operand.vmem [shape: f32[1,128], index: 3, kind: input, shape index: {}]
  %s4 = inlined_call_operand.vmem [shape: bf16[128,128], index: 4, kind: input, shape index: {}]
  %s5 = inlined_call_operand.vmem [shape: f32[1,128], index: 5, kind: input, shape index: {}]
  %s6 = inlined_call_operand.vmem [shape: bf16[128,128], index: 6, kind: input, shape index: {}]
  %s7 = inlined_call_operand.vmem [shape: f32[1,128], index: 7, kind: input, shape index: {}]
  %s8 = inlined_call_operand.vmem [shape: f32[2,8,128], index: 8, kind: output, shape index: {}]
  %s9 = sld [smem:[#allocation0]]
  $region65: #{mnist_loss.1} parent=0
    _
  %s11 = ssub.s32 1, %s9
  %s12 = scalar_select 0, %s11, %s9
  loop: start=0, step=1, limit=4
  $region2: #{mnist_loss.1} parent=0 // loop_pre_header
    _
  $region3: #{mnist_loss.1} parent=0 // loop_header
    %s14 = sphi 0, %s18
    %p15 = scmp.ge.s32.totalorder %s14, 4
    %s24 = sphi 0, %s26
    %s27 = sphi 0, %s24
    %s28 = sphi 0, %s27
    %s44 = sphi 0, %s28
    %s50 = sphi 0, %s52
    %s53 = sphi 0, %s50
    %s54 = sphi 0, %s53
    %s70 = sphi 0, %s54
    %s74 = sphi 0, %s74
    %s76 = sphi 0, %s74
    %s77 = sphi 0, %s76
    %s91 = sphi 0, %s77
    %s95 = sphi 0, %s95
    %s97 = sphi 0, %s95
    %s98 = sphi 0, %s97
    %s112 = sphi 0, %s98
    %s116 = sphi 0, %s116
    %s118 = sphi 0, %s116
    %s119 = sphi 0, %s118
    %s133 = sphi 0, %s119
    %s137 = sphi 0, %s137
    %s139 = sphi 0, %s137
    %s140 = sphi 0, %s139
    %s154 = sphi 0, %s140
    %s158 = sphi 0, %s158
    %s160 = sphi 0, %s158
    %s161 = sphi 0, %s160
    %s175 = sphi 0, %s161
    %s179 = sphi 0, %s179
    %s181 = sphi 0, %s179
    %s182 = sphi 0, %s181
    %s196 = sphi 0, %s182
    %s202 = sphi 0, %s204
    %s205 = sphi 0, %s202
    %s206 = sphi 0, %s205
    %s222 = sphi 0, %s206
  $region4: #{mnist_loss.1} parent=0 // loop_header_branch
    %17 = sbr.rel (%p15) target = $region8
  $region5: #{mnist_loss.1} parent=0 // loop_body
    %s19 = ssub.s32 %s14, 1
    %s20 = ssub.s32 %s14, 2
    %s21 = sadd.s32 %s14, 1
    %s22 = ssub.s32 %s14, %s21
    %p23 = scmp.eq.s32.totalorder %s22, 0
    %s25 = sadd.s32 %s24, 1
    %s26 = scalar_select %p23, %s24, %s25
    %p29 = pneg %p23
    %p30 = scmp.eq.s32.totalorder %s14, 1
    %p31 = por %p29, %p30
    %p32 = scmp.ne.s32.totalorder %s24, %s27
    %p33 = scmp.eq.s32.totalorder %s14, 0
    %p34 = por %p32, %p33
    %p35 = scmp.ne.s32.totalorder %s24, %s27
    %p36 = scmp.eq.s32.totalorder %s19, 1
    %p37 = por %p35, %p36
    %p38 = scmp.ne.s32.totalorder %s27, %s28
    %p39 = scmp.eq.s32.totalorder %s19, 0
    %p40 = por %p38, %p39
    %p41 = scmp.ne.s32.totalorder %s27, %s28
    %p42 = scmp.eq.s32.totalorder %s20, 1
    %p43 = por %p41, %p42
    %p45 = scmp.ne.s32.totalorder %s28, %s44
    %p46 = scmp.eq.s32.totalorder %s20, 0
    %p47 = por %p45, %p46
    %s48 = ssub.s32 %s14, %s21
    %p49 = scmp.eq.s32.totalorder %s48, 0
    %s51 = sadd.s32 %s50, 1
    %s52 = scalar_select %p49, %s50, %s51
    %p55 = pneg %p49
    %p56 = scmp.eq.s32.totalorder %s14, 1
    %p57 = por %p55, %p56
    %p58 = scmp.ne.s32.totalorder %s50, %s53
    %p59 = scmp.eq.s32.totalorder %s14, 0
    %p60 = por %p58, %p59
    %p61 = scmp.ne.s32.totalorder %s50, %s53
    %p62 = scmp.eq.s32.totalorder %s19, 1
    %p63 = por %p61, %p62
    %p64 = scmp.ne.s32.totalorder %s53, %s54
    %p65 = scmp.eq.s32.totalorder %s19, 0
    %p66 = por %p64, %p65
    %p67 = scmp.ne.s32.totalorder %s53, %s54
    %p68 = scmp.eq.s32.totalorder %s20, 1
    %p69 = por %p67, %p68
    %p71 = scmp.ne.s32.totalorder %s54, %s70
    %p72 = scmp.eq.s32.totalorder %s20, 0
    %p73 = por %p71, %p72
    %s75 = sadd.s32 %s74, 1
    %p78 = scmp.eq.s32.totalorder %s14, 1
    %p79 = scmp.ne.s32.totalorder %s74, %s76
    %p80 = scmp.eq.s32.totalorder %s14, 0
    %p81 = por %p79, %p80
    %p82 = scmp.ne.s32.totalorder %s74, %s76
    %p83 = scmp.eq.s32.totalorder %s19, 1
    %p84 = por %p82, %p83
    %p85 = scmp.ne.s32.totalorder %s76, %s77
    %p86 = scmp.eq.s32.totalorder %s19, 0
    %p87 = por %p85, %p86
    %p88 = scmp.ne.s32.totalorder %s76, %s77
    %p89 = scmp.eq.s32.totalorder %s20, 1
    %p90 = por %p88, %p89
    %p92 = scmp.ne.s32.totalorder %s77, %s91
    %p93 = scmp.eq.s32.totalorder %s20, 0
    %p94 = por %p92, %p93
    %s96 = sadd.s32 %s95, 1
    %p99 = scmp.eq.s32.totalorder %s14, 1
    %p100 = scmp.ne.s32.totalorder %s95, %s97
    %p101 = scmp.eq.s32.totalorder %s14, 0
    %p102 = por %p100, %p101
    %p103 = scmp.ne.s32.totalorder %s95, %s97
    %p104 = scmp.eq.s32.totalorder %s19, 1
    %p105 = por %p103, %p104
    %p106 = scmp.ne.s32.totalorder %s97, %s98
    %p107 = scmp.eq.s32.totalorder %s19, 0
    %p108 = por %p106, %p107
    %p109 = scmp.ne.s32.totalorder %s97, %s98
    %p110 = scmp.eq.s32.totalorder %s20, 1
    %p111 = por %p109, %p110
    %p113 = scmp.ne.s32.totalorder %s98, %s112
    %p114 = scmp.eq.s32.totalorder %s20, 0
    %p115 = por %p113, %p114
    %s117 = sadd.s32 %s116, 1
    %p120 = scmp.eq.s32.totalorder %s14, 1
    %p121 = scmp.ne.s32.totalorder %s116, %s118
    %p122 = scmp.eq.s32.totalorder %s14, 0
    %p123 = por %p121, %p122
    %p124 = scmp.ne.s32.totalorder %s116, %s118
    %p125 = scmp.eq.s32.totalorder %s19, 1
    %p126 = por %p124, %p125
    %p127 = scmp.ne.s32.totalorder %s118, %s119
    %p128 = scmp.eq.s32.totalorder %s19, 0
    %p129 = por %p127, %p128
    %p130 = scmp.ne.s32.totalorder %s118, %s119
    %p131 = scmp.eq.s32.totalorder %s20, 1
    %p132 = por %p130, %p131
    %p134 = scmp.ne.s32.totalorder %s119, %s133
    %p135 = scmp.eq.s32.totalorder %s20, 0
    %p136 = por %p134, %p135
    %s138 = sadd.s32 %s137, 1
    %p141 = scmp.eq.s32.totalorder %s14, 1
    %p142 = scmp.ne.s32.totalorder %s137, %s139
    %p143 = scmp.eq.s32.totalorder %s14, 0
    %p144 = por %p142, %p143
    %p145 = scmp.ne.s32.totalorder %s137, %s139
    %p146 = scmp.eq.s32.totalorder %s19, 1
    %p147 = por %p145, %p146
    %p148 = scmp.ne.s32.totalorder %s139, %s140
    %p149 = scmp.eq.s32.totalorder %s19, 0
    %p150 = por %p148, %p149
    %p151 = scmp.ne.s32.totalorder %s139, %s140
    %p152 = scmp.eq.s32.totalorder %s20, 1
    %p153 = por %p151, %p152
    %p155 = scmp.ne.s32.totalorder %s140, %s154
    %p156 = scmp.eq.s32.totalorder %s20, 0
    %p157 = por %p155, %p156
    %s159 = sadd.s32 %s158, 1
    %p162 = scmp.eq.s32.totalorder %s14, 1
    %p163 = scmp.ne.s32.totalorder %s158, %s160
    %p164 = scmp.eq.s32.totalorder %s14, 0
    %p165 = por %p163, %p164
    %p166 = scmp.ne.s32.totalorder %s158, %s160
    %p167 = scmp.eq.s32.totalorder %s19, 1
    %p168 = por %p166, %p167
    %p169 = scmp.ne.s32.totalorder %s160, %s161
    %p170 = scmp.eq.s32.totalorder %s19, 0
    %p171 = por %p169, %p170
    %p172 = scmp.ne.s32.totalorder %s160, %s161
    %p173 = scmp.eq.s32.totalorder %s20, 1
    %p174 = por %p172, %p173
    %p176 = scmp.ne.s32.totalorder %s161, %s175
    %p177 = scmp.eq.s32.totalorder %s20, 0
    %p178 = por %p176, %p177
    %s180 = sadd.s32 %s179, 1
    %p183 = scmp.eq.s32.totalorder %s14, 1
    %p184 = scmp.ne.s32.totalorder %s179, %s181
    %p185 = scmp.eq.s32.totalorder %s14, 0
    %p186 = por %p184, %p185
    %p187 = scmp.ne.s32.totalorder %s179, %s181
    %p188 = scmp.eq.s32.totalorder %s19, 1
    %p189 = por %p187, %p188
    %p190 = scmp.ne.s32.totalorder %s181, %s182
    %p191 = scmp.eq.s32.totalorder %s19, 0
    %p192 = por %p190, %p191
    %p193 = scmp.ne.s32.totalorder %s181, %s182
    %p194 = scmp.eq.s32.totalorder %s20, 1
    %p195 = por %p193, %p194
    %p197 = scmp.ne.s32.totalorder %s182, %s196
    %p198 = scmp.eq.s32.totalorder %s20, 0
    %p199 = por %p197, %p198
    %s200 = ssub.s32 %s14, %s21
    %p201 = scmp.eq.s32.totalorder %s200, 0
    %s203 = sadd.s32 %s202, 1
    %s204 = scalar_select %p201, %s202, %s203
    %p207 = pneg %p201
    %p208 = scmp.eq.s32.totalorder %s14, 1
    %p209 = por %p207, %p208
    %p210 = scmp.ne.s32.totalorder %s202, %s205
    %p211 = scmp.eq.s32.totalorder %s14, 0
    %p212 = por %p210, %p211
    %p213 = scmp.ne.s32.totalorder %s202, %s205
    %p214 = scmp.eq.s32.totalorder %s19, 1
    %p215 = por %p213, %p214
    %p216 = scmp.ne.s32.totalorder %s205, %s206
    %p217 = scmp.eq.s32.totalorder %s19, 0
    %p218 = por %p216, %p217
    %p219 = scmp.ne.s32.totalorder %s205, %s206
    %p220 = scmp.eq.s32.totalorder %s20, 1
    %p221 = por %p219, %p220
    %p223 = scmp.ne.s32.totalorder %s206, %s222
    %p224 = scmp.eq.s32.totalorder %s20, 0
    %p225 = por %p223, %p224
    %p226 = scmp.le.s32.totalorder 1, %s14
    %p227 = scmp.lt.s32.totalorder %s14, 3
    %p228 = pnand %p226, %p227
    %p229 = pneg %p228
    // Predicated region
    $region9: #{mnist_loss.1} parent=5 // pred_check
      _
    $region10: #{mnist_loss.1} parent=5 // pred_check_branch
      %231 = sbr.rel (%p228) target = $region12
    $region11: #{mnist_loss.1} parent=5 // pred_region
      %s232 = ssub.s32 %s14, 1
      // Predicated region
      $region13: #{mnist_loss.1} parent=11 // pred_check
        %p233 = pneg %p87
      $region14: #{mnist_loss.1} parent=11 // pred_check_branch
        %235 = sbr.rel (%p233) target = $region16
      $region15: #{mnist_loss.1} parent=11 // pred_region
        _
      $region16: #{mnist_loss.1} parent=11 // pred_fallthru
        _
      // Predicated region
      $region17: #{mnist_loss.1} parent=11 // pred_check
        %p236 = pneg %p108
      $region18: #{mnist_loss.1} parent=11 // pred_check_branch
        %238 = sbr.rel (%p236) target = $region20
      $region19: #{mnist_loss.1} parent=11 // pred_region
        _
      $region20: #{mnist_loss.1} parent=11 // pred_fallthru
        _
      // Predicated region
      $region21: #{mnist_loss.1} parent=11 // pred_check
        %p239 = pneg %p129
      $region22: #{mnist_loss.1} parent=11 // pred_check_branch
        %241 = sbr.rel (%p239) target = $region24
      $region23: #{mnist_loss.1} parent=11 // pred_region
        _
      $region24: #{mnist_loss.1} parent=11 // pred_fallthru
        _
      // Predicated region
      $region25: #{mnist_loss.1} parent=11 // pred_check
        %p242 = pneg %p150
      $region26: #{mnist_loss.1} parent=11 // pred_check_branch
        %244 = sbr.rel (%p242) target = $region28
      $region27: #{mnist_loss.1} parent=11 // pred_region
        _
      $region28: #{mnist_loss.1} parent=11 // pred_fallthru
        _
      // Predicated region
      $region29: #{mnist_loss.1} parent=11 // pred_check
        %p245 = pneg %p171
      $region30: #{mnist_loss.1} parent=11 // pred_check_branch
        %247 = sbr.rel (%p245) target = $region32
      $region31: #{mnist_loss.1} parent=11 // pred_region
        _
      $region32: #{mnist_loss.1} parent=11 // pred_fallthru
        _
      // Predicated region
      $region33: #{mnist_loss.1} parent=11 // pred_check
        %p248 = pneg %p192
      $region34: #{mnist_loss.1} parent=11 // pred_check_branch
        %250 = sbr.rel (%p248) target = $region36
      $region35: #{mnist_loss.1} parent=11 // pred_region
        _
      $region36: #{mnist_loss.1} parent=11 // pred_fallthru
        _
    $region12: #{mnist_loss.1} parent=5 // pred_fallthru
      _
    %p251 = scmp.lt.s32.totalorder %s14, 2
    // Predicated region
    $region37: #{mnist_loss.1} parent=5 // pred_check
      %p252 = pneg %p251
    $region38: #{mnist_loss.1} parent=5 // pred_check_branch
      %254 = sbr.rel (%p252) target = $region40
    $region39: #{mnist_loss.1} parent=5 // pred_region
      // Predicated region
      $region41: #{mnist_loss.1} parent=39 // pred_check
        %p255 = pneg %p34
      $region42: #{mnist_loss.1} parent=39 // pred_check_branch
        %257 = sbr.rel (%p255) target = $region44
      $region43: #{mnist_loss.1} parent=39 // pred_region
        %s258 = smul.u32 32, %s14
        %p259 = scmp.lt.s32.totalorder %s258, 63
        %s260 = scalar_select %p259, %s258, 63
        %s261 = smul.addr %s260, 7
        %s262 = smul.addr %s261, 8
        %s263 = scalar_lea.vmem %s0, %s262
        %s264 = smul.u32 32, %s14
      $region44: #{mnist_loss.1} parent=39 // pred_fallthru
        _
      // Predicated region
      $region45: #{mnist_loss.1} parent=39 // pred_check
        %p265 = pneg %p60
      $region46: #{mnist_loss.1} parent=39 // pred_check_branch
        %267 = sbr.rel (%p265) target = $region48
      $region47: #{mnist_loss.1} parent=39 // pred_region
        %s268 = smul.u32 32, %s14
        %p269 = scmp.lt.s32.totalorder %s268, 63
        %s270 = scalar_select %p269, %s268, 63
        %s271 = smul.addr %s270, 8
        %s272 = scalar_lea.vmem %s1, %s271
        %s273 = smul.u32 32, %s14
      $region48: #{mnist_loss.1} parent=39 // pred_fallthru
        _
    $region40: #{mnist_loss.1} parent=5 // pred_fallthru
      _
    %p274 = scmp.le.s32.totalorder 1, %s14
    %p275 = scmp.lt.s32.totalorder %s14, 3
    %p276 = pnand %p274, %p275
    %p277 = pneg %p276
    // Predicated region
    $region49: #{mnist_loss.1} parent=5 // pred_check
      _
    $region50: #{mnist_loss.1} parent=5 // pred_check_branch
      %279 = sbr.rel (%p276) target = $region52
    $region51: #{mnist_loss.1} parent=5 // pred_region
      %s280 = ssub.s32 %s14, 1
      %s281 = smul.u32 32, %s19
      %p282 = scmp.lt.s32.totalorder %s281, 63
      %s283 = scalar_select %p282, %s281, 63
      %s284 = smul.addr %s283, 7
      %s285 = smul.addr %s284, 8
      %s286 = scalar_lea.vmem %s0, %s285
      %p287 = pneg %p40
      %p288 = pneg %p37
      %s289 = smul.u32 32, %s19
      %p290 = scmp.lt.s32.totalorder %s289, 63
      %s291 = scalar_select %p290, %s289, 63
      %s292 = smul.addr %s291, 8
      %s293 = scalar_lea.vmem %s1, %s292
      %p294 = pneg %p66
      %p295 = pneg %p63
      %p296 = pneg %p87
      %p297 = pneg %p84
      %p298 = pneg %p108
      %p299 = pneg %p105
      %p300 = pneg %p129
      %p301 = pneg %p126
      %p302 = pneg %p150
      %p303 = pneg %p147
      %p304 = pneg %p171
      %p305 = pneg %p168
      %p306 = pneg %p192
      %p307 = pneg %p189
      %p308 = pneg %p218
      %p309 = pneg %p215
      %p310 = scmp.lt.s32.totalorder %s19, 1
      %s311 = scalar_select %p310, %s19, 1
      %s312 = smul.addr %s311, 8
      %s313 = scalar_lea.vmem %s8, %s312
      %s314 = smul.u32 32, %s19
      %p315 = scmp.lt.s32.totalorder %s314, 63
      %s316 = scalar_select %p315, %s314, 63
      %s317 = smul.addr %s316, 7
      %s318 = smul.addr %s317, 8
      %s319 = scalar_lea.vmem %s0, %s318
      %s320 = smul.u32 32, %s19
      %s321 = smul.u32 32, %s19
      %p322 = scmp.lt.s32.totalorder %s321, 63
      %s323 = scalar_select %p322, %s321, 63
      %s324 = smul.addr %s323, 8
      %s325 = scalar_lea.vmem %s1, %s324
      %s326 = smul.u32 32, %s19
      %p327 = scmp.lt.s32.totalorder %s19, 1
      %s328 = scalar_select %p327, %s19, 1
      %s329 = smul.addr %s328, 8
      %s330 = scalar_lea.vmem %s8, %s329
      %v332 = vld [vmem:[%s319] sm:$0xff]
      %v333 = vld [vmem:[%s319 + $0x8] sm:$0xff]
      %v334 = vld [vmem:[%s319 + $0x10] sm:$0xff]
      %v335 = vld [vmem:[%s319 + $0x18] sm:$0xff]
      %v336 = vld [vmem:[%s319 + $0x20] sm:$0xff]
      %v337 = vld [vmem:[%s319 + $0x28] sm:$0xff]
      %v338 = vld [vmem:[%s319 + $0x30] sm:$0xff]
      %v339 = vld [vmem:[%s319 + $0x38] sm:$0xff]
      %v340 = vld [vmem:[%s319 + $0x40] sm:$0xff]
      %v341 = vld [vmem:[%s319 + $0x48] sm:$0xff]
      %v342 = vld [vmem:[%s319 + $0x50] sm:$0xff]
      %v343 = vld [vmem:[%s319 + $0x58] sm:$0xff]
      %v344 = vld [vmem:[%s319 + $0x60] sm:$0xff]
      %v345 = vld [vmem:[%s319 + $0x68] sm:$0xff]
      %v346 = vld [vmem:[%s319 + $0x70] sm:$0xff]
      %v347 = vld [vmem:[%s319 + $0x78] sm:$0xff]
      %v348 = vld [vmem:[%s319 + $0x80] sm:$0xff]
      %v349 = vld [vmem:[%s319 + $0x88] sm:$0xff]
      %v350 = vld [vmem:[%s319 + $0x90] sm:$0xff]
      %v351 = vld [vmem:[%s319 + $0x98] sm:$0xff]
      %v352 = vld [vmem:[%s319 + $0xa0] sm:$0xff]
      %v353 = vld [vmem:[%s319 + $0xa8] sm:$0xff]
      %v354 = vld [vmem:[%s319 + $0xb0] sm:$0xff]
      %v355 = vld [vmem:[%s319 + $0xb8] sm:$0xff]
      %v356 = vld [vmem:[%s319 + $0xc0] sm:$0xff]
      %v357 = vld [vmem:[%s319 + $0xc8] sm:$0xff]
      %v358 = vld [vmem:[%s319 + $0xd0] sm:$0xff]
      %v359 = vld [vmem:[%s319 + $0xd8] sm:$0xff]
      %v360 = vld [vmem:[%s319 + $0xe0] sm:$0xff]
      %v361 = vld [vmem:[%s319 + $0xe8] sm:$0xff]
      %v362 = vld [vmem:[%s319 + $0xf0] sm:$0xff]
      %v363 = vld [vmem:[%s319 + $0xf8] sm:$0xff]
      %v364 = vld [vmem:[%s319 + $0x100] sm:$0xff]
      %v365 = vld [vmem:[%s319 + $0x108] sm:$0xff]
      %v366 = vld [vmem:[%s319 + $0x110] sm:$0xff]
      %v367 = vld [vmem:[%s319 + $0x118] sm:$0xff]
      %v368 = vld [vmem:[%s319 + $0x120] sm:$0xff]
      %v369 = vld [vmem:[%s319 + $0x128] sm:$0xff]
      %v370 = vld [vmem:[%s319 + $0x130] sm:$0xff]
      %v371 = vld [vmem:[%s319 + $0x138] sm:$0xff]
      %v372 = vld [vmem:[%s319 + $0x140] sm:$0xff]
      %v373 = vld [vmem:[%s319 + $0x148] sm:$0xff]
      %v374 = vld [vmem:[%s319 + $0x150] sm:$0xff]
      %v375 = vld [vmem:[%s319 + $0x158] sm:$0xff]
      %v376 = vld [vmem:[%s319 + $0x160] sm:$0xff]
      %v377 = vld [vmem:[%s319 + $0x168] sm:$0xff]
      %v378 = vld [vmem:[%s319 + $0x170] sm:$0xff]
      %v379 = vld [vmem:[%s319 + $0x178] sm:$0xff]
      %v380 = vld [vmem:[%s319 + $0x180] sm:$0xff]
      %v381 = vld [vmem:[%s319 + $0x188] sm:$0xff]
      %v382 = vld [vmem:[%s319 + $0x190] sm:$0xff]
      %v383 = vld [vmem:[%s319 + $0x198] sm:$0xff]
      %v384 = vld [vmem:[%s319 + $0x1a0] sm:$0xff]
      %v385 = vld [vmem:[%s319 + $0x1a8] sm:$0xff]
      %v386 = vld [vmem:[%s319 + $0x1b0] sm:$0xff]
      %v387 = vld [vmem:[%s319 + $0x1b8] sm:$0xff]
      %v388 = vld [vmem:[%s319 + $0x1c0] sm:$0xff]
      %v389 = vld [vmem:[%s319 + $0x1c8] sm:$0xff]
      %v390 = vld [vmem:[%s319 + $0x1d0] sm:$0xff]
      %v391 = vld [vmem:[%s319 + $0x1d8] sm:$0xff]
      %v392 = vld [vmem:[%s319 + $0x1e0] sm:$0xff]
      %v393 = vld [vmem:[%s319 + $0x1e8] sm:$0xff]
      %v394 = vld [vmem:[%s319 + $0x1f0] sm:$0xff]
      %v395 = vld [vmem:[%s319 + $0x1f8] sm:$0xff]
      %v396 = vld [vmem:[%s319 + $0x200] sm:$0xff]
      %v397 = vld [vmem:[%s319 + $0x208] sm:$0xff]
      %v398 = vld [vmem:[%s319 + $0x210] sm:$0xff]
      %v399 = vld [vmem:[%s319 + $0x218] sm:$0xff]
      %v400 = vld [vmem:[%s319 + $0x220] sm:$0xff]
      %v401 = vld [vmem:[%s319 + $0x228] sm:$0xff]
      %v402 = vld [vmem:[%s319 + $0x230] sm:$0xff]
      %v403 = vld [vmem:[%s319 + $0x238] sm:$0xff]
      %v404 = vld [vmem:[%s319 + $0x240] sm:$0xff]
      %v405 = vld [vmem:[%s319 + $0x248] sm:$0xff]
      %v406 = vld [vmem:[%s319 + $0x250] sm:$0xff]
      %v407 = vld [vmem:[%s319 + $0x258] sm:$0xff]
      %v408 = vld [vmem:[%s319 + $0x260] sm:$0xff]
      %v409 = vld [vmem:[%s319 + $0x268] sm:$0xff]
      %v410 = vld [vmem:[%s319 + $0x270] sm:$0xff]
      %v411 = vld [vmem:[%s319 + $0x278] sm:$0xff]
      %v412 = vld [vmem:[%s319 + $0x280] sm:$0xff]
      %v413 = vld [vmem:[%s319 + $0x288] sm:$0xff]
      %v414 = vld [vmem:[%s319 + $0x290] sm:$0xff]
      %v415 = vld [vmem:[%s319 + $0x298] sm:$0xff]
      %v416 = vld [vmem:[%s319 + $0x2a0] sm:$0xff]
      %v417 = vld [vmem:[%s319 + $0x2a8] sm:$0xff]
      %v418 = vld [vmem:[%s319 + $0x2b0] sm:$0xff]
      %v419 = vld [vmem:[%s319 + $0x2b8] sm:$0xff]
      %v420 = vld [vmem:[%s319 + $0x2c0] sm:$0xff]
      %v421 = vld [vmem:[%s319 + $0x2c8] sm:$0xff]
      %v422 = vld [vmem:[%s319 + $0x2d0] sm:$0xff]
      %v423 = vld [vmem:[%s319 + $0x2d8] sm:$0xff]
      %v424 = vld [vmem:[%s319 + $0x2e0] sm:$0xff]
      %v425 = vld [vmem:[%s319 + $0x2e8] sm:$0xff]
      %v426 = vld [vmem:[%s319 + $0x2f0] sm:$0xff]
      %v427 = vld [vmem:[%s319 + $0x2f8] sm:$0xff]
      %v428 = vld [vmem:[%s319 + $0x300] sm:$0xff]
      %v429 = vld [vmem:[%s319 + $0x308] sm:$0xff]
      %v430 = vld [vmem:[%s319 + $0x310] sm:$0xff]
      %v431 = vld [vmem:[%s319 + $0x318] sm:$0xff]
      %v432 = vld [vmem:[%s319 + $0x320] sm:$0xff]
      %v433 = vld [vmem:[%s319 + $0x328] sm:$0xff]
      %v434 = vld [vmem:[%s319 + $0x330] sm:$0xff]
      %v435 = vld [vmem:[%s319 + $0x338] sm:$0xff]
      %v436 = vld [vmem:[%s319 + $0x340] sm:$0xff]
      %v437 = vld [vmem:[%s319 + $0x348] sm:$0xff]
      %v438 = vld [vmem:[%s319 + $0x350] sm:$0xff]
      %v439 = vld [vmem:[%s319 + $0x358] sm:$0xff]
      %v440 = vld [vmem:[%s319 + $0x360] sm:$0xff]
      %v441 = vld [vmem:[%s319 + $0x368] sm:$0xff]
      %v442 = vld [vmem:[%s319 + $0x370] sm:$0xff]
      %v443 = vld [vmem:[%s319 + $0x378] sm:$0xff]
      %v444 = vld [vmem:[%s319 + $0x380] sm:$0xff]
      %v445 = vld [vmem:[%s319 + $0x388] sm:$0xff]
      %v446 = vld [vmem:[%s319 + $0x390] sm:$0xff]
      %v447 = vld [vmem:[%s319 + $0x398] sm:$0xff]
      %v448 = vld [vmem:[%s319 + $0x3a0] sm:$0xff]
      %v449 = vld [vmem:[%s319 + $0x3a8] sm:$0xff]
      %v450 = vld [vmem:[%s319 + $0x3b0] sm:$0xff]
      %v451 = vld [vmem:[%s319 + $0x3b8] sm:$0xff]
      %v452 = vld [vmem:[%s319 + $0x3c0] sm:$0xff]
      %v453 = vld [vmem:[%s319 + $0x3c8] sm:$0xff]
      %v454 = vld [vmem:[%s319 + $0x3d0] sm:$0xff]
      %v455 = vld [vmem:[%s319 + $0x3d8] sm:$0xff]
      %v456 = vld [vmem:[%s319 + $0x3e0] sm:$0xff]
      %v457 = vld [vmem:[%s319 + $0x3e8] sm:$0xff]
      %v458 = vld [vmem:[%s319 + $0x3f0] sm:$0xff]
      %v459 = vld [vmem:[%s319 + $0x3f8] sm:$0xff]
      %v460 = vld [vmem:[%s319 + $0x400] sm:$0xff]
      %v461 = vld [vmem:[%s319 + $0x408] sm:$0xff]
      %v462 = vld [vmem:[%s319 + $0x410] sm:$0xff]
      %v463 = vld [vmem:[%s319 + $0x418] sm:$0xff]
      %v464 = vld [vmem:[%s319 + $0x420] sm:$0xff]
      %v465 = vld [vmem:[%s319 + $0x428] sm:$0xff]
      %v466 = vld [vmem:[%s319 + $0x430] sm:$0xff]
      %v467 = vld [vmem:[%s319 + $0x438] sm:$0xff]
      %v468 = vld [vmem:[%s319 + $0x440] sm:$0xff]
      %v469 = vld [vmem:[%s319 + $0x448] sm:$0xff]
      %v470 = vld [vmem:[%s319 + $0x450] sm:$0xff]
      %v471 = vld [vmem:[%s319 + $0x458] sm:$0xff]
      %v472 = vld [vmem:[%s319 + $0x460] sm:$0xff]
      %v473 = vld [vmem:[%s319 + $0x468] sm:$0xff]
      %v474 = vld [vmem:[%s319 + $0x470] sm:$0xff]
      %v475 = vld [vmem:[%s319 + $0x478] sm:$0xff]
      %v476 = vld [vmem:[%s319 + $0x480] sm:$0xff]
      %v477 = vld [vmem:[%s319 + $0x488] sm:$0xff]
      %v478 = vld [vmem:[%s319 + $0x490] sm:$0xff]
      %v479 = vld [vmem:[%s319 + $0x498] sm:$0xff]
      %v480 = vld [vmem:[%s319 + $0x4a0] sm:$0xff]
      %v481 = vld [vmem:[%s319 + $0x4a8] sm:$0xff]
      %v482 = vld [vmem:[%s319 + $0x4b0] sm:$0xff]
      %v483 = vld [vmem:[%s319 + $0x4b8] sm:$0xff]
      %v484 = vld [vmem:[%s319 + $0x4c0] sm:$0xff]
      %v485 = vld [vmem:[%s319 + $0x4c8] sm:$0xff]
      %v486 = vld [vmem:[%s319 + $0x4d0] sm:$0xff]
      %v487 = vld [vmem:[%s319 + $0x4d8] sm:$0xff]
      %v488 = vld [vmem:[%s319 + $0x4e0] sm:$0xff]
      %v489 = vld [vmem:[%s319 + $0x4e8] sm:$0xff]
      %v490 = vld [vmem:[%s319 + $0x4f0] sm:$0xff]
      %v491 = vld [vmem:[%s319 + $0x4f8] sm:$0xff]
      %v492 = vld [vmem:[%s319 + $0x500] sm:$0xff]
      %v493 = vld [vmem:[%s319 + $0x508] sm:$0xff]
      %v494 = vld [vmem:[%s319 + $0x510] sm:$0xff]
      %v495 = vld [vmem:[%s319 + $0x518] sm:$0xff]
      %v496 = vld [vmem:[%s319 + $0x520] sm:$0xff]
      %v497 = vld [vmem:[%s319 + $0x528] sm:$0xff]
      %v498 = vld [vmem:[%s319 + $0x530] sm:$0xff]
      %v499 = vld [vmem:[%s319 + $0x538] sm:$0xff]
      %v500 = vld [vmem:[%s319 + $0x540] sm:$0xff]
      %v501 = vld [vmem:[%s319 + $0x548] sm:$0xff]
      %v502 = vld [vmem:[%s319 + $0x550] sm:$0xff]
      %v503 = vld [vmem:[%s319 + $0x558] sm:$0xff]
      %v504 = vld [vmem:[%s319 + $0x560] sm:$0xff]
      %v505 = vld [vmem:[%s319 + $0x568] sm:$0xff]
      %v506 = vld [vmem:[%s319 + $0x570] sm:$0xff]
      %v507 = vld [vmem:[%s319 + $0x578] sm:$0xff]
      %v508 = vld [vmem:[%s319 + $0x580] sm:$0xff]
      %v509 = vld [vmem:[%s319 + $0x588] sm:$0xff]
      %v510 = vld [vmem:[%s319 + $0x590] sm:$0xff]
      %v511 = vld [vmem:[%s319 + $0x598] sm:$0xff]
      %v512 = vld [vmem:[%s319 + $0x5a0] sm:$0xff]
      %v513 = vld [vmem:[%s319 + $0x5a8] sm:$0xff]
      %v514 = vld [vmem:[%s319 + $0x5b0] sm:$0xff]
      %v515 = vld [vmem:[%s319 + $0x5b8] sm:$0xff]
      %v516 = vld [vmem:[%s319 + $0x5c0] sm:$0xff]
      %v517 = vld [vmem:[%s319 + $0x5c8] sm:$0xff]
      %v518 = vld [vmem:[%s319 + $0x5d0] sm:$0xff]
      %v519 = vld [vmem:[%s319 + $0x5d8] sm:$0xff]
      %v520 = vld [vmem:[%s319 + $0x5e0] sm:$0xff]
      %v521 = vld [vmem:[%s319 + $0x5e8] sm:$0xff]
      %v522 = vld [vmem:[%s319 + $0x5f0] sm:$0xff]
      %v523 = vld [vmem:[%s319 + $0x5f8] sm:$0xff]
      %v524 = vld [vmem:[%s319 + $0x600] sm:$0xff]
      %v525 = vld [vmem:[%s319 + $0x608] sm:$0xff]
      %v526 = vld [vmem:[%s319 + $0x610] sm:$0xff]
      %v527 = vld [vmem:[%s319 + $0x618] sm:$0xff]
      %v528 = vld [vmem:[%s319 + $0x620] sm:$0xff]
      %v529 = vld [vmem:[%s319 + $0x628] sm:$0xff]
      %v530 = vld [vmem:[%s319 + $0x630] sm:$0xff]
      %v531 = vld [vmem:[%s319 + $0x638] sm:$0xff]
      %v532 = vld [vmem:[%s319 + $0x640] sm:$0xff]
      %v533 = vld [vmem:[%s319 + $0x648] sm:$0xff]
      %v534 = vld [vmem:[%s319 + $0x650] sm:$0xff]
      %v535 = vld [vmem:[%s319 + $0x658] sm:$0xff]
      %v536 = vld [vmem:[%s319 + $0x660] sm:$0xff]
      %v537 = vld [vmem:[%s319 + $0x668] sm:$0xff]
      %v538 = vld [vmem:[%s319 + $0x670] sm:$0xff]
      %v539 = vld [vmem:[%s319 + $0x678] sm:$0xff]
      %v540 = vld [vmem:[%s319 + $0x680] sm:$0xff]
      %v541 = vld [vmem:[%s319 + $0x688] sm:$0xff]
      %v542 = vld [vmem:[%s319 + $0x690] sm:$0xff]
      %v543 = vld [vmem:[%s319 + $0x698] sm:$0xff]
      %v544 = vld [vmem:[%s319 + $0x6a0] sm:$0xff]
      %v545 = vld [vmem:[%s319 + $0x6a8] sm:$0xff]
      %v546 = vld [vmem:[%s319 + $0x6b0] sm:$0xff]
      %v547 = vld [vmem:[%s319 + $0x6b8] sm:$0xff]
      %v548 = vld [vmem:[%s319 + $0x6c0] sm:$0xff]
      %v549 = vld [vmem:[%s319 + $0x6c8] sm:$0xff]
      %v550 = vld [vmem:[%s319 + $0x6d0] sm:$0xff]
      %v551 = vld [vmem:[%s319 + $0x6d8] sm:$0xff]
      %v552 = vld [vmem:[%s319 + $0x6e0] sm:$0xff]
      %v553 = vld [vmem:[%s319 + $0x6e8] sm:$0xff]
      %v554 = vld [vmem:[%s319 + $0x6f0] sm:$0xff]
      %v555 = vld [vmem:[%s319 + $0x6f8] sm:$0xff]
      %v556 = vpack.c.bf16 %v339, %v332
      %v557 = vpack.c.bf16 %v340, %v333
      %v558 = vpack.c.bf16 %v341, %v334
      %v559 = vpack.c.bf16 %v342, %v335
      %v560 = vpack.c.bf16 %v343, %v336
      %v561 = vpack.c.bf16 %v344, %v337
      %v562 = vpack.c.bf16 %v345, %v338
      %v563 = vpack.c.bf16 %v353, %v346
      %v564 = vpack.c.bf16 %v354, %v347
      %v565 = vpack.c.bf16 %v355, %v348
      %v566 = vpack.c.bf16 %v356, %v349
      %v567 = vpack.c.bf16 %v357, %v350
      %v568 = vpack.c.bf16 %v358, %v351
      %v569 = vpack.c.bf16 %v359, %v352
      %v570 = vpack.c.bf16 %v367, %v360
      %v571 = vpack.c.bf16 %v368, %v361
      %v572 = vpack.c.bf16 %v369, %v362
      %v573 = vpack.c.bf16 %v370, %v363
      %v574 = vpack.c.bf16 %v371, %v364
      %v575 = vpack.c.bf16 %v372, %v365
      %v576 = vpack.c.bf16 %v373, %v366
      %v577 = vpack.c.bf16 %v381, %v374
      %v578 = vpack.c.bf16 %v382, %v375
      %v579 = vpack.c.bf16 %v383, %v376
      %v580 = vpack.c.bf16 %v384, %v377
      %v581 = vpack.c.bf16 %v385, %v378
      %v582 = vpack.c.bf16 %v386, %v379
      %v583 = vpack.c.bf16 %v387, %v380
      %v584 = vpack.c.bf16 %v395, %v388
      %v585 = vpack.c.bf16 %v396, %v389
      %v586 = vpack.c.bf16 %v397, %v390
      %v587 = vpack.c.bf16 %v398, %v391
      %v588 = vpack.c.bf16 %v399, %v392
      %v589 = vpack.c.bf16 %v400, %v393
      %v590 = vpack.c.bf16 %v401, %v394
      %v591 = vpack.c.bf16 %v409, %v402
      %v592 = vpack.c.bf16 %v410, %v403
      %v593 = vpack.c.bf16 %v411, %v404
      %v594 = vpack.c.bf16 %v412, %v405
      %v595 = vpack.c.bf16 %v413, %v406
      %v596 = vpack.c.bf16 %v414, %v407
      %v597 = vpack.c.bf16 %v415, %v408
      %v598 = vpack.c.bf16 %v423, %v416
      %v599 = vpack.c.bf16 %v424, %v417
      %v600 = vpack.c.bf16 %v425, %v418
      %v601 = vpack.c.bf16 %v426, %v419
      %v602 = vpack.c.bf16 %v427, %v420
      %v603 = vpack.c.bf16 %v428, %v421
      %v604 = vpack.c.bf16 %v429, %v422
      %v605 = vpack.c.bf16 %v437, %v430
      %v606 = vpack.c.bf16 %v438, %v431
      %v607 = vpack.c.bf16 %v439, %v432
      %v608 = vpack.c.bf16 %v440, %v433
      %v609 = vpack.c.bf16 %v441, %v434
      %v610 = vpack.c.bf16 %v442, %v435
      %v611 = vpack.c.bf16 %v443, %v436
      %v612 = vpack.c.bf16 %v451, %v444
      %v613 = vpack.c.bf16 %v452, %v445
      %v614 = vpack.c.bf16 %v453, %v446
      %v615 = vpack.c.bf16 %v454, %v447
      %v616 = vpack.c.bf16 %v455, %v448
      %v617 = vpack.c.bf16 %v456, %v449
      %v618 = vpack.c.bf16 %v457, %v450
      %v619 = vpack.c.bf16 %v465, %v458
      %v620 = vpack.c.bf16 %v466, %v459
      %v621 = vpack.c.bf16 %v467, %v460
      %v622 = vpack.c.bf16 %v468, %v461
      %v623 = vpack.c.bf16 %v469, %v462
      %v624 = vpack.c.bf16 %v470, %v463
      %v625 = vpack.c.bf16 %v471, %v464
      %v626 = vpack.c.bf16 %v479, %v472
      %v627 = vpack.c.bf16 %v480, %v473
      %v628 = vpack.c.bf16 %v481, %v474
      %v629 = vpack.c.bf16 %v482, %v475
      %v630 = vpack.c.bf16 %v483, %v476
      %v631 = vpack.c.bf16 %v484, %v477
      %v632 = vpack.c.bf16 %v485, %v478
      %v633 = vpack.c.bf16 %v493, %v486
      %v634 = vpack.c.bf16 %v494, %v487
      %v635 = vpack.c.bf16 %v495, %v488
      %v636 = vpack.c.bf16 %v496, %v489
      %v637 = vpack.c.bf16 %v497, %v490
      %v638 = vpack.c.bf16 %v498, %v491
      %v639 = vpack.c.bf16 %v499, %v492
      %v640 = vpack.c.bf16 %v507, %v500
      %v641 = vpack.c.bf16 %v508, %v501
      %v642 = vpack.c.bf16 %v509, %v502
      %v643 = vpack.c.bf16 %v510, %v503
      %v644 = vpack.c.bf16 %v511, %v504
      %v645 = vpack.c.bf16 %v512, %v505
      %v646 = vpack.c.bf16 %v513, %v506
      %v647 = vpack.c.bf16 %v521, %v514
      %v648 = vpack.c.bf16 %v522, %v515
      %v649 = vpack.c.bf16 %v523, %v516
      %v650 = vpack.c.bf16 %v524, %v517
      %v651 = vpack.c.bf16 %v525, %v518
      %v652 = vpack.c.bf16 %v526, %v519
      %v653 = vpack.c.bf16 %v527, %v520
      %v654 = vpack.c.bf16 %v535, %v528
      %v655 = vpack.c.bf16 %v536, %v529
      %v656 = vpack.c.bf16 %v537, %v530
      %v657 = vpack.c.bf16 %v538, %v531
      %v658 = vpack.c.bf16 %v539, %v532
      %v659 = vpack.c.bf16 %v540, %v533
      %v660 = vpack.c.bf16 %v541, %v534
      %v661 = vpack.c.bf16 %v549, %v542
      %v662 = vpack.c.bf16 %v550, %v543
      %v663 = vpack.c.bf16 %v551, %v544
      %v664 = vpack.c.bf16 %v552, %v545
      %v665 = vpack.c.bf16 %v553, %v546
      %v666 = vpack.c.bf16 %v554, %v547
      %v667 = vpack.c.bf16 %v555, %v548
      %v668 = vld [vmem:[%s2] sm:$0xf]
      %v669 = vld [vmem:[%s2 + $0x4] sm:$0xf]
      %v670 = vld [vmem:[%s2 + $0x8] sm:$0xf]
      %v671 = vld [vmem:[%s2 + $0xc] sm:$0xf]
      %v672 = vld [vmem:[%s2 + $0x10] sm:$0xf]
      %v673 = vld [vmem:[%s2 + $0x14] sm:$0xf]
      %v674 = vld [vmem:[%s2 + $0x18] sm:$0xf]
      %v675 = vld [vmem:[%s2 + $0x1c] sm:$0xf]
      %v676 = vld [vmem:[%s2 + $0x20] sm:$0xf]
      %v677 = vld [vmem:[%s2 + $0x24] sm:$0xf]
      %v678 = vld [vmem:[%s2 + $0x28] sm:$0xf]
      %v679 = vld [vmem:[%s2 + $0x2c] sm:$0xf]
      %v680 = vld [vmem:[%s2 + $0x30] sm:$0xf]
      %v681 = vld [vmem:[%s2 + $0x34] sm:$0xf]
      %v682 = vld [vmem:[%s2 + $0x38] sm:$0xf]
      %v683 = vld [vmem:[%s2 + $0x3c] sm:$0xf]
      %v684 = vld [vmem:[%s2 + $0x40] sm:$0xf]
      %v685 = vld [vmem:[%s2 + $0x44] sm:$0xf]
      %v686 = vld [vmem:[%s2 + $0x48] sm:$0xf]
      %v687 = vld [vmem:[%s2 + $0x4c] sm:$0xf]
      %v688 = vld [vmem:[%s2 + $0x50] sm:$0xf]
      %v689 = vld [vmem:[%s2 + $0x54] sm:$0xf]
      %v690 = vld [vmem:[%s2 + $0x58] sm:$0xf]
      %v691 = vld [vmem:[%s2 + $0x5c] sm:$0xf]
      %v692 = vld [vmem:[%s2 + $0x60] sm:$0xf]
      %v693 = vld [vmem:[%s2 + $0x64] sm:$0xf]
      %v694 = vld [vmem:[%s2 + $0x68] sm:$0xf]
      %v695 = vld [vmem:[%s2 + $0x6c] sm:$0xf]
      %v696 = vld [vmem:[%s2 + $0x70] sm:$0xf]
      %v697 = vld [vmem:[%s2 + $0x74] sm:$0xf]
      %v698 = vld [vmem:[%s2 + $0x78] sm:$0xf]
      %v699 = vld [vmem:[%s2 + $0x7c] sm:$0xf]
      %v700 = vld [vmem:[%s2 + $0x80] sm:$0xf]
      %v701 = vld [vmem:[%s2 + $0x84] sm:$0xf]
      %v702 = vld [vmem:[%s2 + $0x88] sm:$0xf]
      %v703 = vld [vmem:[%s2 + $0x8c] sm:$0xf]
      %v704 = vld [vmem:[%s2 + $0x90] sm:$0xf]
      %v705 = vld [vmem:[%s2 + $0x94] sm:$0xf]
      %v706 = vld [vmem:[%s2 + $0x98] sm:$0xf]
      %v707 = vld [vmem:[%s2 + $0x9c] sm:$0xf]
      %v708 = vld [vmem:[%s2 + $0xa0] sm:$0xf]
      %v709 = vld [vmem:[%s2 + $0xa4] sm:$0xf]
      %v710 = vld [vmem:[%s2 + $0xa8] sm:$0xf]
      %v711 = vld [vmem:[%s2 + $0xac] sm:$0xf]
      %v712 = vld [vmem:[%s2 + $0xb0] sm:$0xf]
      %v713 = vld [vmem:[%s2 + $0xb4] sm:$0xf]
      %v714 = vld [vmem:[%s2 + $0xb8] sm:$0xf]
      %v715 = vld [vmem:[%s2 + $0xbc] sm:$0xf]
      %v716 = vld [vmem:[%s2 + $0xc0] sm:$0xf]
      %v717 = vld [vmem:[%s2 + $0xc4] sm:$0xf]
      %v718 = vld [vmem:[%s2 + $0xc8] sm:$0xf]
      %v719 = vld [vmem:[%s2 + $0xcc] sm:$0xf]
      %v720 = vld [vmem:[%s2 + $0xd0] sm:$0xf]
      %v721 = vld [vmem:[%s2 + $0xd4] sm:$0xf]
      %v722 = vld [vmem:[%s2 + $0xd8] sm:$0xf]
      %v723 = vld [vmem:[%s2 + $0xdc] sm:$0xf]
      %v724 = vld [vmem:[%s2 + $0xe0] sm:$0xf]
      %v725 = vld [vmem:[%s2 + $0xe4] sm:$0xf]
      %v726 = vld [vmem:[%s2 + $0xe8] sm:$0xf]
      %v727 = vld [vmem:[%s2 + $0xec] sm:$0xf]
      %v728 = vld [vmem:[%s2 + $0xf0] sm:$0xf]
      %v729 = vld [vmem:[%s2 + $0xf4] sm:$0xf]
      %v730 = vld [vmem:[%s2 + $0xf8] sm:$0xf]
      %v731 = vld [vmem:[%s2 + $0xfc] sm:$0xf]
      %v732 = vld [vmem:[%s2 + $0x100] sm:$0xf]
      %v733 = vld [vmem:[%s2 + $0x104] sm:$0xf]
      %v734 = vld [vmem:[%s2 + $0x108] sm:$0xf]
      %v735 = vld [vmem:[%s2 + $0x10c] sm:$0xf]
      %v736 = vld [vmem:[%s2 + $0x110] sm:$0xf]
      %v737 = vld [vmem:[%s2 + $0x114] sm:$0xf]
      %v738 = vld [vmem:[%s2 + $0x118] sm:$0xf]
      %v739 = vld [vmem:[%s2 + $0x11c] sm:$0xf]
      %v740 = vld [vmem:[%s2 + $0x120] sm:$0xf]
      %v741 = vld [vmem:[%s2 + $0x124] sm:$0xf]
      %v742 = vld [vmem:[%s2 + $0x128] sm:$0xf]
      %v743 = vld [vmem:[%s2 + $0x12c] sm:$0xf]
      %v744 = vld [vmem:[%s2 + $0x130] sm:$0xf]
      %v745 = vld [vmem:[%s2 + $0x134] sm:$0xf]
      %v746 = vld [vmem:[%s2 + $0x138] sm:$0xf]
      %v747 = vld [vmem:[%s2 + $0x13c] sm:$0xf]
      %v748 = vld [vmem:[%s2 + $0x140] sm:$0xf]
      %v749 = vld [vmem:[%s2 + $0x144] sm:$0xf]
      %v750 = vld [vmem:[%s2 + $0x148] sm:$0xf]
      %v751 = vld [vmem:[%s2 + $0x14c] sm:$0xf]
      %v752 = vld [vmem:[%s2 + $0x150] sm:$0xf]
      %v753 = vld [vmem:[%s2 + $0x154] sm:$0xf]
      %v754 = vld [vmem:[%s2 + $0x158] sm:$0xf]
      %v755 = vld [vmem:[%s2 + $0x15c] sm:$0xf]
      %v756 = vld [vmem:[%s2 + $0x160] sm:$0xf]
      %v757 = vld [vmem:[%s2 + $0x164] sm:$0xf]
      %v758 = vld [vmem:[%s2 + $0x168] sm:$0xf]
      %v759 = vld [vmem:[%s2 + $0x16c] sm:$0xf]
      %v760 = vld [vmem:[%s2 + $0x170] sm:$0xf]
      %v761 = vld [vmem:[%s2 + $0x174] sm:$0xf]
      %v762 = vld [vmem:[%s2 + $0x178] sm:$0xf]
      %v763 = vld [vmem:[%s2 + $0x17c] sm:$0xf]
      %v764 = vld [vmem:[%s2 + $0x180] sm:$0xf]
      %v765 = vld [vmem:[%s2 + $0x184] sm:$0xf]
      %v766 = vld [vmem:[%s3] sm:$0x1]
      %v768 = vperm.slane %v766, 0
      %v868 = vunpack.c.l.b16 %v668
      %v869 = vunpack.c.l.b16 %v669
      %v870 = vunpack.c.l.b16 %v670
      %v871 = vunpack.c.l.b16 %v671
      %v872 = vunpack.c.l.b16 %v672
      %v873 = vunpack.c.l.b16 %v673
      %v874 = vunpack.c.l.b16 %v674
      %v875 = vunpack.c.l.b16 %v675
      %v876 = vunpack.c.l.b16 %v676
      %v877 = vunpack.c.l.b16 %v677
      %v878 = vunpack.c.l.b16 %v678
      %v879 = vunpack.c.l.b16 %v679
      %v880 = vunpack.c.l.b16 %v680
      %v881 = vunpack.c.l.b16 %v681
      %v882 = vunpack.c.l.b16 %v682
      %v883 = vunpack.c.l.b16 %v683
      %v884 = vunpack.c.l.b16 %v684
      %v885 = vunpack.c.l.b16 %v685
      %v886 = vunpack.c.l.b16 %v686
      %v887 = vunpack.c.l.b16 %v687
      %v888 = vunpack.c.l.b16 %v688
      %v889 = vunpack.c.l.b16 %v689
      %v890 = vunpack.c.l.b16 %v690
      %v891 = vunpack.c.l.b16 %v691
      %v892 = vunpack.c.l.b16 %v692
      %v893 = vunpack.c.l.b16 %v693
      %v894 = vunpack.c.l.b16 %v694
      %v895 = vunpack.c.l.b16 %v695
      %v896 = vunpack.c.l.b16 %v696
      %v897 = vunpack.c.l.b16 %v697
      %v898 = vunpack.c.l.b16 %v698
      %v899 = vunpack.c.l.b16 %v699
      %v900 = vunpack.c.l.b16 %v700
      %v901 = vunpack.c.l.b16 %v701
      %v902 = vunpack.c.l.b16 %v702
      %v903 = vunpack.c.l.b16 %v703
      %v904 = vunpack.c.l.b16 %v704
      %v905 = vunpack.c.l.b16 %v705
      %v906 = vunpack.c.l.b16 %v706
      %v907 = vunpack.c.l.b16 %v707
      %v908 = vunpack.c.l.b16 %v708
      %v909 = vunpack.c.l.b16 %v709
      %v910 = vunpack.c.l.b16 %v710
      %v911 = vunpack.c.l.b16 %v711
      %v912 = vunpack.c.l.b16 %v712
      %v913 = vunpack.c.l.b16 %v713
      %v914 = vunpack.c.l.b16 %v714
      %v915 = vunpack.c.l.b16 %v715
      %v916 = vunpack.c.l.b16 %v716
      %v917 = vunpack.c.l.b16 %v717
      %v918 = vunpack.c.l.b16 %v718
      %v919 = vunpack.c.l.b16 %v719
      %v920 = vunpack.c.l.b16 %v720
      %v921 = vunpack.c.l.b16 %v721
      %v922 = vunpack.c.l.b16 %v722
      %v923 = vunpack.c.l.b16 %v723
      %v924 = vunpack.c.l.b16 %v724
      %v925 = vunpack.c.l.b16 %v725
      %v926 = vunpack.c.l.b16 %v726
      %v927 = vunpack.c.l.b16 %v727
      %v928 = vunpack.c.l.b16 %v728
      %v929 = vunpack.c.l.b16 %v729
      %v930 = vunpack.c.l.b16 %v730
      %v931 = vunpack.c.l.b16 %v731
      %v932 = vunpack.c.l.b16 %v732
      %v933 = vunpack.c.l.b16 %v733
      %v934 = vunpack.c.l.b16 %v734
      %v935 = vunpack.c.l.b16 %v735
      %v936 = vunpack.c.l.b16 %v736
      %v937 = vunpack.c.l.b16 %v737
      %v938 = vunpack.c.l.b16 %v738
      %v939 = vunpack.c.l.b16 %v739
      %v940 = vunpack.c.l.b16 %v740
      %v941 = vunpack.c.l.b16 %v741
      %v942 = vunpack.c.l.b16 %v742
      %v943 = vunpack.c.l.b16 %v743
      %v944 = vunpack.c.l.b16 %v744
      %v945 = vunpack.c.l.b16 %v745
      %v946 = vunpack.c.l.b16 %v746
      %v947 = vunpack.c.l.b16 %v747
      %v948 = vunpack.c.l.b16 %v748
      %v949 = vunpack.c.l.b16 %v749
      %v950 = vunpack.c.l.b16 %v750
      %v951 = vunpack.c.l.b16 %v751
      %v952 = vunpack.c.l.b16 %v752
      %v953 = vunpack.c.l.b16 %v753
      %v954 = vunpack.c.l.b16 %v754
      %v955 = vunpack.c.l.b16 %v755
      %v956 = vunpack.c.l.b16 %v756
      %v957 = vunpack.c.l.b16 %v757
      %v958 = vunpack.c.l.b16 %v758
      %v959 = vunpack.c.l.b16 %v759
      %v960 = vunpack.c.l.b16 %v760
      %v961 = vunpack.c.l.b16 %v761
      %v962 = vunpack.c.l.b16 %v762
      %v963 = vunpack.c.l.b16 %v763
      %v964 = vunpack.c.l.b16 %v764
      %v965 = vunpack.c.l.b16 %v765
      %v966 = vpack.c.b16 %v869, %v868
      %v967 = vpack.c.b16 %v871, %v870
      %v968 = vpack.c.b16 %v873, %v872
      %v969 = vpack.c.b16 %v875, %v874
      %v970 = vpack.c.b16 %v877, %v876
      %v971 = vpack.c.b16 %v879, %v878
      %v972 = vpack.c.b16 %v881, %v880
      %v973 = vpack.c.b16 %v883, %v882
      %v974 = vpack.c.b16 %v885, %v884
      %v975 = vpack.c.b16 %v887, %v886
      %v976 = vpack.c.b16 %v889, %v888
      %v977 = vpack.c.b16 %v891, %v890
      %v978 = vpack.c.b16 %v893, %v892
      %v979 = vpack.c.b16 %v895, %v894
      %v980 = vpack.c.b16 %v897, %v896
      %v981 = vpack.c.b16 %v899, %v898
      %v982 = vpack.c.b16 %v901, %v900
      %v983 = vpack.c.b16 %v903, %v902
      %v984 = vpack.c.b16 %v905, %v904
      %v985 = vpack.c.b16 %v907, %v906
      %v986 = vpack.c.b16 %v909, %v908
      %v987 = vpack.c.b16 %v911, %v910
      %v988 = vpack.c.b16 %v913, %v912
      %v989 = vpack.c.b16 %v915, %v914
      %v990 = vpack.c.b16 %v917, %v916
      %v991 = vpack.c.b16 %v919, %v918
      %v992 = vpack.c.b16 %v921, %v920
      %v993 = vpack.c.b16 %v923, %v922
      %v994 = vpack.c.b16 %v925, %v924
      %v995 = vpack.c.b16 %v927, %v926
      %v996 = vpack.c.b16 %v929, %v928
      %v997 = vpack.c.b16 %v931, %v930
      %v998 = vpack.c.b16 %v933, %v932
      %v999 = vpack.c.b16 %v935, %v934
      %v1000 = vpack.c.b16 %v937, %v936
      %v1001 = vpack.c.b16 %v939, %v938
      %v1002 = vpack.c.b16 %v941, %v940
      %v1003 = vpack.c.b16 %v943, %v942
      %v1004 = vpack.c.b16 %v945, %v944
      %v1005 = vpack.c.b16 %v947, %v946
      %v1006 = vpack.c.b16 %v949, %v948
      %v1007 = vpack.c.b16 %v951, %v950
      %v1008 = vpack.c.b16 %v953, %v952
      %v1009 = vpack.c.b16 %v955, %v954
      %v1010 = vpack.c.b16 %v957, %v956
      %v1011 = vpack.c.b16 %v959, %v958
      %v1012 = vpack.c.b16 %v961, %v960
      %v1013 = vpack.c.b16 %v963, %v962
      %v1014 = vpack.c.b16 %v965, %v964
      %vm1064 = vcmask 130048
      %v1066 = vsel %vm1064, %v562, 0
      %v1069 = vsel %vm1064, %v569, 0
      %v1072 = vsel %vm1064, %v576, 0
      %v1075 = vsel %vm1064, %v583, 0
      %v1078 = vsel %vm1064, %v590, 0
      %v1081 = vsel %vm1064, %v597, 0
      %v1084 = vsel %vm1064, %v604, 0
      %v1087 = vsel %vm1064, %v611, 0
      %v1090 = vsel %vm1064, %v618, 0
      %v1093 = vsel %vm1064, %v625, 0
      %v1096 = vsel %vm1064, %v632, 0
      %v1099 = vsel %vm1064, %v639, 0
      %v1102 = vsel %vm1064, %v646, 0
      %v1105 = vsel %vm1064, %v653, 0
      %v1108 = vsel %vm1064, %v660, 0
      %v1111 = vsel %vm1064, %v667, 0
      %1113 = vmatpush.bf16.msra.mxu0 %v973
      %1114 = vmatpush.bf16.msra.mxu0 %v972
      %1115 = vmatpush.bf16.msra.mxu0 %v971
      %1116 = vmatpush.bf16.msra.mxu0 %v970
      %1117 = vmatpush.bf16.msra.mxu0 %v969
      %1118 = vmatpush.bf16.msra.mxu0 %v968
      %1119 = vmatpush.bf16.msra.mxu0 %v967
      %1120 = vmatpush.bf16.msra.mxu0 %v966
      %1121 = vmatmul.bf16.gmra.mxu0 %v556
      %v1122 = vpop.f32.mrf.mxu0
      %v1123 = vadd.f32 %v768, %v1122
      %v1124 = vpop.f32.mrf.mxu0
      %v1125 = vadd.f32 %v768, %v1124
      %1126 = vmatmul.bf16.gmra.mxu0 %v563
      %v1127 = vpop.f32.mrf.mxu0
      %v1128 = vadd.f32 %v768, %v1127
      %v1129 = vpop.f32.mrf.mxu0
      %v1130 = vadd.f32 %v768, %v1129
      %1131 = vmatmul.bf16.gmra.mxu0 %v570
      %v1132 = vpop.f32.mrf.mxu0
      %v1133 = vadd.f32 %v768, %v1132
      %v1134 = vpop.f32.mrf.mxu0
      %v1135 = vadd.f32 %v768, %v1134
      %1136 = vmatmul.bf16.gmra.mxu0 %v577
      %v1137 = vpop.f32.mrf.mxu0
      %v1138 = vadd.f32 %v768, %v1137
      %v1139 = vpop.f32.mrf.mxu0
      %v1140 = vadd.f32 %v768, %v1139
      %1141 = vmatmul.bf16.gmra.mxu0 %v584
      %v1142 = vpop.f32.mrf.mxu0
      %v1143 = vadd.f32 %v768, %v1142
      %v1144 = vpop.f32.mrf.mxu0
      %v1145 = vadd.f32 %v768, %v1144
      %1146 = vmatmul.bf16.gmra.mxu0 %v591
      %v1147 = vpop.f32.mrf.mxu0
      %v1148 = vadd.f32 %v768, %v1147
      %v1149 = vpop.f32.mrf.mxu0
      %v1150 = vadd.f32 %v768, %v1149
      %1151 = vmatmul.bf16.gmra.mxu0 %v598
      %v1152 = vpop.f32.mrf.mxu0
      %v1153 = vadd.f32 %v768, %v1152
      %v1154 = vpop.f32.mrf.mxu0
      %v1155 = vadd.f32 %v768, %v1154
      %1156 = vmatmul.bf16.gmra.mxu0 %v605
      %v1157 = vpop.f32.mrf.mxu0
      %v1158 = vadd.f32 %v768, %v1157
      %v1159 = vpop.f32.mrf.mxu0
      %v1160 = vadd.f32 %v768, %v1159
      %1161 = vmatmul.bf16.gmra.mxu0 %v612
      %v1162 = vpop.f32.mrf.mxu0
      %v1163 = vadd.f32 %v768, %v1162
      %v1164 = vpop.f32.mrf.mxu0
      %v1165 = vadd.f32 %v768, %v1164
      %1166 = vmatmul.bf16.gmra.mxu0 %v619
      %v1167 = vpop.f32.mrf.mxu0
      %v1168 = vadd.f32 %v768, %v1167
      %v1169 = vpop.f32.mrf.mxu0
      %v1170 = vadd.f32 %v768, %v1169
      %1171 = vmatmul.bf16.gmra.mxu0 %v626
      %v1172 = vpop.f32.mrf.mxu0
      %v1173 = vadd.f32 %v768, %v1172
      %v1174 = vpop.f32.mrf.mxu0
      %v1175 = vadd.f32 %v768, %v1174
      %1176 = vmatmul.bf16.gmra.mxu0 %v633
      %v1177 = vpop.f32.mrf.mxu0
      %v1178 = vadd.f32 %v768, %v1177
      %v1179 = vpop.f32.mrf.mxu0
      %v1180 = vadd.f32 %v768, %v1179
      %1181 = vmatmul.bf16.gmra.mxu0 %v640
      %v1182 = vpop.f32.mrf.mxu0
      %v1183 = vadd.f32 %v768, %v1182
      %v1184 = vpop.f32.mrf.mxu0
      %v1185 = vadd.f32 %v768, %v1184
      %1186 = vmatmul.bf16.gmra.mxu0 %v647
      %v1187 = vpop.f32.mrf.mxu0
      %v1188 = vadd.f32 %v768, %v1187
      %v1189 = vpop.f32.mrf.mxu0
      %v1190 = vadd.f32 %v768, %v1189
      %1191 = vmatmul.bf16.gmra.mxu0 %v654
      %v1192 = vpop.f32.mrf.mxu0
      %v1193 = vadd.f32 %v768, %v1192
      %v1194 = vpop.f32.mrf.mxu0
      %v1195 = vadd.f32 %v768, %v1194
      %1196 = vmatmul.bf16.gmra.mxu0 %v661
      %v1197 = vpop.f32.mrf.mxu0
      %v1198 = vadd.f32 %v768, %v1197
      %v1199 = vpop.f32.mrf.mxu0
      %v1200 = vadd.f32 %v768, %v1199
      %1201 = vdwg.mxu0
      %1202 = vmatpush.bf16.msra.mxu0 %v981
      %1203 = vmatpush.bf16.msra.mxu0 %v980
      %1204 = vmatpush.bf16.msra.mxu0 %v979
      %1205 = vmatpush.bf16.msra.mxu0 %v978
      %1206 = vmatpush.bf16.msra.mxu0 %v977
      %1207 = vmatpush.bf16.msra.mxu0 %v976
      %1208 = vmatpush.bf16.msra.mxu0 %v975
      %1209 = vmatpush.bf16.msra.mxu0 %v974
      %1210 = vmatmul.bf16.gmra.mxu0 %v557
      %v1211 = vpop.f32.mrf.mxu0
      %v1212 = vadd.f32 %v1123, %v1211
      %v1213 = vpop.f32.mrf.mxu0
      %v1214 = vadd.f32 %v1125, %v1213
      %1215 = vmatmul.bf16.gmra.mxu0 %v564
      %v1216 = vpop.f32.mrf.mxu0
      %v1217 = vadd.f32 %v1128, %v1216
      %v1218 = vpop.f32.mrf.mxu0
      %v1219 = vadd.f32 %v1130, %v1218
      %1220 = vmatmul.bf16.gmra.mxu0 %v571
      %v1221 = vpop.f32.mrf.mxu0
      %v1222 = vadd.f32 %v1133, %v1221
      %v1223 = vpop.f32.mrf.mxu0
      %v1224 = vadd.f32 %v1135, %v1223
      %1225 = vmatmul.bf16.gmra.mxu0 %v578
      %v1226 = vpop.f32.mrf.mxu0
      %v1227 = vadd.f32 %v1138, %v1226
      %v1228 = vpop.f32.mrf.mxu0
      %v1229 = vadd.f32 %v1140, %v1228
      %1230 = vmatmul.bf16.gmra.mxu0 %v585
      %v1231 = vpop.f32.mrf.mxu0
      %v1232 = vadd.f32 %v1143, %v1231
      %v1233 = vpop.f32.mrf.mxu0
      %v1234 = vadd.f32 %v1145, %v1233
      %1235 = vmatmul.bf16.gmra.mxu0 %v592
      %v1236 = vpop.f32.mrf.mxu0
      %v1237 = vadd.f32 %v1148, %v1236
      %v1238 = vpop.f32.mrf.mxu0
      %v1239 = vadd.f32 %v1150, %v1238
      %1240 = vmatmul.bf16.gmra.mxu0 %v599
      %v1241 = vpop.f32.mrf.mxu0
      %v1242 = vadd.f32 %v1153, %v1241
      %v1243 = vpop.f32.mrf.mxu0
      %v1244 = vadd.f32 %v1155, %v1243
      %1245 = vmatmul.bf16.gmra.mxu0 %v606
      %v1246 = vpop.f32.mrf.mxu0
      %v1247 = vadd.f32 %v1158, %v1246
      %v1248 = vpop.f32.mrf.mxu0
      %v1249 = vadd.f32 %v1160, %v1248
      %1250 = vmatmul.bf16.gmra.mxu0 %v613
      %v1251 = vpop.f32.mrf.mxu0
      %v1252 = vadd.f32 %v1163, %v1251
      %v1253 = vpop.f32.mrf.mxu0
      %v1254 = vadd.f32 %v1165, %v1253
      %1255 = vmatmul.bf16.gmra.mxu0 %v620
      %v1256 = vpop.f32.mrf.mxu0
      %v1257 = vadd.f32 %v1168, %v1256
      %v1258 = vpop.f32.mrf.mxu0
      %v1259 = vadd.f32 %v1170, %v1258
      %1260 = vmatmul.bf16.gmra.mxu0 %v627
      %v1261 = vpop.f32.mrf.mxu0
      %v1262 = vadd.f32 %v1173, %v1261
      %v1263 = vpop.f32.mrf.mxu0
      %v1264 = vadd.f32 %v1175, %v1263
      %1265 = vmatmul.bf16.gmra.mxu0 %v634
      %v1266 = vpop.f32.mrf.mxu0
      %v1267 = vadd.f32 %v1178, %v1266
      %v1268 = vpop.f32.mrf.mxu0
      %v1269 = vadd.f32 %v1180, %v1268
      %1270 = vmatmul.bf16.gmra.mxu0 %v641
      %v1271 = vpop.f32.mrf.mxu0
      %v1272 = vadd.f32 %v1183, %v1271
      %v1273 = vpop.f32.mrf.mxu0
      %v1274 = vadd.f32 %v1185, %v1273
      %1275 = vmatmul.bf16.gmra.mxu0 %v648
      %v1276 = vpop.f32.mrf.mxu0
      %v1277 = vadd.f32 %v1188, %v1276
      %v1278 = vpop.f32.mrf.mxu0
      %v1279 = vadd.f32 %v1190, %v1278
      %1280 = vmatmul.bf16.gmra.mxu0 %v655
      %v1281 = vpop.f32.mrf.mxu0
      %v1282 = vadd.f32 %v1193, %v1281
      %v1283 = vpop.f32.mrf.mxu0
      %v1284 = vadd.f32 %v1195, %v1283
      %1285 = vmatmul.bf16.gmra.mxu0 %v662
      %v1286 = vpop.f32.mrf.mxu0
      %v1287 = vadd.f32 %v1198, %v1286
      %v1288 = vpop.f32.mrf.mxu0
      %v1289 = vadd.f32 %v1200, %v1288
      %1290 = vdwg.mxu0
      %1291 = vmatpush.bf16.msra.mxu0 %v989
      %1292 = vmatpush.bf16.msra.mxu0 %v988
      %1293 = vmatpush.bf16.msra.mxu0 %v987
      %1294 = vmatpush.bf16.msra.mxu0 %v986
      %1295 = vmatpush.bf16.msra.mxu0 %v985
      %1296 = vmatpush.bf16.msra.mxu0 %v984
      %1297 = vmatpush.bf16.msra.mxu0 %v983
      %1298 = vmatpush.bf16.msra.mxu0 %v982
      %1299 = vmatmul.bf16.gmra.mxu0 %v558
      %v1300 = vpop.f32.mrf.mxu0
      %v1301 = vadd.f32 %v1212, %v1300
      %v1302 = vpop.f32.mrf.mxu0
      %v1303 = vadd.f32 %v1214, %v1302
      %1304 = vmatmul.bf16.gmra.mxu0 %v565
      %v1305 = vpop.f32.mrf.mxu0
      %v1306 = vadd.f32 %v1217, %v1305
      %v1307 = vpop.f32.mrf.mxu0
      %v1308 = vadd.f32 %v1219, %v1307
      %1309 = vmatmul.bf16.gmra.mxu0 %v572
      %v1310 = vpop.f32.mrf.mxu0
      %v1311 = vadd.f32 %v1222, %v1310
      %v1312 = vpop.f32.mrf.mxu0
      %v1313 = vadd.f32 %v1224, %v1312
      %1314 = vmatmul.bf16.gmra.mxu0 %v579
      %v1315 = vpop.f32.mrf.mxu0
      %v1316 = vadd.f32 %v1227, %v1315
      %v1317 = vpop.f32.mrf.mxu0
      %v1318 = vadd.f32 %v1229, %v1317
      %1319 = vmatmul.bf16.gmra.mxu0 %v586
      %v1320 = vpop.f32.mrf.mxu0
      %v1321 = vadd.f32 %v1232, %v1320
      %v1322 = vpop.f32.mrf.mxu0
      %v1323 = vadd.f32 %v1234, %v1322
      %1324 = vmatmul.bf16.gmra.mxu0 %v593
      %v1325 = vpop.f32.mrf.mxu0
      %v1326 = vadd.f32 %v1237, %v1325
      %v1327 = vpop.f32.mrf.mxu0
      %v1328 = vadd.f32 %v1239, %v1327
      %1329 = vmatmul.bf16.gmra.mxu0 %v600
      %v1330 = vpop.f32.mrf.mxu0
      %v1331 = vadd.f32 %v1242, %v1330
      %v1332 = vpop.f32.mrf.mxu0
      %v1333 = vadd.f32 %v1244, %v1332
      %1334 = vmatmul.bf16.gmra.mxu0 %v607
      %v1335 = vpop.f32.mrf.mxu0
      %v1336 = vadd.f32 %v1247, %v1335
      %v1337 = vpop.f32.mrf.mxu0
      %v1338 = vadd.f32 %v1249, %v1337
      %1339 = vmatmul.bf16.gmra.mxu0 %v614
      %v1340 = vpop.f32.mrf.mxu0
      %v1341 = vadd.f32 %v1252, %v1340
      %v1342 = vpop.f32.mrf.mxu0
      %v1343 = vadd.f32 %v1254, %v1342
      %1344 = vmatmul.bf16.gmra.mxu0 %v621
      %v1345 = vpop.f32.mrf.mxu0
      %v1346 = vadd.f32 %v1257, %v1345
      %v1347 = vpop.f32.mrf.mxu0
      %v1348 = vadd.f32 %v1259, %v1347
      %1349 = vmatmul.bf16.gmra.mxu0 %v628
      %v1350 = vpop.f32.mrf.mxu0
      %v1351 = vadd.f32 %v1262, %v1350
      %v1352 = vpop.f32.mrf.mxu0
      %v1353 = vadd.f32 %v1264, %v1352
      %1354 = vmatmul.bf16.gmra.mxu0 %v635
      %v1355 = vpop.f32.mrf.mxu0
      %v1356 = vadd.f32 %v1267, %v1355
      %v1357 = vpop.f32.mrf.mxu0
      %v1358 = vadd.f32 %v1269, %v1357
      %1359 = vmatmul.bf16.gmra.mxu0 %v642
      %v1360 = vpop.f32.mrf.mxu0
      %v1361 = vadd.f32 %v1272, %v1360
      %v1362 = vpop.f32.mrf.mxu0
      %v1363 = vadd.f32 %v1274, %v1362
      %1364 = vmatmul.bf16.gmra.mxu0 %v649
      %v1365 = vpop.f32.mrf.mxu0
      %v1366 = vadd.f32 %v1277, %v1365
      %v1367 = vpop.f32.mrf.mxu0
      %v1368 = vadd.f32 %v1279, %v1367
      %1369 = vmatmul.bf16.gmra.mxu0 %v656
      %v1370 = vpop.f32.mrf.mxu0
      %v1371 = vadd.f32 %v1282, %v1370
      %v1372 = vpop.f32.mrf.mxu0
      %v1373 = vadd.f32 %v1284, %v1372
      %1374 = vmatmul.bf16.gmra.mxu0 %v663
      %v1375 = vpop.f32.mrf.mxu0
      %v1376 = vadd.f32 %v1287, %v1375
      %v1377 = vpop.f32.mrf.mxu0
      %v1378 = vadd.f32 %v1289, %v1377
      %1379 = vdwg.mxu0
      %1380 = vmatpush.bf16.msra.mxu0 %v997
      %1381 = vmatpush.bf16.msra.mxu0 %v996
      %1382 = vmatpush.bf16.msra.mxu0 %v995
      %1383 = vmatpush.bf16.msra.mxu0 %v994
      %1384 = vmatpush.bf16.msra.mxu0 %v993
      %1385 = vmatpush.bf16.msra.mxu0 %v992
      %1386 = vmatpush.bf16.msra.mxu0 %v991
      %1387 = vmatpush.bf16.msra.mxu0 %v990
      %1388 = vmatmul.bf16.gmra.mxu0 %v559
      %v1389 = vpop.f32.mrf.mxu0
      %v1390 = vadd.f32 %v1301, %v1389
      %v1391 = vpop.f32.mrf.mxu0
      %v1392 = vadd.f32 %v1303, %v1391
      %1393 = vmatmul.bf16.gmra.mxu0 %v566
      %v1394 = vpop.f32.mrf.mxu0
      %v1395 = vadd.f32 %v1306, %v1394
      %v1396 = vpop.f32.mrf.mxu0
      %v1397 = vadd.f32 %v1308, %v1396
      %1398 = vmatmul.bf16.gmra.mxu0 %v573
      %v1399 = vpop.f32.mrf.mxu0
      %v1400 = vadd.f32 %v1311, %v1399
      %v1401 = vpop.f32.mrf.mxu0
      %v1402 = vadd.f32 %v1313, %v1401
      %1403 = vmatmul.bf16.gmra.mxu0 %v580
      %v1404 = vpop.f32.mrf.mxu0
      %v1405 = vadd.f32 %v1316, %v1404
      %v1406 = vpop.f32.mrf.mxu0
      %v1407 = vadd.f32 %v1318, %v1406
      %1408 = vmatmul.bf16.gmra.mxu0 %v587
      %v1409 = vpop.f32.mrf.mxu0
      %v1410 = vadd.f32 %v1321, %v1409
      %v1411 = vpop.f32.mrf.mxu0
      %v1412 = vadd.f32 %v1323, %v1411
      %1413 = vmatmul.bf16.gmra.mxu0 %v594
      %v1414 = vpop.f32.mrf.mxu0
      %v1415 = vadd.f32 %v1326, %v1414
      %v1416 = vpop.f32.mrf.mxu0
      %v1417 = vadd.f32 %v1328, %v1416
      %1418 = vmatmul.bf16.gmra.mxu0 %v601
      %v1419 = vpop.f32.mrf.mxu0
      %v1420 = vadd.f32 %v1331, %v1419
      %v1421 = vpop.f32.mrf.mxu0
      %v1422 = vadd.f32 %v1333, %v1421
      %1423 = vmatmul.bf16.gmra.mxu0 %v608
      %v1424 = vpop.f32.mrf.mxu0
      %v1425 = vadd.f32 %v1336, %v1424
      %v1426 = vpop.f32.mrf.mxu0
      %v1427 = vadd.f32 %v1338, %v1426
      %1428 = vmatmul.bf16.gmra.mxu0 %v615
      %v1429 = vpop.f32.mrf.mxu0
      %v1430 = vadd.f32 %v1341, %v1429
      %v1431 = vpop.f32.mrf.mxu0
      %v1432 = vadd.f32 %v1343, %v1431
      %1433 = vmatmul.bf16.gmra.mxu0 %v622
      %v1434 = vpop.f32.mrf.mxu0
      %v1435 = vadd.f32 %v1346, %v1434
      %v1436 = vpop.f32.mrf.mxu0
      %v1437 = vadd.f32 %v1348, %v1436
      %1438 = vmatmul.bf16.gmra.mxu0 %v629
      %v1439 = vpop.f32.mrf.mxu0
      %v1440 = vadd.f32 %v1351, %v1439
      %v1441 = vpop.f32.mrf.mxu0
      %v1442 = vadd.f32 %v1353, %v1441
      %1443 = vmatmul.bf16.gmra.mxu0 %v636
      %v1444 = vpop.f32.mrf.mxu0
      %v1445 = vadd.f32 %v1356, %v1444
      %v1446 = vpop.f32.mrf.mxu0
      %v1447 = vadd.f32 %v1358, %v1446
      %1448 = vmatmul.bf16.gmra.mxu0 %v643
      %v1449 = vpop.f32.mrf.mxu0
      %v1450 = vadd.f32 %v1361, %v1449
      %v1451 = vpop.f32.mrf.mxu0
      %v1452 = vadd.f32 %v1363, %v1451
      %1453 = vmatmul.bf16.gmra.mxu0 %v650
      %v1454 = vpop.f32.mrf.mxu0
      %v1455 = vadd.f32 %v1366, %v1454
      %v1456 = vpop.f32.mrf.mxu0
      %v1457 = vadd.f32 %v1368, %v1456
      %1458 = vmatmul.bf16.gmra.mxu0 %v657
      %v1459 = vpop.f32.mrf.mxu0
      %v1460 = vadd.f32 %v1371, %v1459
      %v1461 = vpop.f32.mrf.mxu0
      %v1462 = vadd.f32 %v1373, %v1461
      %1463 = vmatmul.bf16.gmra.mxu0 %v664
      %v1464 = vpop.f32.mrf.mxu0
      %v1465 = vadd.f32 %v1376, %v1464
      %v1466 = vpop.f32.mrf.mxu0
      %v1467 = vadd.f32 %v1378, %v1466
      %1468 = vdwg.mxu0
      %1469 = vmatpush.bf16.msra.mxu0 %v1005
      %1470 = vmatpush.bf16.msra.mxu0 %v1004
      %1471 = vmatpush.bf16.msra.mxu0 %v1003
      %1472 = vmatpush.bf16.msra.mxu0 %v1002
      %1473 = vmatpush.bf16.msra.mxu0 %v1001
      %1474 = vmatpush.bf16.msra.mxu0 %v1000
      %1475 = vmatpush.bf16.msra.mxu0 %v999
      %1476 = vmatpush.bf16.msra.mxu0 %v998
      %1477 = vmatmul.bf16.gmra.mxu0 %v560
      %v1478 = vpop.f32.mrf.mxu0
      %v1479 = vadd.f32 %v1390, %v1478
      %v1480 = vpop.f32.mrf.mxu0
      %v1481 = vadd.f32 %v1392, %v1480
      %1482 = vmatmul.bf16.gmra.mxu0 %v567
      %v1483 = vpop.f32.mrf.mxu0
      %v1484 = vadd.f32 %v1395, %v1483
      %v1485 = vpop.f32.mrf.mxu0
      %v1486 = vadd.f32 %v1397, %v1485
      %1487 = vmatmul.bf16.gmra.mxu0 %v574
      %v1488 = vpop.f32.mrf.mxu0
      %v1489 = vadd.f32 %v1400, %v1488
      %v1490 = vpop.f32.mrf.mxu0
      %v1491 = vadd.f32 %v1402, %v1490
      %1492 = vmatmul.bf16.gmra.mxu0 %v581
      %v1493 = vpop.f32.mrf.mxu0
      %v1494 = vadd.f32 %v1405, %v1493
      %v1495 = vpop.f32.mrf.mxu0
      %v1496 = vadd.f32 %v1407, %v1495
      %1497 = vmatmul.bf16.gmra.mxu0 %v588
      %v1498 = vpop.f32.mrf.mxu0
      %v1499 = vadd.f32 %v1410, %v1498
      %v1500 = vpop.f32.mrf.mxu0
      %v1501 = vadd.f32 %v1412, %v1500
      %1502 = vmatmul.bf16.gmra.mxu0 %v595
      %v1503 = vpop.f32.mrf.mxu0
      %v1504 = vadd.f32 %v1415, %v1503
      %v1505 = vpop.f32.mrf.mxu0
      %v1506 = vadd.f32 %v1417, %v1505
      %1507 = vmatmul.bf16.gmra.mxu0 %v602
      %v1508 = vpop.f32.mrf.mxu0
      %v1509 = vadd.f32 %v1420, %v1508
      %v1510 = vpop.f32.mrf.mxu0
      %v1511 = vadd.f32 %v1422, %v1510
      %1512 = vmatmul.bf16.gmra.mxu0 %v609
      %v1513 = vpop.f32.mrf.mxu0
      %v1514 = vadd.f32 %v1425, %v1513
      %v1515 = vpop.f32.mrf.mxu0
      %v1516 = vadd.f32 %v1427, %v1515
      %1517 = vmatmul.bf16.gmra.mxu0 %v616
      %v1518 = vpop.f32.mrf.mxu0
      %v1519 = vadd.f32 %v1430, %v1518
      %v1520 = vpop.f32.mrf.mxu0
      %v1521 = vadd.f32 %v1432, %v1520
      %1522 = vmatmul.bf16.gmra.mxu0 %v623
      %v1523 = vpop.f32.mrf.mxu0
      %v1524 = vadd.f32 %v1435, %v1523
      %v1525 = vpop.f32.mrf.mxu0
      %v1526 = vadd.f32 %v1437, %v1525
      %1527 = vmatmul.bf16.gmra.mxu0 %v630
      %v1528 = vpop.f32.mrf.mxu0
      %v1529 = vadd.f32 %v1440, %v1528
      %v1530 = vpop.f32.mrf.mxu0
      %v1531 = vadd.f32 %v1442, %v1530
      %1532 = vmatmul.bf16.gmra.mxu0 %v637
      %v1533 = vpop.f32.mrf.mxu0
      %v1534 = vadd.f32 %v1445, %v1533
      %v1535 = vpop.f32.mrf.mxu0
      %v1536 = vadd.f32 %v1447, %v1535
      %1537 = vmatmul.bf16.gmra.mxu0 %v644
      %v1538 = vpop.f32.mrf.mxu0
      %v1539 = vadd.f32 %v1450, %v1538
      %v1540 = vpop.f32.mrf.mxu0
      %v1541 = vadd.f32 %v1452, %v1540
      %1542 = vmatmul.bf16.gmra.mxu0 %v651
      %v1543 = vpop.f32.mrf.mxu0
      %v1544 = vadd.f32 %v1455, %v1543
      %v1545 = vpop.f32.mrf.mxu0
      %v1546 = vadd.f32 %v1457, %v1545
      %1547 = vmatmul.bf16.gmra.mxu0 %v658
      %v1548 = vpop.f32.mrf.mxu0
      %v1549 = vadd.f32 %v1460, %v1548
      %v1550 = vpop.f32.mrf.mxu0
      %v1551 = vadd.f32 %v1462, %v1550
      %1552 = vmatmul.bf16.gmra.mxu0 %v665
      %v1553 = vpop.f32.mrf.mxu0
      %v1554 = vadd.f32 %v1465, %v1553
      %v1555 = vpop.f32.mrf.mxu0
      %v1556 = vadd.f32 %v1467, %v1555
      %1557 = vdwg.mxu0
      %1558 = vmatpush.bf16.msra.mxu0 %v1013
      %1559 = vmatpush.bf16.msra.mxu0 %v1012
      %1560 = vmatpush.bf16.msra.mxu0 %v1011
      %1561 = vmatpush.bf16.msra.mxu0 %v1010
      %1562 = vmatpush.bf16.msra.mxu0 %v1009
      %1563 = vmatpush.bf16.msra.mxu0 %v1008
      %1564 = vmatpush.bf16.msra.mxu0 %v1007
      %1565 = vmatpush.bf16.msra.mxu0 %v1006
      %1566 = vmatmul.bf16.gmra.mxu0 %v561
      %v1567 = vpop.f32.mrf.mxu0
      %v1568 = vadd.f32 %v1479, %v1567
      %v1569 = vpop.f32.mrf.mxu0
      %v1570 = vadd.f32 %v1481, %v1569
      %1571 = vmatmul.bf16.gmra.mxu0 %v568
      %v1572 = vpop.f32.mrf.mxu0
      %v1573 = vadd.f32 %v1484, %v1572
      %v1574 = vpop.f32.mrf.mxu0
      %v1575 = vadd.f32 %v1486, %v1574
      %1576 = vmatmul.bf16.gmra.mxu0 %v575
      %v1577 = vpop.f32.mrf.mxu0
      %v1578 = vadd.f32 %v1489, %v1577
      %v1579 = vpop.f32.mrf.mxu0
      %v1580 = vadd.f32 %v1491, %v1579
      %1581 = vmatmul.bf16.gmra.mxu0 %v582
      %v1582 = vpop.f32.mrf.mxu0
      %v1583 = vadd.f32 %v1494, %v1582
      %v1584 = vpop.f32.mrf.mxu0
      %v1585 = vadd.f32 %v1496, %v1584
      %1586 = vmatmul.bf16.gmra.mxu0 %v589
      %v1587 = vpop.f32.mrf.mxu0
      %v1588 = vadd.f32 %v1499, %v1587
      %v1589 = vpop.f32.mrf.mxu0
      %v1590 = vadd.f32 %v1501, %v1589
      %1591 = vmatmul.bf16.gmra.mxu0 %v596
      %v1592 = vpop.f32.mrf.mxu0
      %v1593 = vadd.f32 %v1504, %v1592
      %v1594 = vpop.f32.mrf.mxu0
      %v1595 = vadd.f32 %v1506, %v1594
      %1596 = vmatmul.bf16.gmra.mxu0 %v603
      %v1597 = vpop.f32.mrf.mxu0
      %v1598 = vadd.f32 %v1509, %v1597
      %v1599 = vpop.f32.mrf.mxu0
      %v1600 = vadd.f32 %v1511, %v1599
      %1601 = vmatmul.bf16.gmra.mxu0 %v610
      %v1602 = vpop.f32.mrf.mxu0
      %v1603 = vadd.f32 %v1514, %v1602
      %v1604 = vpop.f32.mrf.mxu0
      %v1605 = vadd.f32 %v1516, %v1604
      %1606 = vmatmul.bf16.gmra.mxu0 %v617
      %v1607 = vpop.f32.mrf.mxu0
      %v1608 = vadd.f32 %v1519, %v1607
      %v1609 = vpop.f32.mrf.mxu0
      %v1610 = vadd.f32 %v1521, %v1609
      %1611 = vmatmul.bf16.gmra.mxu0 %v624
      %v1612 = vpop.f32.mrf.mxu0
      %v1613 = vadd.f32 %v1524, %v1612
      %v1614 = vpop.f32.mrf.mxu0
      %v1615 = vadd.f32 %v1526, %v1614
      %1616 = vmatmul.bf16.gmra.mxu0 %v631
      %v1617 = vpop.f32.mrf.mxu0
      %v1618 = vadd.f32 %v1529, %v1617
      %v1619 = vpop.f32.mrf.mxu0
      %v1620 = vadd.f32 %v1531, %v1619
      %1621 = vmatmul.bf16.gmra.mxu0 %v638
      %v1622 = vpop.f32.mrf.mxu0
      %v1623 = vadd.f32 %v1534, %v1622
      %v1624 = vpop.f32.mrf.mxu0
      %v1625 = vadd.f32 %v1536, %v1624
      %1626 = vmatmul.bf16.gmra.mxu0 %v645
      %v1627 = vpop.f32.mrf.mxu0
      %v1628 = vadd.f32 %v1539, %v1627
      %v1629 = vpop.f32.mrf.mxu0
      %v1630 = vadd.f32 %v1541, %v1629
      %1631 = vmatmul.bf16.gmra.mxu0 %v652
      %v1632 = vpop.f32.mrf.mxu0
      %v1633 = vadd.f32 %v1544, %v1632
      %v1634 = vpop.f32.mrf.mxu0
      %v1635 = vadd.f32 %v1546, %v1634
      %1636 = vmatmul.bf16.gmra.mxu0 %v659
      %v1637 = vpop.f32.mrf.mxu0
      %v1638 = vadd.f32 %v1549, %v1637
      %v1639 = vpop.f32.mrf.mxu0
      %v1640 = vadd.f32 %v1551, %v1639
      %1641 = vmatmul.bf16.gmra.mxu0 %v666
      %v1642 = vpop.f32.mrf.mxu0
      %v1643 = vadd.f32 %v1554, %v1642
      %v1644 = vpop.f32.mrf.mxu0
      %v1645 = vadd.f32 %v1556, %v1644
      %1646 = vdwg.mxu0
      %1647 = vmatpush.bf16.msra.mxu0 0
      %1648 = vmatpush.bf16.msra.mxu0 0
      %1649 = vmatpush.bf16.msra.mxu0 0
      %1650 = vmatpush.bf16.msra.mxu0 0
      %1651 = vmatpush.bf16.msra.mxu0 0
      %1652 = vmatpush.bf16.msra.mxu0 0
      %1653 = vmatpush.bf16.msra.mxu0 0
      %1654 = vmatpush.bf16.msra.mxu0 %v1014
      %1655 = vmatmul.bf16.gmra.mxu0 %v1066
      %v1656 = vpop.f32.mrf.mxu0
      %v1657 = vadd.f32 %v1568, %v1656
      %v1658 = vpop.f32.mrf.mxu0
      %v1659 = vadd.f32 %v1570, %v1658
      %1660 = vmatmul.bf16.gmra.mxu0 %v1069
      %v1661 = vpop.f32.mrf.mxu0
      %v1662 = vadd.f32 %v1573, %v1661
      %v1663 = vpop.f32.mrf.mxu0
      %v1664 = vadd.f32 %v1575, %v1663
      %1665 = vmatmul.bf16.gmra.mxu0 %v1072
      %v1666 = vpop.f32.mrf.mxu0
      %v1667 = vadd.f32 %v1578, %v1666
      %v1668 = vpop.f32.mrf.mxu0
      %v1669 = vadd.f32 %v1580, %v1668
      %1670 = vmatmul.bf16.gmra.mxu0 %v1075
      %v1671 = vpop.f32.mrf.mxu0
      %v1672 = vadd.f32 %v1583, %v1671
      %v1673 = vpop.f32.mrf.mxu0
      %v1674 = vadd.f32 %v1585, %v1673
      %1675 = vmatmul.bf16.gmra.mxu0 %v1078
      %v1676 = vpop.f32.mrf.mxu0
      %v1677 = vadd.f32 %v1588, %v1676
      %v1678 = vpop.f32.mrf.mxu0
      %v1679 = vadd.f32 %v1590, %v1678
      %1680 = vmatmul.bf16.gmra.mxu0 %v1081
      %v1681 = vpop.f32.mrf.mxu0
      %v1682 = vadd.f32 %v1593, %v1681
      %v1683 = vpop.f32.mrf.mxu0
      %v1684 = vadd.f32 %v1595, %v1683
      %1685 = vmatmul.bf16.gmra.mxu0 %v1084
      %v1686 = vpop.f32.mrf.mxu0
      %v1687 = vadd.f32 %v1598, %v1686
      %v1688 = vpop.f32.mrf.mxu0
      %v1689 = vadd.f32 %v1600, %v1688
      %1690 = vmatmul.bf16.gmra.mxu0 %v1087
      %v1691 = vpop.f32.mrf.mxu0
      %v1692 = vadd.f32 %v1603, %v1691
      %v1693 = vpop.f32.mrf.mxu0
      %v1694 = vadd.f32 %v1605, %v1693
      %1695 = vmatmul.bf16.gmra.mxu0 %v1090
      %v1696 = vpop.f32.mrf.mxu0
      %v1697 = vadd.f32 %v1608, %v1696
      %v1698 = vpop.f32.mrf.mxu0
      %v1699 = vadd.f32 %v1610, %v1698
      %1700 = vmatmul.bf16.gmra.mxu0 %v1093
      %v1701 = vpop.f32.mrf.mxu0
      %v1702 = vadd.f32 %v1613, %v1701
      %v1703 = vpop.f32.mrf.mxu0
      %v1704 = vadd.f32 %v1615, %v1703
      %1705 = vmatmul.bf16.gmra.mxu0 %v1096
      %v1706 = vpop.f32.mrf.mxu0
      %v1707 = vadd.f32 %v1618, %v1706
      %v1708 = vpop.f32.mrf.mxu0
      %v1709 = vadd.f32 %v1620, %v1708
      %1710 = vmatmul.bf16.gmra.mxu0 %v1099
      %v1711 = vpop.f32.mrf.mxu0
      %v1712 = vadd.f32 %v1623, %v1711
      %v1713 = vpop.f32.mrf.mxu0
      %v1714 = vadd.f32 %v1625, %v1713
      %1715 = vmatmul.bf16.gmra.mxu0 %v1102
      %v1716 = vpop.f32.mrf.mxu0
      %v1717 = vadd.f32 %v1628, %v1716
      %v1718 = vpop.f32.mrf.mxu0
      %v1719 = vadd.f32 %v1630, %v1718
      %1720 = vmatmul.bf16.gmra.mxu0 %v1105
      %v1721 = vpop.f32.mrf.mxu0
      %v1722 = vadd.f32 %v1633, %v1721
      %v1723 = vpop.f32.mrf.mxu0
      %v1724 = vadd.f32 %v1635, %v1723
      %1725 = vmatmul.bf16.gmra.mxu0 %v1108
      %v1726 = vpop.f32.mrf.mxu0
      %v1727 = vadd.f32 %v1638, %v1726
      %v1728 = vpop.f32.mrf.mxu0
      %v1729 = vadd.f32 %v1640, %v1728
      %1730 = vmatmul.bf16.gmra.mxu0 %v1111
      %v1731 = vpop.f32.mrf.mxu0
      %v1732 = vadd.f32 %v1643, %v1731
      %v1733 = vpop.f32.mrf.mxu0
      %v1734 = vadd.f32 %v1645, %v1733
      %1735 = vdwg.mxu0
      %v1736 = vxor.u32 %v1657, 2147483648
      %v1737 = vxor.u32 %v1659, 2147483648
      %v1738 = vxor.u32 %v1662, 2147483648
      %v1739 = vxor.u32 %v1664, 2147483648
      %v1740 = vxor.u32 %v1667, 2147483648
      %v1741 = vxor.u32 %v1669, 2147483648
      %v1742 = vxor.u32 %v1672, 2147483648
      %v1743 = vxor.u32 %v1674, 2147483648
      %v1744 = vxor.u32 %v1677, 2147483648
      %v1745 = vxor.u32 %v1679, 2147483648
      %v1746 = vxor.u32 %v1682, 2147483648
      %v1747 = vxor.u32 %v1684, 2147483648
      %v1748 = vxor.u32 %v1687, 2147483648
      %v1749 = vxor.u32 %v1689, 2147483648
      %v1750 = vxor.u32 %v1692, 2147483648
      %v1751 = vxor.u32 %v1694, 2147483648
      %v1752 = vxor.u32 %v1697, 2147483648
      %v1753 = vxor.u32 %v1699, 2147483648
      %v1754 = vxor.u32 %v1702, 2147483648
      %v1755 = vxor.u32 %v1704, 2147483648
      %v1756 = vxor.u32 %v1707, 2147483648
      %v1757 = vxor.u32 %v1709, 2147483648
      %v1758 = vxor.u32 %v1712, 2147483648
      %v1759 = vxor.u32 %v1714, 2147483648
      %v1760 = vxor.u32 %v1717, 2147483648
      %v1761 = vxor.u32 %v1719, 2147483648
      %v1762 = vxor.u32 %v1722, 2147483648
      %v1763 = vxor.u32 %v1724, 2147483648
      %v1764 = vxor.u32 %v1727, 2147483648
      %v1765 = vxor.u32 %v1729, 2147483648
      %v1766 = vxor.u32 %v1732, 2147483648
      %v1767 = vxor.u32 %v1734, 2147483648
      %v1768 = vmul.f32 %v1736, 1.442695
      %v1769 = vpow.pop %v1768
      %v1770 = vmul.f32 %v1737, 1.442695
      %v1771 = vpow.pop %v1770
      %v1772 = vmul.f32 %v1738, 1.442695
      %v1773 = vpow.pop %v1772
      %v1774 = vmul.f32 %v1739, 1.442695
      %v1775 = vpow.pop %v1774
      %v1776 = vmul.f32 %v1740, 1.442695
      %v1777 = vpow.pop %v1776
      %v1778 = vmul.f32 %v1741, 1.442695
      %v1779 = vpow.pop %v1778
      %v1780 = vmul.f32 %v1742, 1.442695
      %v1781 = vpow.pop %v1780
      %v1782 = vmul.f32 %v1743, 1.442695
      %v1783 = vpow.pop %v1782
      %v1784 = vmul.f32 %v1744, 1.442695
      %v1785 = vpow.pop %v1784
      %v1786 = vmul.f32 %v1745, 1.442695
      %v1787 = vpow.pop %v1786
      %v1788 = vmul.f32 %v1746, 1.442695
      %v1789 = vpow.pop %v1788
      %v1790 = vmul.f32 %v1747, 1.442695
      %v1791 = vpow.pop %v1790
      %v1792 = vmul.f32 %v1748, 1.442695
      %v1793 = vpow.pop %v1792
      %v1794 = vmul.f32 %v1749, 1.442695
      %v1795 = vpow.pop %v1794
      %v1796 = vmul.f32 %v1750, 1.442695
      %v1797 = vpow.pop %v1796
      %v1798 = vmul.f32 %v1751, 1.442695
      %v1799 = vpow.pop %v1798
      %v1800 = vmul.f32 %v1752, 1.442695
      %v1801 = vpow.pop %v1800
      %v1802 = vmul.f32 %v1753, 1.442695
      %v1803 = vpow.pop %v1802
      %v1804 = vmul.f32 %v1754, 1.442695
      %v1805 = vpow.pop %v1804
      %v1806 = vmul.f32 %v1755, 1.442695
      %v1807 = vpow.pop %v1806
      %v1808 = vmul.f32 %v1756, 1.442695
      %v1809 = vpow.pop %v1808
      %v1810 = vmul.f32 %v1757, 1.442695
      %v1811 = vpow.pop %v1810
      %v1812 = vmul.f32 %v1758, 1.442695
      %v1813 = vpow.pop %v1812
      %v1814 = vmul.f32 %v1759, 1.442695
      %v1815 = vpow.pop %v1814
      %v1816 = vmul.f32 %v1760, 1.442695
      %v1817 = vpow.pop %v1816
      %v1818 = vmul.f32 %v1761, 1.442695
      %v1819 = vpow.pop %v1818
      %v1820 = vmul.f32 %v1762, 1.442695
      %v1821 = vpow.pop %v1820
      %v1822 = vmul.f32 %v1763, 1.442695
      %v1823 = vpow.pop %v1822
      %v1824 = vmul.f32 %v1764, 1.442695
      %v1825 = vpow.pop %v1824
      %v1826 = vmul.f32 %v1765, 1.442695
      %v1827 = vpow.pop %v1826
      %v1828 = vmul.f32 %v1766, 1.442695
      %v1829 = vpow.pop %v1828
      %v1830 = vmul.f32 %v1767, 1.442695
      %v1831 = vpow.pop %v1830
      %v1832 = vadd.f32 %v1769, 1.0
      %v1833 = vadd.f32 %v1771, 1.0
      %v1834 = vadd.f32 %v1773, 1.0
      %v1835 = vadd.f32 %v1775, 1.0
      %v1836 = vadd.f32 %v1777, 1.0
      %v1837 = vadd.f32 %v1779, 1.0
      %v1838 = vadd.f32 %v1781, 1.0
      %v1839 = vadd.f32 %v1783, 1.0
      %v1840 = vadd.f32 %v1785, 1.0
      %v1841 = vadd.f32 %v1787, 1.0
      %v1842 = vadd.f32 %v1789, 1.0
      %v1843 = vadd.f32 %v1791, 1.0
      %v1844 = vadd.f32 %v1793, 1.0
      %v1845 = vadd.f32 %v1795, 1.0
      %v1846 = vadd.f32 %v1797, 1.0
      %v1847 = vadd.f32 %v1799, 1.0
      %v1848 = vadd.f32 %v1801, 1.0
      %v1849 = vadd.f32 %v1803, 1.0
      %v1850 = vadd.f32 %v1805, 1.0
      %v1851 = vadd.f32 %v1807, 1.0
      %v1852 = vadd.f32 %v1809, 1.0
      %v1853 = vadd.f32 %v1811, 1.0
      %v1854 = vadd.f32 %v1813, 1.0
      %v1855 = vadd.f32 %v1815, 1.0
      %v1856 = vadd.f32 %v1817, 1.0
      %v1857 = vadd.f32 %v1819, 1.0
      %v1858 = vadd.f32 %v1821, 1.0
      %v1859 = vadd.f32 %v1823, 1.0
      %v1860 = vadd.f32 %v1825, 1.0
      %v1861 = vadd.f32 %v1827, 1.0
      %v1862 = vadd.f32 %v1829, 1.0
      %v1863 = vadd.f32 %v1831, 1.0
      %v1864 = vrcp.pop %v1832
      %v1865 = vmul.f32 %v1832, %v1864
      %v1866 = vsub.f32 1.0, %v1865
      %v1867 = vmul.f32 %v1864, %v1866
      %v1868 = vadd.f32 %v1864, %v1867
      %vm1869 = vweird.f32 %v1832
      %vm1870 = vweird.f32 %v1864
      %vm1871 = vmor %vm1869, %vm1870
      %v1872 = vsel %vm1871, %v1864, %v1868
      %v1873 = vand.u32 2147483647, %v1832
      %vm1874 = vcmp.eq.f32.partialorder %v1873, 8.507059e+37
      %v1875 = vand.u32 %v1832, 2147483648
      %v1876 = vor.u32 1.1754944e-38, %v1875
      %v1877 = vsel %vm1874, %v1876, %v1872
      %v1878 = vmul.f32 1.0, %v1877
      %v1879 = vrcp.pop %v1833
      %v1880 = vmul.f32 %v1833, %v1879
      %v1881 = vsub.f32 1.0, %v1880
      %v1882 = vmul.f32 %v1879, %v1881
      %v1883 = vadd.f32 %v1879, %v1882
      %vm1884 = vweird.f32 %v1833
      %vm1885 = vweird.f32 %v1879
      %vm1886 = vmor %vm1884, %vm1885
      %v1887 = vsel %vm1886, %v1879, %v1883
      %v1888 = vand.u32 2147483647, %v1833
      %vm1889 = vcmp.eq.f32.partialorder %v1888, 8.507059e+37
      %v1890 = vand.u32 %v1833, 2147483648
      %v1891 = vor.u32 1.1754944e-38, %v1890
      %v1892 = vsel %vm1889, %v1891, %v1887
      %v1893 = vmul.f32 1.0, %v1892
      %v1894 = vrcp.pop %v1834
      %v1895 = vmul.f32 %v1834, %v1894
      %v1896 = vsub.f32 1.0, %v1895
      %v1897 = vmul.f32 %v1894, %v1896
      %v1898 = vadd.f32 %v1894, %v1897
      %vm1899 = vweird.f32 %v1834
      %vm1900 = vweird.f32 %v1894
      %vm1901 = vmor %vm1899, %vm1900
      %v1902 = vsel %vm1901, %v1894, %v1898
      %v1903 = vand.u32 2147483647, %v1834
      %vm1904 = vcmp.eq.f32.partialorder %v1903, 8.507059e+37
      %v1905 = vand.u32 %v1834, 2147483648
      %v1906 = vor.u32 1.1754944e-38, %v1905
      %v1907 = vsel %vm1904, %v1906, %v1902
      %v1908 = vmul.f32 1.0, %v1907
      %v1909 = vrcp.pop %v1835
      %v1910 = vmul.f32 %v1835, %v1909
      %v1911 = vsub.f32 1.0, %v1910
      %v1912 = vmul.f32 %v1909, %v1911
      %v1913 = vadd.f32 %v1909, %v1912
      %vm1914 = vweird.f32 %v1835
      %vm1915 = vweird.f32 %v1909
      %vm1916 = vmor %vm1914, %vm1915
      %v1917 = vsel %vm1916, %v1909, %v1913
      %v1918 = vand.u32 2147483647, %v1835
      %vm1919 = vcmp.eq.f32.partialorder %v1918, 8.507059e+37
      %v1920 = vand.u32 %v1835, 2147483648
      %v1921 = vor.u32 1.1754944e-38, %v1920
      %v1922 = vsel %vm1919, %v1921, %v1917
      %v1923 = vmul.f32 1.0, %v1922
      %v1924 = vrcp.pop %v1836
      %v1925 = vmul.f32 %v1836, %v1924
      %v1926 = vsub.f32 1.0, %v1925
      %v1927 = vmul.f32 %v1924, %v1926
      %v1928 = vadd.f32 %v1924, %v1927
      %vm1929 = vweird.f32 %v1836
      %vm1930 = vweird.f32 %v1924
      %vm1931 = vmor %vm1929, %vm1930
      %v1932 = vsel %vm1931, %v1924, %v1928
      %v1933 = vand.u32 2147483647, %v1836
      %vm1934 = vcmp.eq.f32.partialorder %v1933, 8.507059e+37
      %v1935 = vand.u32 %v1836, 2147483648
      %v1936 = vor.u32 1.1754944e-38, %v1935
      %v1937 = vsel %vm1934, %v1936, %v1932
      %v1938 = vmul.f32 1.0, %v1937
      %v1939 = vrcp.pop %v1837
      %v1940 = vmul.f32 %v1837, %v1939
      %v1941 = vsub.f32 1.0, %v1940
      %v1942 = vmul.f32 %v1939, %v1941
      %v1943 = vadd.f32 %v1939, %v1942
      %vm1944 = vweird.f32 %v1837
      %vm1945 = vweird.f32 %v1939
      %vm1946 = vmor %vm1944, %vm1945
      %v1947 = vsel %vm1946, %v1939, %v1943
      %v1948 = vand.u32 2147483647, %v1837
      %vm1949 = vcmp.eq.f32.partialorder %v1948, 8.507059e+37
      %v1950 = vand.u32 %v1837, 2147483648
      %v1951 = vor.u32 1.1754944e-38, %v1950
      %v1952 = vsel %vm1949, %v1951, %v1947
      %v1953 = vmul.f32 1.0, %v1952
      %v1954 = vrcp.pop %v1838
      %v1955 = vmul.f32 %v1838, %v1954
      %v1956 = vsub.f32 1.0, %v1955
      %v1957 = vmul.f32 %v1954, %v1956
      %v1958 = vadd.f32 %v1954, %v1957
      %vm1959 = vweird.f32 %v1838
      %vm1960 = vweird.f32 %v1954
      %vm1961 = vmor %vm1959, %vm1960
      %v1962 = vsel %vm1961, %v1954, %v1958
      %v1963 = vand.u32 2147483647, %v1838
      %vm1964 = vcmp.eq.f32.partialorder %v1963, 8.507059e+37
      %v1965 = vand.u32 %v1838, 2147483648
      %v1966 = vor.u32 1.1754944e-38, %v1965
      %v1967 = vsel %vm1964, %v1966, %v1962
      %v1968 = vmul.f32 1.0, %v1967
      %v1969 = vrcp.pop %v1839
      %v1970 = vmul.f32 %v1839, %v1969
      %v1971 = vsub.f32 1.0, %v1970
      %v1972 = vmul.f32 %v1969, %v1971
      %v1973 = vadd.f32 %v1969, %v1972
      %vm1974 = vweird.f32 %v1839
      %vm1975 = vweird.f32 %v1969
      %vm1976 = vmor %vm1974, %vm1975
      %v1977 = vsel %vm1976, %v1969, %v1973
      %v1978 = vand.u32 2147483647, %v1839
      %vm1979 = vcmp.eq.f32.partialorder %v1978, 8.507059e+37
      %v1980 = vand.u32 %v1839, 2147483648
      %v1981 = vor.u32 1.1754944e-38, %v1980
      %v1982 = vsel %vm1979, %v1981, %v1977
      %v1983 = vmul.f32 1.0, %v1982
      %v1984 = vrcp.pop %v1840
      %v1985 = vmul.f32 %v1840, %v1984
      %v1986 = vsub.f32 1.0, %v1985
      %v1987 = vmul.f32 %v1984, %v1986
      %v1988 = vadd.f32 %v1984, %v1987
      %vm1989 = vweird.f32 %v1840
      %vm1990 = vweird.f32 %v1984
      %vm1991 = vmor %vm1989, %vm1990
      %v1992 = vsel %vm1991, %v1984, %v1988
      %v1993 = vand.u32 2147483647, %v1840
      %vm1994 = vcmp.eq.f32.partialorder %v1993, 8.507059e+37
      %v1995 = vand.u32 %v1840, 2147483648
      %v1996 = vor.u32 1.1754944e-38, %v1995
      %v1997 = vsel %vm1994, %v1996, %v1992
      %v1998 = vmul.f32 1.0, %v1997
      %v1999 = vrcp.pop %v1841
      %v2000 = vmul.f32 %v1841, %v1999
      %v2001 = vsub.f32 1.0, %v2000
      %v2002 = vmul.f32 %v1999, %v2001
      %v2003 = vadd.f32 %v1999, %v2002
      %vm2004 = vweird.f32 %v1841
      %vm2005 = vweird.f32 %v1999
      %vm2006 = vmor %vm2004, %vm2005
      %v2007 = vsel %vm2006, %v1999, %v2003
      %v2008 = vand.u32 2147483647, %v1841
      %vm2009 = vcmp.eq.f32.partialorder %v2008, 8.507059e+37
      %v2010 = vand.u32 %v1841, 2147483648
      %v2011 = vor.u32 1.1754944e-38, %v2010
      %v2012 = vsel %vm2009, %v2011, %v2007
      %v2013 = vmul.f32 1.0, %v2012
      %v2014 = vrcp.pop %v1842
      %v2015 = vmul.f32 %v1842, %v2014
      %v2016 = vsub.f32 1.0, %v2015
      %v2017 = vmul.f32 %v2014, %v2016
      %v2018 = vadd.f32 %v2014, %v2017
      %vm2019 = vweird.f32 %v1842
      %vm2020 = vweird.f32 %v2014
      %vm2021 = vmor %vm2019, %vm2020
      %v2022 = vsel %vm2021, %v2014, %v2018
      %v2023 = vand.u32 2147483647, %v1842
      %vm2024 = vcmp.eq.f32.partialorder %v2023, 8.507059e+37
      %v2025 = vand.u32 %v1842, 2147483648
      %v2026 = vor.u32 1.1754944e-38, %v2025
      %v2027 = vsel %vm2024, %v2026, %v2022
      %v2028 = vmul.f32 1.0, %v2027
      %v2029 = vrcp.pop %v1843
      %v2030 = vmul.f32 %v1843, %v2029
      %v2031 = vsub.f32 1.0, %v2030
      %v2032 = vmul.f32 %v2029, %v2031
      %v2033 = vadd.f32 %v2029, %v2032
      %vm2034 = vweird.f32 %v1843
      %vm2035 = vweird.f32 %v2029
      %vm2036 = vmor %vm2034, %vm2035
      %v2037 = vsel %vm2036, %v2029, %v2033
      %v2038 = vand.u32 2147483647, %v1843
      %vm2039 = vcmp.eq.f32.partialorder %v2038, 8.507059e+37
      %v2040 = vand.u32 %v1843, 2147483648
      %v2041 = vor.u32 1.1754944e-38, %v2040
      %v2042 = vsel %vm2039, %v2041, %v2037
      %v2043 = vmul.f32 1.0, %v2042
      %v2044 = vrcp.pop %v1844
      %v2045 = vmul.f32 %v1844, %v2044
      %v2046 = vsub.f32 1.0, %v2045
      %v2047 = vmul.f32 %v2044, %v2046
      %v2048 = vadd.f32 %v2044, %v2047
      %vm2049 = vweird.f32 %v1844
      %vm2050 = vweird.f32 %v2044
      %vm2051 = vmor %vm2049, %vm2050
      %v2052 = vsel %vm2051, %v2044, %v2048
      %v2053 = vand.u32 2147483647, %v1844
      %vm2054 = vcmp.eq.f32.partialorder %v2053, 8.507059e+37
      %v2055 = vand.u32 %v1844, 2147483648
      %v2056 = vor.u32 1.1754944e-38, %v2055
      %v2057 = vsel %vm2054, %v2056, %v2052
      %v2058 = vmul.f32 1.0, %v2057
      %v2059 = vrcp.pop %v1845
      %v2060 = vmul.f32 %v1845, %v2059
      %v2061 = vsub.f32 1.0, %v2060
      %v2062 = vmul.f32 %v2059, %v2061
      %v2063 = vadd.f32 %v2059, %v2062
      %vm2064 = vweird.f32 %v1845
      %vm2065 = vweird.f32 %v2059
      %vm2066 = vmor %vm2064, %vm2065
      %v2067 = vsel %vm2066, %v2059, %v2063
      %v2068 = vand.u32 2147483647, %v1845
      %vm2069 = vcmp.eq.f32.partialorder %v2068, 8.507059e+37
      %v2070 = vand.u32 %v1845, 2147483648
      %v2071 = vor.u32 1.1754944e-38, %v2070
      %v2072 = vsel %vm2069, %v2071, %v2067
      %v2073 = vmul.f32 1.0, %v2072
      %v2074 = vrcp.pop %v1846
      %v2075 = vmul.f32 %v1846, %v2074
      %v2076 = vsub.f32 1.0, %v2075
      %v2077 = vmul.f32 %v2074, %v2076
      %v2078 = vadd.f32 %v2074, %v2077
      %vm2079 = vweird.f32 %v1846
      %vm2080 = vweird.f32 %v2074
      %vm2081 = vmor %vm2079, %vm2080
      %v2082 = vsel %vm2081, %v2074, %v2078
      %v2083 = vand.u32 2147483647, %v1846
      %vm2084 = vcmp.eq.f32.partialorder %v2083, 8.507059e+37
      %v2085 = vand.u32 %v1846, 2147483648
      %v2086 = vor.u32 1.1754944e-38, %v2085
      %v2087 = vsel %vm2084, %v2086, %v2082
      %v2088 = vmul.f32 1.0, %v2087
      %v2089 = vrcp.pop %v1847
      %v2090 = vmul.f32 %v1847, %v2089
      %v2091 = vsub.f32 1.0, %v2090
      %v2092 = vmul.f32 %v2089, %v2091
      %v2093 = vadd.f32 %v2089, %v2092
      %vm2094 = vweird.f32 %v1847
      %vm2095 = vweird.f32 %v2089
      %vm2096 = vmor %vm2094, %vm2095
      %v2097 = vsel %vm2096, %v2089, %v2093
      %v2098 = vand.u32 2147483647, %v1847
      %vm2099 = vcmp.eq.f32.partialorder %v2098, 8.507059e+37
      %v2100 = vand.u32 %v1847, 2147483648
      %v2101 = vor.u32 1.1754944e-38, %v2100
      %v2102 = vsel %vm2099, %v2101, %v2097
      %v2103 = vmul.f32 1.0, %v2102
      %v2104 = vrcp.pop %v1848
      %v2105 = vmul.f32 %v1848, %v2104
      %v2106 = vsub.f32 1.0, %v2105
      %v2107 = vmul.f32 %v2104, %v2106
      %v2108 = vadd.f32 %v2104, %v2107
      %vm2109 = vweird.f32 %v1848
      %vm2110 = vweird.f32 %v2104
      %vm2111 = vmor %vm2109, %vm2110
      %v2112 = vsel %vm2111, %v2104, %v2108
      %v2113 = vand.u32 2147483647, %v1848
      %vm2114 = vcmp.eq.f32.partialorder %v2113, 8.507059e+37
      %v2115 = vand.u32 %v1848, 2147483648
      %v2116 = vor.u32 1.1754944e-38, %v2115
      %v2117 = vsel %vm2114, %v2116, %v2112
      %v2118 = vmul.f32 1.0, %v2117
      %v2119 = vrcp.pop %v1849
      %v2120 = vmul.f32 %v1849, %v2119
      %v2121 = vsub.f32 1.0, %v2120
      %v2122 = vmul.f32 %v2119, %v2121
      %v2123 = vadd.f32 %v2119, %v2122
      %vm2124 = vweird.f32 %v1849
      %vm2125 = vweird.f32 %v2119
      %vm2126 = vmor %vm2124, %vm2125
      %v2127 = vsel %vm2126, %v2119, %v2123
      %v2128 = vand.u32 2147483647, %v1849
      %vm2129 = vcmp.eq.f32.partialorder %v2128, 8.507059e+37
      %v2130 = vand.u32 %v1849, 2147483648
      %v2131 = vor.u32 1.1754944e-38, %v2130
      %v2132 = vsel %vm2129, %v2131, %v2127
      %v2133 = vmul.f32 1.0, %v2132
      %v2134 = vrcp.pop %v1850
      %v2135 = vmul.f32 %v1850, %v2134
      %v2136 = vsub.f32 1.0, %v2135
      %v2137 = vmul.f32 %v2134, %v2136
      %v2138 = vadd.f32 %v2134, %v2137
      %vm2139 = vweird.f32 %v1850
      %vm2140 = vweird.f32 %v2134
      %vm2141 = vmor %vm2139, %vm2140
      %v2142 = vsel %vm2141, %v2134, %v2138
      %v2143 = vand.u32 2147483647, %v1850
      %vm2144 = vcmp.eq.f32.partialorder %v2143, 8.507059e+37
      %v2145 = vand.u32 %v1850, 2147483648
      %v2146 = vor.u32 1.1754944e-38, %v2145
      %v2147 = vsel %vm2144, %v2146, %v2142
      %v2148 = vmul.f32 1.0, %v2147
      %v2149 = vrcp.pop %v1851
      %v2150 = vmul.f32 %v1851, %v2149
      %v2151 = vsub.f32 1.0, %v2150
      %v2152 = vmul.f32 %v2149, %v2151
      %v2153 = vadd.f32 %v2149, %v2152
      %vm2154 = vweird.f32 %v1851
      %vm2155 = vweird.f32 %v2149
      %vm2156 = vmor %vm2154, %vm2155
      %v2157 = vsel %vm2156, %v2149, %v2153
      %v2158 = vand.u32 2147483647, %v1851
      %vm2159 = vcmp.eq.f32.partialorder %v2158, 8.507059e+37
      %v2160 = vand.u32 %v1851, 2147483648
      %v2161 = vor.u32 1.1754944e-38, %v2160
      %v2162 = vsel %vm2159, %v2161, %v2157
      %v2163 = vmul.f32 1.0, %v2162
      %v2164 = vrcp.pop %v1852
      %v2165 = vmul.f32 %v1852, %v2164
      %v2166 = vsub.f32 1.0, %v2165
      %v2167 = vmul.f32 %v2164, %v2166
      %v2168 = vadd.f32 %v2164, %v2167
      %vm2169 = vweird.f32 %v1852
      %vm2170 = vweird.f32 %v2164
      %vm2171 = vmor %vm2169, %vm2170
      %v2172 = vsel %vm2171, %v2164, %v2168
      %v2173 = vand.u32 2147483647, %v1852
      %vm2174 = vcmp.eq.f32.partialorder %v2173, 8.507059e+37
      %v2175 = vand.u32 %v1852, 2147483648
      %v2176 = vor.u32 1.1754944e-38, %v2175
      %v2177 = vsel %vm2174, %v2176, %v2172
      %v2178 = vmul.f32 1.0, %v2177
      %v2179 = vrcp.pop %v1853
      %v2180 = vmul.f32 %v1853, %v2179
      %v2181 = vsub.f32 1.0, %v2180
      %v2182 = vmul.f32 %v2179, %v2181
      %v2183 = vadd.f32 %v2179, %v2182
      %vm2184 = vweird.f32 %v1853
      %vm2185 = vweird.f32 %v2179
      %vm2186 = vmor %vm2184, %vm2185
      %v2187 = vsel %vm2186, %v2179, %v2183
      %v2188 = vand.u32 2147483647, %v1853
      %vm2189 = vcmp.eq.f32.partialorder %v2188, 8.507059e+37
      %v2190 = vand.u32 %v1853, 2147483648
      %v2191 = vor.u32 1.1754944e-38, %v2190
      %v2192 = vsel %vm2189, %v2191, %v2187
      %v2193 = vmul.f32 1.0, %v2192
      %v2194 = vrcp.pop %v1854
      %v2195 = vmul.f32 %v1854, %v2194
      %v2196 = vsub.f32 1.0, %v2195
      %v2197 = vmul.f32 %v2194, %v2196
      %v2198 = vadd.f32 %v2194, %v2197
      %vm2199 = vweird.f32 %v1854
      %vm2200 = vweird.f32 %v2194
      %vm2201 = vmor %vm2199, %vm2200
      %v2202 = vsel %vm2201, %v2194, %v2198
      %v2203 = vand.u32 2147483647, %v1854
      %vm2204 = vcmp.eq.f32.partialorder %v2203, 8.507059e+37
      %v2205 = vand.u32 %v1854, 2147483648
      %v2206 = vor.u32 1.1754944e-38, %v2205
      %v2207 = vsel %vm2204, %v2206, %v2202
      %v2208 = vmul.f32 1.0, %v2207
      %v2209 = vrcp.pop %v1855
      %v2210 = vmul.f32 %v1855, %v2209
      %v2211 = vsub.f32 1.0, %v2210
      %v2212 = vmul.f32 %v2209, %v2211
      %v2213 = vadd.f32 %v2209, %v2212
      %vm2214 = vweird.f32 %v1855
      %vm2215 = vweird.f32 %v2209
      %vm2216 = vmor %vm2214, %vm2215
      %v2217 = vsel %vm2216, %v2209, %v2213
      %v2218 = vand.u32 2147483647, %v1855
      %vm2219 = vcmp.eq.f32.partialorder %v2218, 8.507059e+37
      %v2220 = vand.u32 %v1855, 2147483648
      %v2221 = vor.u32 1.1754944e-38, %v2220
      %v2222 = vsel %vm2219, %v2221, %v2217
      %v2223 = vmul.f32 1.0, %v2222
      %v2224 = vrcp.pop %v1856
      %v2225 = vmul.f32 %v1856, %v2224
      %v2226 = vsub.f32 1.0, %v2225
      %v2227 = vmul.f32 %v2224, %v2226
      %v2228 = vadd.f32 %v2224, %v2227
      %vm2229 = vweird.f32 %v1856
      %vm2230 = vweird.f32 %v2224
      %vm2231 = vmor %vm2229, %vm2230
      %v2232 = vsel %vm2231, %v2224, %v2228
      %v2233 = vand.u32 2147483647, %v1856
      %vm2234 = vcmp.eq.f32.partialorder %v2233, 8.507059e+37
      %v2235 = vand.u32 %v1856, 2147483648
      %v2236 = vor.u32 1.1754944e-38, %v2235
      %v2237 = vsel %vm2234, %v2236, %v2232
      %v2238 = vmul.f32 1.0, %v2237
      %v2239 = vrcp.pop %v1857
      %v2240 = vmul.f32 %v1857, %v2239
      %v2241 = vsub.f32 1.0, %v2240
      %v2242 = vmul.f32 %v2239, %v2241
      %v2243 = vadd.f32 %v2239, %v2242
      %vm2244 = vweird.f32 %v1857
      %vm2245 = vweird.f32 %v2239
      %vm2246 = vmor %vm2244, %vm2245
      %v2247 = vsel %vm2246, %v2239, %v2243
      %v2248 = vand.u32 2147483647, %v1857
      %vm2249 = vcmp.eq.f32.partialorder %v2248, 8.507059e+37
      %v2250 = vand.u32 %v1857, 2147483648
      %v2251 = vor.u32 1.1754944e-38, %v2250
      %v2252 = vsel %vm2249, %v2251, %v2247
      %v2253 = vmul.f32 1.0, %v2252
      %v2254 = vrcp.pop %v1858
      %v2255 = vmul.f32 %v1858, %v2254
      %v2256 = vsub.f32 1.0, %v2255
      %v2257 = vmul.f32 %v2254, %v2256
      %v2258 = vadd.f32 %v2254, %v2257
      %vm2259 = vweird.f32 %v1858
      %vm2260 = vweird.f32 %v2254
      %vm2261 = vmor %vm2259, %vm2260
      %v2262 = vsel %vm2261, %v2254, %v2258
      %v2263 = vand.u32 2147483647, %v1858
      %vm2264 = vcmp.eq.f32.partialorder %v2263, 8.507059e+37
      %v2265 = vand.u32 %v1858, 2147483648
      %v2266 = vor.u32 1.1754944e-38, %v2265
      %v2267 = vsel %vm2264, %v2266, %v2262
      %v2268 = vmul.f32 1.0, %v2267
      %v2269 = vrcp.pop %v1859
      %v2270 = vmul.f32 %v1859, %v2269
      %v2271 = vsub.f32 1.0, %v2270
      %v2272 = vmul.f32 %v2269, %v2271
      %v2273 = vadd.f32 %v2269, %v2272
      %vm2274 = vweird.f32 %v1859
      %vm2275 = vweird.f32 %v2269
      %vm2276 = vmor %vm2274, %vm2275
      %v2277 = vsel %vm2276, %v2269, %v2273
      %v2278 = vand.u32 2147483647, %v1859
      %vm2279 = vcmp.eq.f32.partialorder %v2278, 8.507059e+37
      %v2280 = vand.u32 %v1859, 2147483648
      %v2281 = vor.u32 1.1754944e-38, %v2280
      %v2282 = vsel %vm2279, %v2281, %v2277
      %v2283 = vmul.f32 1.0, %v2282
      %v2284 = vrcp.pop %v1860
      %v2285 = vmul.f32 %v1860, %v2284
      %v2286 = vsub.f32 1.0, %v2285
      %v2287 = vmul.f32 %v2284, %v2286
      %v2288 = vadd.f32 %v2284, %v2287
      %vm2289 = vweird.f32 %v1860
      %vm2290 = vweird.f32 %v2284
      %vm2291 = vmor %vm2289, %vm2290
      %v2292 = vsel %vm2291, %v2284, %v2288
      %v2293 = vand.u32 2147483647, %v1860
      %vm2294 = vcmp.eq.f32.partialorder %v2293, 8.507059e+37
      %v2295 = vand.u32 %v1860, 2147483648
      %v2296 = vor.u32 1.1754944e-38, %v2295
      %v2297 = vsel %vm2294, %v2296, %v2292
      %v2298 = vmul.f32 1.0, %v2297
      %v2299 = vrcp.pop %v1861
      %v2300 = vmul.f32 %v1861, %v2299
      %v2301 = vsub.f32 1.0, %v2300
      %v2302 = vmul.f32 %v2299, %v2301
      %v2303 = vadd.f32 %v2299, %v2302
      %vm2304 = vweird.f32 %v1861
      %vm2305 = vweird.f32 %v2299
      %vm2306 = vmor %vm2304, %vm2305
      %v2307 = vsel %vm2306, %v2299, %v2303
      %v2308 = vand.u32 2147483647, %v1861
      %vm2309 = vcmp.eq.f32.partialorder %v2308, 8.507059e+37
      %v2310 = vand.u32 %v1861, 2147483648
      %v2311 = vor.u32 1.1754944e-38, %v2310
      %v2312 = vsel %vm2309, %v2311, %v2307
      %v2313 = vmul.f32 1.0, %v2312
      %v2314 = vrcp.pop %v1862
      %v2315 = vmul.f32 %v1862, %v2314
      %v2316 = vsub.f32 1.0, %v2315
      %v2317 = vmul.f32 %v2314, %v2316
      %v2318 = vadd.f32 %v2314, %v2317
      %vm2319 = vweird.f32 %v1862
      %vm2320 = vweird.f32 %v2314
      %vm2321 = vmor %vm2319, %vm2320
      %v2322 = vsel %vm2321, %v2314, %v2318
      %v2323 = vand.u32 2147483647, %v1862
      %vm2324 = vcmp.eq.f32.partialorder %v2323, 8.507059e+37
      %v2325 = vand.u32 %v1862, 2147483648
      %v2326 = vor.u32 1.1754944e-38, %v2325
      %v2327 = vsel %vm2324, %v2326, %v2322
      %v2328 = vmul.f32 1.0, %v2327
      %v2329 = vrcp.pop %v1863
      %v2330 = vmul.f32 %v1863, %v2329
      %v2331 = vsub.f32 1.0, %v2330
      %v2332 = vmul.f32 %v2329, %v2331
      %v2333 = vadd.f32 %v2329, %v2332
      %vm2334 = vweird.f32 %v1863
      %vm2335 = vweird.f32 %v2329
      %vm2336 = vmor %vm2334, %vm2335
      %v2337 = vsel %vm2336, %v2329, %v2333
      %v2338 = vand.u32 2147483647, %v1863
      %vm2339 = vcmp.eq.f32.partialorder %v2338, 8.507059e+37
      %v2340 = vand.u32 %v1863, 2147483648
      %v2341 = vor.u32 1.1754944e-38, %v2340
      %v2342 = vsel %vm2339, %v2341, %v2337
      %v2343 = vmul.f32 1.0, %v2342
      %v2344 = vpack.c.bf16 %v1893, %v1878
      %v2345 = vpack.c.bf16 %v1923, %v1908
      %v2346 = vpack.c.bf16 %v1953, %v1938
      %v2347 = vpack.c.bf16 %v1983, %v1968
      %v2348 = vpack.c.bf16 %v2013, %v1998
      %v2349 = vpack.c.bf16 %v2043, %v2028
      %v2350 = vpack.c.bf16 %v2073, %v2058
      %v2351 = vpack.c.bf16 %v2103, %v2088
      %v2352 = vpack.c.bf16 %v2133, %v2118
      %v2353 = vpack.c.bf16 %v2163, %v2148
      %v2354 = vpack.c.bf16 %v2193, %v2178
      %v2355 = vpack.c.bf16 %v2223, %v2208
      %v2356 = vpack.c.bf16 %v2253, %v2238
      %v2357 = vpack.c.bf16 %v2283, %v2268
      %v2358 = vpack.c.bf16 %v2313, %v2298
      %v2359 = vpack.c.bf16 %v2343, %v2328
      %v2360 = vld [vmem:[%s4] sm:$0xf]
      %v2361 = vld [vmem:[%s4 + $0x4] sm:$0xf]
      %v2362 = vld [vmem:[%s4 + $0x8] sm:$0xf]
      %v2363 = vld [vmem:[%s4 + $0xc] sm:$0xf]
      %v2364 = vld [vmem:[%s4 + $0x10] sm:$0xf]
      %v2365 = vld [vmem:[%s4 + $0x14] sm:$0xf]
      %v2366 = vld [vmem:[%s4 + $0x18] sm:$0xf]
      %v2367 = vld [vmem:[%s4 + $0x1c] sm:$0xf]
      %v2368 = vld [vmem:[%s4 + $0x20] sm:$0xf]
      %v2369 = vld [vmem:[%s4 + $0x24] sm:$0xf]
      %v2370 = vld [vmem:[%s4 + $0x28] sm:$0xf]
      %v2371 = vld [vmem:[%s4 + $0x2c] sm:$0xf]
      %v2372 = vld [vmem:[%s4 + $0x30] sm:$0xf]
      %v2373 = vld [vmem:[%s4 + $0x34] sm:$0xf]
      %v2374 = vld [vmem:[%s4 + $0x38] sm:$0xf]
      %v2375 = vld [vmem:[%s4 + $0x3c] sm:$0xf]
      %v2376 = vld [vmem:[%s5] sm:$0x1]
      %v2378 = vperm.slane %v2376, 0
      %v2396 = vunpack.c.l.b16 %v2360
      %v2397 = vunpack.c.l.b16 %v2361
      %v2398 = vunpack.c.l.b16 %v2362
      %v2399 = vunpack.c.l.b16 %v2363
      %v2400 = vunpack.c.l.b16 %v2364
      %v2401 = vunpack.c.l.b16 %v2365
      %v2402 = vunpack.c.l.b16 %v2366
      %v2403 = vunpack.c.l.b16 %v2367
      %v2404 = vunpack.c.l.b16 %v2368
      %v2405 = vunpack.c.l.b16 %v2369
      %v2406 = vunpack.c.l.b16 %v2370
      %v2407 = vunpack.c.l.b16 %v2371
      %v2408 = vunpack.c.l.b16 %v2372
      %v2409 = vunpack.c.l.b16 %v2373
      %v2410 = vunpack.c.l.b16 %v2374
      %v2411 = vunpack.c.l.b16 %v2375
      %v2412 = vpack.c.b16 %v2397, %v2396
      %v2413 = vpack.c.b16 %v2399, %v2398
      %v2414 = vpack.c.b16 %v2401, %v2400
      %v2415 = vpack.c.b16 %v2403, %v2402
      %v2416 = vpack.c.b16 %v2405, %v2404
      %v2417 = vpack.c.b16 %v2407, %v2406
      %v2418 = vpack.c.b16 %v2409, %v2408
      %v2419 = vpack.c.b16 %v2411, %v2410
      %2428 = vmatpush.bf16.msra.mxu0 %v2419
      %2429 = vmatpush.bf16.msra.mxu0 %v2418
      %2430 = vmatpush.bf16.msra.mxu0 %v2417
      %2431 = vmatpush.bf16.msra.mxu0 %v2416
      %2432 = vmatpush.bf16.msra.mxu0 %v2415
      %2433 = vmatpush.bf16.msra.mxu0 %v2414
      %2434 = vmatpush.bf16.msra.mxu0 %v2413
      %2435 = vmatpush.bf16.msra.mxu0 %v2412
      %2436 = vmatmul.bf16.gmra.mxu0 %v2344
      %v2437 = vpop.f32.mrf.mxu0
      %v2438 = vadd.f32 %v2378, %v2437
      %v2439 = vpop.f32.mrf.mxu0
      %v2440 = vadd.f32 %v2378, %v2439
      %2441 = vmatmul.bf16.gmra.mxu0 %v2345
      %v2442 = vpop.f32.mrf.mxu0
      %v2443 = vadd.f32 %v2378, %v2442
      %v2444 = vpop.f32.mrf.mxu0
      %v2445 = vadd.f32 %v2378, %v2444
      %2446 = vmatmul.bf16.gmra.mxu0 %v2346
      %v2447 = vpop.f32.mrf.mxu0
      %v2448 = vadd.f32 %v2378, %v2447
      %v2449 = vpop.f32.mrf.mxu0
      %v2450 = vadd.f32 %v2378, %v2449
      %2451 = vmatmul.bf16.gmra.mxu0 %v2347
      %v2452 = vpop.f32.mrf.mxu0
      %v2453 = vadd.f32 %v2378, %v2452
      %v2454 = vpop.f32.mrf.mxu0
      %v2455 = vadd.f32 %v2378, %v2454
      %2456 = vmatmul.bf16.gmra.mxu0 %v2348
      %v2457 = vpop.f32.mrf.mxu0
      %v2458 = vadd.f32 %v2378, %v2457
      %v2459 = vpop.f32.mrf.mxu0
      %v2460 = vadd.f32 %v2378, %v2459
      %2461 = vmatmul.bf16.gmra.mxu0 %v2349
      %v2462 = vpop.f32.mrf.mxu0
      %v2463 = vadd.f32 %v2378, %v2462
      %v2464 = vpop.f32.mrf.mxu0
      %v2465 = vadd.f32 %v2378, %v2464
      %2466 = vmatmul.bf16.gmra.mxu0 %v2350
      %v2467 = vpop.f32.mrf.mxu0
      %v2468 = vadd.f32 %v2378, %v2467
      %v2469 = vpop.f32.mrf.mxu0
      %v2470 = vadd.f32 %v2378, %v2469
      %2471 = vmatmul.bf16.gmra.mxu0 %v2351
      %v2472 = vpop.f32.mrf.mxu0
      %v2473 = vadd.f32 %v2378, %v2472
      %v2474 = vpop.f32.mrf.mxu0
      %v2475 = vadd.f32 %v2378, %v2474
      %2476 = vmatmul.bf16.gmra.mxu0 %v2352
      %v2477 = vpop.f32.mrf.mxu0
      %v2478 = vadd.f32 %v2378, %v2477
      %v2479 = vpop.f32.mrf.mxu0
      %v2480 = vadd.f32 %v2378, %v2479
      %2481 = vmatmul.bf16.gmra.mxu0 %v2353
      %v2482 = vpop.f32.mrf.mxu0
      %v2483 = vadd.f32 %v2378, %v2482
      %v2484 = vpop.f32.mrf.mxu0
      %v2485 = vadd.f32 %v2378, %v2484
      %2486 = vmatmul.bf16.gmra.mxu0 %v2354
      %v2487 = vpop.f32.mrf.mxu0
      %v2488 = vadd.f32 %v2378, %v2487
      %v2489 = vpop.f32.mrf.mxu0
      %v2490 = vadd.f32 %v2378, %v2489
      %2491 = vmatmul.bf16.gmra.mxu0 %v2355
      %v2492 = vpop.f32.mrf.mxu0
      %v2493 = vadd.f32 %v2378, %v2492
      %v2494 = vpop.f32.mrf.mxu0
      %v2495 = vadd.f32 %v2378, %v2494
      %2496 = vmatmul.bf16.gmra.mxu0 %v2356
      %v2497 = vpop.f32.mrf.mxu0
      %v2498 = vadd.f32 %v2378, %v2497
      %v2499 = vpop.f32.mrf.mxu0
      %v2500 = vadd.f32 %v2378, %v2499
      %2501 = vmatmul.bf16.gmra.mxu0 %v2357
      %v2502 = vpop.f32.mrf.mxu0
      %v2503 = vadd.f32 %v2378, %v2502
      %v2504 = vpop.f32.mrf.mxu0
      %v2505 = vadd.f32 %v2378, %v2504
      %2506 = vmatmul.bf16.gmra.mxu0 %v2358
      %v2507 = vpop.f32.mrf.mxu0
      %v2508 = vadd.f32 %v2378, %v2507
      %v2509 = vpop.f32.mrf.mxu0
      %v2510 = vadd.f32 %v2378, %v2509
      %2511 = vmatmul.bf16.gmra.mxu0 %v2359
      %v2512 = vpop.f32.mrf.mxu0
      %v2513 = vadd.f32 %v2378, %v2512
      %v2514 = vpop.f32.mrf.mxu0
      %v2515 = vadd.f32 %v2378, %v2514
      %2516 = vdwg.mxu0
      %v2517 = vxor.u32 %v2438, 2147483648
      %v2518 = vxor.u32 %v2440, 2147483648
      %v2519 = vxor.u32 %v2443, 2147483648
      %v2520 = vxor.u32 %v2445, 2147483648
      %v2521 = vxor.u32 %v2448, 2147483648
      %v2522 = vxor.u32 %v2450, 2147483648
      %v2523 = vxor.u32 %v2453, 2147483648
      %v2524 = vxor.u32 %v2455, 2147483648
      %v2525 = vxor.u32 %v2458, 2147483648
      %v2526 = vxor.u32 %v2460, 2147483648
      %v2527 = vxor.u32 %v2463, 2147483648
      %v2528 = vxor.u32 %v2465, 2147483648
      %v2529 = vxor.u32 %v2468, 2147483648
      %v2530 = vxor.u32 %v2470, 2147483648
      %v2531 = vxor.u32 %v2473, 2147483648
      %v2532 = vxor.u32 %v2475, 2147483648
      %v2533 = vxor.u32 %v2478, 2147483648
      %v2534 = vxor.u32 %v2480, 2147483648
      %v2535 = vxor.u32 %v2483, 2147483648
      %v2536 = vxor.u32 %v2485, 2147483648
      %v2537 = vxor.u32 %v2488, 2147483648
      %v2538 = vxor.u32 %v2490, 2147483648
      %v2539 = vxor.u32 %v2493, 2147483648
      %v2540 = vxor.u32 %v2495, 2147483648
      %v2541 = vxor.u32 %v2498, 2147483648
      %v2542 = vxor.u32 %v2500, 2147483648
      %v2543 = vxor.u32 %v2503, 2147483648
      %v2544 = vxor.u32 %v2505, 2147483648
      %v2545 = vxor.u32 %v2508, 2147483648
      %v2546 = vxor.u32 %v2510, 2147483648
      %v2547 = vxor.u32 %v2513, 2147483648
      %v2548 = vxor.u32 %v2515, 2147483648
      %v2549 = vmul.f32 %v2517, 1.442695
      %v2550 = vpow.pop %v2549
      %v2551 = vmul.f32 %v2518, 1.442695
      %v2552 = vpow.pop %v2551
      %v2553 = vmul.f32 %v2519, 1.442695
      %v2554 = vpow.pop %v2553
      %v2555 = vmul.f32 %v2520, 1.442695
      %v2556 = vpow.pop %v2555
      %v2557 = vmul.f32 %v2521, 1.442695
      %v2558 = vpow.pop %v2557
      %v2559 = vmul.f32 %v2522, 1.442695
      %v2560 = vpow.pop %v2559
      %v2561 = vmul.f32 %v2523, 1.442695
      %v2562 = vpow.pop %v2561
      %v2563 = vmul.f32 %v2524, 1.442695
      %v2564 = vpow.pop %v2563
      %v2565 = vmul.f32 %v2525, 1.442695
      %v2566 = vpow.pop %v2565
      %v2567 = vmul.f32 %v2526, 1.442695
      %v2568 = vpow.pop %v2567
      %v2569 = vmul.f32 %v2527, 1.442695
      %v2570 = vpow.pop %v2569
      %v2571 = vmul.f32 %v2528, 1.442695
      %v2572 = vpow.pop %v2571
      %v2573 = vmul.f32 %v2529, 1.442695
      %v2574 = vpow.pop %v2573
      %v2575 = vmul.f32 %v2530, 1.442695
      %v2576 = vpow.pop %v2575
      %v2577 = vmul.f32 %v2531, 1.442695
      %v2578 = vpow.pop %v2577
      %v2579 = vmul.f32 %v2532, 1.442695
      %v2580 = vpow.pop %v2579
      %v2581 = vmul.f32 %v2533, 1.442695
      %v2582 = vpow.pop %v2581
      %v2583 = vmul.f32 %v2534, 1.442695
      %v2584 = vpow.pop %v2583
      %v2585 = vmul.f32 %v2535, 1.442695
      %v2586 = vpow.pop %v2585
      %v2587 = vmul.f32 %v2536, 1.442695
      %v2588 = vpow.pop %v2587
      %v2589 = vmul.f32 %v2537, 1.442695
      %v2590 = vpow.pop %v2589
      %v2591 = vmul.f32 %v2538, 1.442695
      %v2592 = vpow.pop %v2591
      %v2593 = vmul.f32 %v2539, 1.442695
      %v2594 = vpow.pop %v2593
      %v2595 = vmul.f32 %v2540, 1.442695
      %v2596 = vpow.pop %v2595
      %v2597 = vmul.f32 %v2541, 1.442695
      %v2598 = vpow.pop %v2597
      %v2599 = vmul.f32 %v2542, 1.442695
      %v2600 = vpow.pop %v2599
      %v2601 = vmul.f32 %v2543, 1.442695
      %v2602 = vpow.pop %v2601
      %v2603 = vmul.f32 %v2544, 1.442695
      %v2604 = vpow.pop %v2603
      %v2605 = vmul.f32 %v2545, 1.442695
      %v2606 = vpow.pop %v2605
      %v2607 = vmul.f32 %v2546, 1.442695
      %v2608 = vpow.pop %v2607
      %v2609 = vmul.f32 %v2547, 1.442695
      %v2610 = vpow.pop %v2609
      %v2611 = vmul.f32 %v2548, 1.442695
      %v2612 = vpow.pop %v2611
      %v2613 = vadd.f32 %v2550, 1.0
      %v2614 = vadd.f32 %v2552, 1.0
      %v2615 = vadd.f32 %v2554, 1.0
      %v2616 = vadd.f32 %v2556, 1.0
      %v2617 = vadd.f32 %v2558, 1.0
      %v2618 = vadd.f32 %v2560, 1.0
      %v2619 = vadd.f32 %v2562, 1.0
      %v2620 = vadd.f32 %v2564, 1.0
      %v2621 = vadd.f32 %v2566, 1.0
      %v2622 = vadd.f32 %v2568, 1.0
      %v2623 = vadd.f32 %v2570, 1.0
      %v2624 = vadd.f32 %v2572, 1.0
      %v2625 = vadd.f32 %v2574, 1.0
      %v2626 = vadd.f32 %v2576, 1.0
      %v2627 = vadd.f32 %v2578, 1.0
      %v2628 = vadd.f32 %v2580, 1.0
      %v2629 = vadd.f32 %v2582, 1.0
      %v2630 = vadd.f32 %v2584, 1.0
      %v2631 = vadd.f32 %v2586, 1.0
      %v2632 = vadd.f32 %v2588, 1.0
      %v2633 = vadd.f32 %v2590, 1.0
      %v2634 = vadd.f32 %v2592, 1.0
      %v2635 = vadd.f32 %v2594, 1.0
      %v2636 = vadd.f32 %v2596, 1.0
      %v2637 = vadd.f32 %v2598, 1.0
      %v2638 = vadd.f32 %v2600, 1.0
      %v2639 = vadd.f32 %v2602, 1.0
      %v2640 = vadd.f32 %v2604, 1.0
      %v2641 = vadd.f32 %v2606, 1.0
      %v2642 = vadd.f32 %v2608, 1.0
      %v2643 = vadd.f32 %v2610, 1.0
      %v2644 = vadd.f32 %v2612, 1.0
      %v2645 = vrcp.pop %v2613
      %v2646 = vmul.f32 %v2613, %v2645
      %v2647 = vsub.f32 1.0, %v2646
      %v2648 = vmul.f32 %v2645, %v2647
      %v2649 = vadd.f32 %v2645, %v2648
      %vm2650 = vweird.f32 %v2613
      %vm2651 = vweird.f32 %v2645
      %vm2652 = vmor %vm2650, %vm2651
      %v2653 = vsel %vm2652, %v2645, %v2649
      %v2654 = vand.u32 2147483647, %v2613
      %vm2655 = vcmp.eq.f32.partialorder %v2654, 8.507059e+37
      %v2656 = vand.u32 %v2613, 2147483648
      %v2657 = vor.u32 1.1754944e-38, %v2656
      %v2658 = vsel %vm2655, %v2657, %v2653
      %v2659 = vmul.f32 1.0, %v2658
      %v2660 = vrcp.pop %v2614
      %v2661 = vmul.f32 %v2614, %v2660
      %v2662 = vsub.f32 1.0, %v2661
      %v2663 = vmul.f32 %v2660, %v2662
      %v2664 = vadd.f32 %v2660, %v2663
      %vm2665 = vweird.f32 %v2614
      %vm2666 = vweird.f32 %v2660
      %vm2667 = vmor %vm2665, %vm2666
      %v2668 = vsel %vm2667, %v2660, %v2664
      %v2669 = vand.u32 2147483647, %v2614
      %vm2670 = vcmp.eq.f32.partialorder %v2669, 8.507059e+37
      %v2671 = vand.u32 %v2614, 2147483648
      %v2672 = vor.u32 1.1754944e-38, %v2671
      %v2673 = vsel %vm2670, %v2672, %v2668
      %v2674 = vmul.f32 1.0, %v2673
      %v2675 = vrcp.pop %v2615
      %v2676 = vmul.f32 %v2615, %v2675
      %v2677 = vsub.f32 1.0, %v2676
      %v2678 = vmul.f32 %v2675, %v2677
      %v2679 = vadd.f32 %v2675, %v2678
      %vm2680 = vweird.f32 %v2615
      %vm2681 = vweird.f32 %v2675
      %vm2682 = vmor %vm2680, %vm2681
      %v2683 = vsel %vm2682, %v2675, %v2679
      %v2684 = vand.u32 2147483647, %v2615
      %vm2685 = vcmp.eq.f32.partialorder %v2684, 8.507059e+37
      %v2686 = vand.u32 %v2615, 2147483648
      %v2687 = vor.u32 1.1754944e-38, %v2686
      %v2688 = vsel %vm2685, %v2687, %v2683
      %v2689 = vmul.f32 1.0, %v2688
      %v2690 = vrcp.pop %v2616
      %v2691 = vmul.f32 %v2616, %v2690
      %v2692 = vsub.f32 1.0, %v2691
      %v2693 = vmul.f32 %v2690, %v2692
      %v2694 = vadd.f32 %v2690, %v2693
      %vm2695 = vweird.f32 %v2616
      %vm2696 = vweird.f32 %v2690
      %vm2697 = vmor %vm2695, %vm2696
      %v2698 = vsel %vm2697, %v2690, %v2694
      %v2699 = vand.u32 2147483647, %v2616
      %vm2700 = vcmp.eq.f32.partialorder %v2699, 8.507059e+37
      %v2701 = vand.u32 %v2616, 2147483648
      %v2702 = vor.u32 1.1754944e-38, %v2701
      %v2703 = vsel %vm2700, %v2702, %v2698
      %v2704 = vmul.f32 1.0, %v2703
      %v2705 = vrcp.pop %v2617
      %v2706 = vmul.f32 %v2617, %v2705
      %v2707 = vsub.f32 1.0, %v2706
      %v2708 = vmul.f32 %v2705, %v2707
      %v2709 = vadd.f32 %v2705, %v2708
      %vm2710 = vweird.f32 %v2617
      %vm2711 = vweird.f32 %v2705
      %vm2712 = vmor %vm2710, %vm2711
      %v2713 = vsel %vm2712, %v2705, %v2709
      %v2714 = vand.u32 2147483647, %v2617
      %vm2715 = vcmp.eq.f32.partialorder %v2714, 8.507059e+37
      %v2716 = vand.u32 %v2617, 2147483648
      %v2717 = vor.u32 1.1754944e-38, %v2716
      %v2718 = vsel %vm2715, %v2717, %v2713
      %v2719 = vmul.f32 1.0, %v2718
      %v2720 = vrcp.pop %v2618
      %v2721 = vmul.f32 %v2618, %v2720
      %v2722 = vsub.f32 1.0, %v2721
      %v2723 = vmul.f32 %v2720, %v2722
      %v2724 = vadd.f32 %v2720, %v2723
      %vm2725 = vweird.f32 %v2618
      %vm2726 = vweird.f32 %v2720
      %vm2727 = vmor %vm2725, %vm2726
      %v2728 = vsel %vm2727, %v2720, %v2724
      %v2729 = vand.u32 2147483647, %v2618
      %vm2730 = vcmp.eq.f32.partialorder %v2729, 8.507059e+37
      %v2731 = vand.u32 %v2618, 2147483648
      %v2732 = vor.u32 1.1754944e-38, %v2731
      %v2733 = vsel %vm2730, %v2732, %v2728
      %v2734 = vmul.f32 1.0, %v2733
      %v2735 = vrcp.pop %v2619
      %v2736 = vmul.f32 %v2619, %v2735
      %v2737 = vsub.f32 1.0, %v2736
      %v2738 = vmul.f32 %v2735, %v2737
      %v2739 = vadd.f32 %v2735, %v2738
      %vm2740 = vweird.f32 %v2619
      %vm2741 = vweird.f32 %v2735
      %vm2742 = vmor %vm2740, %vm2741
      %v2743 = vsel %vm2742, %v2735, %v2739
      %v2744 = vand.u32 2147483647, %v2619
      %vm2745 = vcmp.eq.f32.partialorder %v2744, 8.507059e+37
      %v2746 = vand.u32 %v2619, 2147483648
      %v2747 = vor.u32 1.1754944e-38, %v2746
      %v2748 = vsel %vm2745, %v2747, %v2743
      %v2749 = vmul.f32 1.0, %v2748
      %v2750 = vrcp.pop %v2620
      %v2751 = vmul.f32 %v2620, %v2750
      %v2752 = vsub.f32 1.0, %v2751
      %v2753 = vmul.f32 %v2750, %v2752
      %v2754 = vadd.f32 %v2750, %v2753
      %vm2755 = vweird.f32 %v2620
      %vm2756 = vweird.f32 %v2750
      %vm2757 = vmor %vm2755, %vm2756
      %v2758 = vsel %vm2757, %v2750, %v2754
      %v2759 = vand.u32 2147483647, %v2620
      %vm2760 = vcmp.eq.f32.partialorder %v2759, 8.507059e+37
      %v2761 = vand.u32 %v2620, 2147483648
      %v2762 = vor.u32 1.1754944e-38, %v2761
      %v2763 = vsel %vm2760, %v2762, %v2758
      %v2764 = vmul.f32 1.0, %v2763
      %v2765 = vrcp.pop %v2621
      %v2766 = vmul.f32 %v2621, %v2765
      %v2767 = vsub.f32 1.0, %v2766
      %v2768 = vmul.f32 %v2765, %v2767
      %v2769 = vadd.f32 %v2765, %v2768
      %vm2770 = vweird.f32 %v2621
      %vm2771 = vweird.f32 %v2765
      %vm2772 = vmor %vm2770, %vm2771
      %v2773 = vsel %vm2772, %v2765, %v2769
      %v2774 = vand.u32 2147483647, %v2621
      %vm2775 = vcmp.eq.f32.partialorder %v2774, 8.507059e+37
      %v2776 = vand.u32 %v2621, 2147483648
      %v2777 = vor.u32 1.1754944e-38, %v2776
      %v2778 = vsel %vm2775, %v2777, %v2773
      %v2779 = vmul.f32 1.0, %v2778
      %v2780 = vrcp.pop %v2622
      %v2781 = vmul.f32 %v2622, %v2780
      %v2782 = vsub.f32 1.0, %v2781
      %v2783 = vmul.f32 %v2780, %v2782
      %v2784 = vadd.f32 %v2780, %v2783
      %vm2785 = vweird.f32 %v2622
      %vm2786 = vweird.f32 %v2780
      %vm2787 = vmor %vm2785, %vm2786
      %v2788 = vsel %vm2787, %v2780, %v2784
      %v2789 = vand.u32 2147483647, %v2622
      %vm2790 = vcmp.eq.f32.partialorder %v2789, 8.507059e+37
      %v2791 = vand.u32 %v2622, 2147483648
      %v2792 = vor.u32 1.1754944e-38, %v2791
      %v2793 = vsel %vm2790, %v2792, %v2788
      %v2794 = vmul.f32 1.0, %v2793
      %v2795 = vrcp.pop %v2623
      %v2796 = vmul.f32 %v2623, %v2795
      %v2797 = vsub.f32 1.0, %v2796
      %v2798 = vmul.f32 %v2795, %v2797
      %v2799 = vadd.f32 %v2795, %v2798
      %vm2800 = vweird.f32 %v2623
      %vm2801 = vweird.f32 %v2795
      %vm2802 = vmor %vm2800, %vm2801
      %v2803 = vsel %vm2802, %v2795, %v2799
      %v2804 = vand.u32 2147483647, %v2623
      %vm2805 = vcmp.eq.f32.partialorder %v2804, 8.507059e+37
      %v2806 = vand.u32 %v2623, 2147483648
      %v2807 = vor.u32 1.1754944e-38, %v2806
      %v2808 = vsel %vm2805, %v2807, %v2803
      %v2809 = vmul.f32 1.0, %v2808
      %v2810 = vrcp.pop %v2624
      %v2811 = vmul.f32 %v2624, %v2810
      %v2812 = vsub.f32 1.0, %v2811
      %v2813 = vmul.f32 %v2810, %v2812
      %v2814 = vadd.f32 %v2810, %v2813
      %vm2815 = vweird.f32 %v2624
      %vm2816 = vweird.f32 %v2810
      %vm2817 = vmor %vm2815, %vm2816
      %v2818 = vsel %vm2817, %v2810, %v2814
      %v2819 = vand.u32 2147483647, %v2624
      %vm2820 = vcmp.eq.f32.partialorder %v2819, 8.507059e+37
      %v2821 = vand.u32 %v2624, 2147483648
      %v2822 = vor.u32 1.1754944e-38, %v2821
      %v2823 = vsel %vm2820, %v2822, %v2818
      %v2824 = vmul.f32 1.0, %v2823
      %v2825 = vrcp.pop %v2625
      %v2826 = vmul.f32 %v2625, %v2825
      %v2827 = vsub.f32 1.0, %v2826
      %v2828 = vmul.f32 %v2825, %v2827
      %v2829 = vadd.f32 %v2825, %v2828
      %vm2830 = vweird.f32 %v2625
      %vm2831 = vweird.f32 %v2825
      %vm2832 = vmor %vm2830, %vm2831
      %v2833 = vsel %vm2832, %v2825, %v2829
      %v2834 = vand.u32 2147483647, %v2625
      %vm2835 = vcmp.eq.f32.partialorder %v2834, 8.507059e+37
      %v2836 = vand.u32 %v2625, 2147483648
      %v2837 = vor.u32 1.1754944e-38, %v2836
      %v2838 = vsel %vm2835, %v2837, %v2833
      %v2839 = vmul.f32 1.0, %v2838
      %v2840 = vrcp.pop %v2626
      %v2841 = vmul.f32 %v2626, %v2840
      %v2842 = vsub.f32 1.0, %v2841
      %v2843 = vmul.f32 %v2840, %v2842
      %v2844 = vadd.f32 %v2840, %v2843
      %vm2845 = vweird.f32 %v2626
      %vm2846 = vweird.f32 %v2840
      %vm2847 = vmor %vm2845, %vm2846
      %v2848 = vsel %vm2847, %v2840, %v2844
      %v2849 = vand.u32 2147483647, %v2626
      %vm2850 = vcmp.eq.f32.partialorder %v2849, 8.507059e+37
      %v2851 = vand.u32 %v2626, 2147483648
      %v2852 = vor.u32 1.1754944e-38, %v2851
      %v2853 = vsel %vm2850, %v2852, %v2848
      %v2854 = vmul.f32 1.0, %v2853
      %v2855 = vrcp.pop %v2627
      %v2856 = vmul.f32 %v2627, %v2855
      %v2857 = vsub.f32 1.0, %v2856
      %v2858 = vmul.f32 %v2855, %v2857
      %v2859 = vadd.f32 %v2855, %v2858
      %vm2860 = vweird.f32 %v2627
      %vm2861 = vweird.f32 %v2855
      %vm2862 = vmor %vm2860, %vm2861
      %v2863 = vsel %vm2862, %v2855, %v2859
      %v2864 = vand.u32 2147483647, %v2627
      %vm2865 = vcmp.eq.f32.partialorder %v2864, 8.507059e+37
      %v2866 = vand.u32 %v2627, 2147483648
      %v2867 = vor.u32 1.1754944e-38, %v2866
      %v2868 = vsel %vm2865, %v2867, %v2863
      %v2869 = vmul.f32 1.0, %v2868
      %v2870 = vrcp.pop %v2628
      %v2871 = vmul.f32 %v2628, %v2870
      %v2872 = vsub.f32 1.0, %v2871
      %v2873 = vmul.f32 %v2870, %v2872
      %v2874 = vadd.f32 %v2870, %v2873
      %vm2875 = vweird.f32 %v2628
      %vm2876 = vweird.f32 %v2870
      %vm2877 = vmor %vm2875, %vm2876
      %v2878 = vsel %vm2877, %v2870, %v2874
      %v2879 = vand.u32 2147483647, %v2628
      %vm2880 = vcmp.eq.f32.partialorder %v2879, 8.507059e+37
      %v2881 = vand.u32 %v2628, 2147483648
      %v2882 = vor.u32 1.1754944e-38, %v2881
      %v2883 = vsel %vm2880, %v2882, %v2878
      %v2884 = vmul.f32 1.0, %v2883
      %v2885 = vrcp.pop %v2629
      %v2886 = vmul.f32 %v2629, %v2885
      %v2887 = vsub.f32 1.0, %v2886
      %v2888 = vmul.f32 %v2885, %v2887
      %v2889 = vadd.f32 %v2885, %v2888
      %vm2890 = vweird.f32 %v2629
      %vm2891 = vweird.f32 %v2885
      %vm2892 = vmor %vm2890, %vm2891
      %v2893 = vsel %vm2892, %v2885, %v2889
      %v2894 = vand.u32 2147483647, %v2629
      %vm2895 = vcmp.eq.f32.partialorder %v2894, 8.507059e+37
      %v2896 = vand.u32 %v2629, 2147483648
      %v2897 = vor.u32 1.1754944e-38, %v2896
      %v2898 = vsel %vm2895, %v2897, %v2893
      %v2899 = vmul.f32 1.0, %v2898
      %v2900 = vrcp.pop %v2630
      %v2901 = vmul.f32 %v2630, %v2900
      %v2902 = vsub.f32 1.0, %v2901
      %v2903 = vmul.f32 %v2900, %v2902
      %v2904 = vadd.f32 %v2900, %v2903
      %vm2905 = vweird.f32 %v2630
      %vm2906 = vweird.f32 %v2900
      %vm2907 = vmor %vm2905, %vm2906
      %v2908 = vsel %vm2907, %v2900, %v2904
      %v2909 = vand.u32 2147483647, %v2630
      %vm2910 = vcmp.eq.f32.partialorder %v2909, 8.507059e+37
      %v2911 = vand.u32 %v2630, 2147483648
      %v2912 = vor.u32 1.1754944e-38, %v2911
      %v2913 = vsel %vm2910, %v2912, %v2908
      %v2914 = vmul.f32 1.0, %v2913
      %v2915 = vrcp.pop %v2631
      %v2916 = vmul.f32 %v2631, %v2915
      %v2917 = vsub.f32 1.0, %v2916
      %v2918 = vmul.f32 %v2915, %v2917
      %v2919 = vadd.f32 %v2915, %v2918
      %vm2920 = vweird.f32 %v2631
      %vm2921 = vweird.f32 %v2915
      %vm2922 = vmor %vm2920, %vm2921
      %v2923 = vsel %vm2922, %v2915, %v2919
      %v2924 = vand.u32 2147483647, %v2631
      %vm2925 = vcmp.eq.f32.partialorder %v2924, 8.507059e+37
      %v2926 = vand.u32 %v2631, 2147483648
      %v2927 = vor.u32 1.1754944e-38, %v2926
      %v2928 = vsel %vm2925, %v2927, %v2923
      %v2929 = vmul.f32 1.0, %v2928
      %v2930 = vrcp.pop %v2632
      %v2931 = vmul.f32 %v2632, %v2930
      %v2932 = vsub.f32 1.0, %v2931
      %v2933 = vmul.f32 %v2930, %v2932
      %v2934 = vadd.f32 %v2930, %v2933
      %vm2935 = vweird.f32 %v2632
      %vm2936 = vweird.f32 %v2930
      %vm2937 = vmor %vm2935, %vm2936
      %v2938 = vsel %vm2937, %v2930, %v2934
      %v2939 = vand.u32 2147483647, %v2632
      %vm2940 = vcmp.eq.f32.partialorder %v2939, 8.507059e+37
      %v2941 = vand.u32 %v2632, 2147483648
      %v2942 = vor.u32 1.1754944e-38, %v2941
      %v2943 = vsel %vm2940, %v2942, %v2938
      %v2944 = vmul.f32 1.0, %v2943
      %v2945 = vrcp.pop %v2633
      %v2946 = vmul.f32 %v2633, %v2945
      %v2947 = vsub.f32 1.0, %v2946
      %v2948 = vmul.f32 %v2945, %v2947
      %v2949 = vadd.f32 %v2945, %v2948
      %vm2950 = vweird.f32 %v2633
      %vm2951 = vweird.f32 %v2945
      %vm2952 = vmor %vm2950, %vm2951
      %v2953 = vsel %vm2952, %v2945, %v2949
      %v2954 = vand.u32 2147483647, %v2633
      %vm2955 = vcmp.eq.f32.partialorder %v2954, 8.507059e+37
      %v2956 = vand.u32 %v2633, 2147483648
      %v2957 = vor.u32 1.1754944e-38, %v2956
      %v2958 = vsel %vm2955, %v2957, %v2953
      %v2959 = vmul.f32 1.0, %v2958
      %v2960 = vrcp.pop %v2634
      %v2961 = vmul.f32 %v2634, %v2960
      %v2962 = vsub.f32 1.0, %v2961
      %v2963 = vmul.f32 %v2960, %v2962
      %v2964 = vadd.f32 %v2960, %v2963
      %vm2965 = vweird.f32 %v2634
      %vm2966 = vweird.f32 %v2960
      %vm2967 = vmor %vm2965, %vm2966
      %v2968 = vsel %vm2967, %v2960, %v2964
      %v2969 = vand.u32 2147483647, %v2634
      %vm2970 = vcmp.eq.f32.partialorder %v2969, 8.507059e+37
      %v2971 = vand.u32 %v2634, 2147483648
      %v2972 = vor.u32 1.1754944e-38, %v2971
      %v2973 = vsel %vm2970, %v2972, %v2968
      %v2974 = vmul.f32 1.0, %v2973
      %v2975 = vrcp.pop %v2635
      %v2976 = vmul.f32 %v2635, %v2975
      %v2977 = vsub.f32 1.0, %v2976
      %v2978 = vmul.f32 %v2975, %v2977
      %v2979 = vadd.f32 %v2975, %v2978
      %vm2980 = vweird.f32 %v2635
      %vm2981 = vweird.f32 %v2975
      %vm2982 = vmor %vm2980, %vm2981
      %v2983 = vsel %vm2982, %v2975, %v2979
      %v2984 = vand.u32 2147483647, %v2635
      %vm2985 = vcmp.eq.f32.partialorder %v2984, 8.507059e+37
      %v2986 = vand.u32 %v2635, 2147483648
      %v2987 = vor.u32 1.1754944e-38, %v2986
      %v2988 = vsel %vm2985, %v2987, %v2983
      %v2989 = vmul.f32 1.0, %v2988
      %v2990 = vrcp.pop %v2636
      %v2991 = vmul.f32 %v2636, %v2990
      %v2992 = vsub.f32 1.0, %v2991
      %v2993 = vmul.f32 %v2990, %v2992
      %v2994 = vadd.f32 %v2990, %v2993
      %vm2995 = vweird.f32 %v2636
      %vm2996 = vweird.f32 %v2990
      %vm2997 = vmor %vm2995, %vm2996
      %v2998 = vsel %vm2997, %v2990, %v2994
      %v2999 = vand.u32 2147483647, %v2636
      %vm3000 = vcmp.eq.f32.partialorder %v2999, 8.507059e+37
      %v3001 = vand.u32 %v2636, 2147483648
      %v3002 = vor.u32 1.1754944e-38, %v3001
      %v3003 = vsel %vm3000, %v3002, %v2998
      %v3004 = vmul.f32 1.0, %v3003
      %v3005 = vrcp.pop %v2637
      %v3006 = vmul.f32 %v2637, %v3005
      %v3007 = vsub.f32 1.0, %v3006
      %v3008 = vmul.f32 %v3005, %v3007
      %v3009 = vadd.f32 %v3005, %v3008
      %vm3010 = vweird.f32 %v2637
      %vm3011 = vweird.f32 %v3005
      %vm3012 = vmor %vm3010, %vm3011
      %v3013 = vsel %vm3012, %v3005, %v3009
      %v3014 = vand.u32 2147483647, %v2637
      %vm3015 = vcmp.eq.f32.partialorder %v3014, 8.507059e+37
      %v3016 = vand.u32 %v2637, 2147483648
      %v3017 = vor.u32 1.1754944e-38, %v3016
      %v3018 = vsel %vm3015, %v3017, %v3013
      %v3019 = vmul.f32 1.0, %v3018
      %v3020 = vrcp.pop %v2638
      %v3021 = vmul.f32 %v2638, %v3020
      %v3022 = vsub.f32 1.0, %v3021
      %v3023 = vmul.f32 %v3020, %v3022
      %v3024 = vadd.f32 %v3020, %v3023
      %vm3025 = vweird.f32 %v2638
      %vm3026 = vweird.f32 %v3020
      %vm3027 = vmor %vm3025, %vm3026
      %v3028 = vsel %vm3027, %v3020, %v3024
      %v3029 = vand.u32 2147483647, %v2638
      %vm3030 = vcmp.eq.f32.partialorder %v3029, 8.507059e+37
      %v3031 = vand.u32 %v2638, 2147483648
      %v3032 = vor.u32 1.1754944e-38, %v3031
      %v3033 = vsel %vm3030, %v3032, %v3028
      %v3034 = vmul.f32 1.0, %v3033
      %v3035 = vrcp.pop %v2639
      %v3036 = vmul.f32 %v2639, %v3035
      %v3037 = vsub.f32 1.0, %v3036
      %v3038 = vmul.f32 %v3035, %v3037
      %v3039 = vadd.f32 %v3035, %v3038
      %vm3040 = vweird.f32 %v2639
      %vm3041 = vweird.f32 %v3035
      %vm3042 = vmor %vm3040, %vm3041
      %v3043 = vsel %vm3042, %v3035, %v3039
      %v3044 = vand.u32 2147483647, %v2639
      %vm3045 = vcmp.eq.f32.partialorder %v3044, 8.507059e+37
      %v3046 = vand.u32 %v2639, 2147483648
      %v3047 = vor.u32 1.1754944e-38, %v3046
      %v3048 = vsel %vm3045, %v3047, %v3043
      %v3049 = vmul.f32 1.0, %v3048
      %v3050 = vrcp.pop %v2640
      %v3051 = vmul.f32 %v2640, %v3050
      %v3052 = vsub.f32 1.0, %v3051
      %v3053 = vmul.f32 %v3050, %v3052
      %v3054 = vadd.f32 %v3050, %v3053
      %vm3055 = vweird.f32 %v2640
      %vm3056 = vweird.f32 %v3050
      %vm3057 = vmor %vm3055, %vm3056
      %v3058 = vsel %vm3057, %v3050, %v3054
      %v3059 = vand.u32 2147483647, %v2640
      %vm3060 = vcmp.eq.f32.partialorder %v3059, 8.507059e+37
      %v3061 = vand.u32 %v2640, 2147483648
      %v3062 = vor.u32 1.1754944e-38, %v3061
      %v3063 = vsel %vm3060, %v3062, %v3058
      %v3064 = vmul.f32 1.0, %v3063
      %v3065 = vrcp.pop %v2641
      %v3066 = vmul.f32 %v2641, %v3065
      %v3067 = vsub.f32 1.0, %v3066
      %v3068 = vmul.f32 %v3065, %v3067
      %v3069 = vadd.f32 %v3065, %v3068
      %vm3070 = vweird.f32 %v2641
      %vm3071 = vweird.f32 %v3065
      %vm3072 = vmor %vm3070, %vm3071
      %v3073 = vsel %vm3072, %v3065, %v3069
      %v3074 = vand.u32 2147483647, %v2641
      %vm3075 = vcmp.eq.f32.partialorder %v3074, 8.507059e+37
      %v3076 = vand.u32 %v2641, 2147483648
      %v3077 = vor.u32 1.1754944e-38, %v3076
      %v3078 = vsel %vm3075, %v3077, %v3073
      %v3079 = vmul.f32 1.0, %v3078
      %v3080 = vrcp.pop %v2642
      %v3081 = vmul.f32 %v2642, %v3080
      %v3082 = vsub.f32 1.0, %v3081
      %v3083 = vmul.f32 %v3080, %v3082
      %v3084 = vadd.f32 %v3080, %v3083
      %vm3085 = vweird.f32 %v2642
      %vm3086 = vweird.f32 %v3080
      %vm3087 = vmor %vm3085, %vm3086
      %v3088 = vsel %vm3087, %v3080, %v3084
      %v3089 = vand.u32 2147483647, %v2642
      %vm3090 = vcmp.eq.f32.partialorder %v3089, 8.507059e+37
      %v3091 = vand.u32 %v2642, 2147483648
      %v3092 = vor.u32 1.1754944e-38, %v3091
      %v3093 = vsel %vm3090, %v3092, %v3088
      %v3094 = vmul.f32 1.0, %v3093
      %v3095 = vrcp.pop %v2643
      %v3096 = vmul.f32 %v2643, %v3095
      %v3097 = vsub.f32 1.0, %v3096
      %v3098 = vmul.f32 %v3095, %v3097
      %v3099 = vadd.f32 %v3095, %v3098
      %vm3100 = vweird.f32 %v2643
      %vm3101 = vweird.f32 %v3095
      %vm3102 = vmor %vm3100, %vm3101
      %v3103 = vsel %vm3102, %v3095, %v3099
      %v3104 = vand.u32 2147483647, %v2643
      %vm3105 = vcmp.eq.f32.partialorder %v3104, 8.507059e+37
      %v3106 = vand.u32 %v2643, 2147483648
      %v3107 = vor.u32 1.1754944e-38, %v3106
      %v3108 = vsel %vm3105, %v3107, %v3103
      %v3109 = vmul.f32 1.0, %v3108
      %v3110 = vrcp.pop %v2644
      %v3111 = vmul.f32 %v2644, %v3110
      %v3112 = vsub.f32 1.0, %v3111
      %v3113 = vmul.f32 %v3110, %v3112
      %v3114 = vadd.f32 %v3110, %v3113
      %vm3115 = vweird.f32 %v2644
      %vm3116 = vweird.f32 %v3110
      %vm3117 = vmor %vm3115, %vm3116
      %v3118 = vsel %vm3117, %v3110, %v3114
      %v3119 = vand.u32 2147483647, %v2644
      %vm3120 = vcmp.eq.f32.partialorder %v3119, 8.507059e+37
      %v3121 = vand.u32 %v2644, 2147483648
      %v3122 = vor.u32 1.1754944e-38, %v3121
      %v3123 = vsel %vm3120, %v3122, %v3118
      %v3124 = vmul.f32 1.0, %v3123
      %v3125 = vpack.c.bf16 %v2674, %v2659
      %v3126 = vpack.c.bf16 %v2704, %v2689
      %v3127 = vpack.c.bf16 %v2734, %v2719
      %v3128 = vpack.c.bf16 %v2764, %v2749
      %v3129 = vpack.c.bf16 %v2794, %v2779
      %v3130 = vpack.c.bf16 %v2824, %v2809
      %v3131 = vpack.c.bf16 %v2854, %v2839
      %v3132 = vpack.c.bf16 %v2884, %v2869
      %v3133 = vpack.c.bf16 %v2914, %v2899
      %v3134 = vpack.c.bf16 %v2944, %v2929
      %v3135 = vpack.c.bf16 %v2974, %v2959
      %v3136 = vpack.c.bf16 %v3004, %v2989
      %v3137 = vpack.c.bf16 %v3034, %v3019
      %v3138 = vpack.c.bf16 %v3064, %v3049
      %v3139 = vpack.c.bf16 %v3094, %v3079
      %v3140 = vpack.c.bf16 %v3124, %v3109
      %v3141 = vld [vmem:[%s6] sm:$0xf]
      %v3142 = vld [vmem:[%s6 + $0x4] sm:$0xf]
      %v3143 = vld [vmem:[%s6 + $0x8] sm:$0xf]
      %v3144 = vld [vmem:[%s6 + $0xc] sm:$0xf]
      %v3145 = vld [vmem:[%s6 + $0x10] sm:$0xf]
      %v3146 = vld [vmem:[%s6 + $0x14] sm:$0xf]
      %v3147 = vld [vmem:[%s6 + $0x18] sm:$0xf]
      %v3148 = vld [vmem:[%s6 + $0x1c] sm:$0xf]
      %v3149 = vld [vmem:[%s6 + $0x20] sm:$0xf]
      %v3150 = vld [vmem:[%s6 + $0x24] sm:$0xf]
      %v3151 = vld [vmem:[%s6 + $0x28] sm:$0xf]
      %v3152 = vld [vmem:[%s6 + $0x2c] sm:$0xf]
      %v3153 = vld [vmem:[%s6 + $0x30] sm:$0xf]
      %v3154 = vld [vmem:[%s6 + $0x34] sm:$0xf]
      %v3155 = vld [vmem:[%s6 + $0x38] sm:$0xf]
      %v3156 = vld [vmem:[%s6 + $0x3c] sm:$0xf]
      %v3157 = vld [vmem:[%s7] sm:$0x1]
      %v3159 = vperm.slane %v3157, 0
      %v3177 = vunpack.c.l.b16 %v3141
      %v3178 = vunpack.c.l.b16 %v3142
      %v3179 = vunpack.c.l.b16 %v3143
      %v3180 = vunpack.c.l.b16 %v3144
      %v3181 = vunpack.c.l.b16 %v3145
      %v3182 = vunpack.c.l.b16 %v3146
      %v3183 = vunpack.c.l.b16 %v3147
      %v3184 = vunpack.c.l.b16 %v3148
      %v3185 = vunpack.c.l.b16 %v3149
      %v3186 = vunpack.c.l.b16 %v3150
      %v3187 = vunpack.c.l.b16 %v3151
      %v3188 = vunpack.c.l.b16 %v3152
      %v3189 = vunpack.c.l.b16 %v3153
      %v3190 = vunpack.c.l.b16 %v3154
      %v3191 = vunpack.c.l.b16 %v3155
      %v3192 = vunpack.c.l.b16 %v3156
      %v3193 = vpack.c.b16 %v3178, %v3177
      %v3194 = vpack.c.b16 %v3180, %v3179
      %v3195 = vpack.c.b16 %v3182, %v3181
      %v3196 = vpack.c.b16 %v3184, %v3183
      %v3197 = vpack.c.b16 %v3186, %v3185
      %v3198 = vpack.c.b16 %v3188, %v3187
      %v3199 = vpack.c.b16 %v3190, %v3189
      %v3200 = vpack.c.b16 %v3192, %v3191
      %3209 = vmatpush.bf16.msra.mxu0 %v3200
      %3210 = vmatpush.bf16.msra.mxu0 %v3199
      %3211 = vmatpush.bf16.msra.mxu0 %v3198
      %3212 = vmatpush.bf16.msra.mxu0 %v3197
      %3213 = vmatpush.bf16.msra.mxu0 %v3196
      %3214 = vmatpush.bf16.msra.mxu0 %v3195
      %3215 = vmatpush.bf16.msra.mxu0 %v3194
      %3216 = vmatpush.bf16.msra.mxu0 %v3193
      %3217 = vmatmul.bf16.gmra.mxu0 %v3125
      %v3218 = vpop.f32.mrf.mxu0
      %v3219 = vadd.f32 %v3159, %v3218
      %v3220 = vpop.f32.mrf.mxu0
      %v3221 = vadd.f32 %v3159, %v3220
      %3222 = vmatmul.bf16.gmra.mxu0 %v3126
      %v3223 = vpop.f32.mrf.mxu0
      %v3224 = vadd.f32 %v3159, %v3223
      %v3225 = vpop.f32.mrf.mxu0
      %v3226 = vadd.f32 %v3159, %v3225
      %3227 = vmatmul.bf16.gmra.mxu0 %v3127
      %v3228 = vpop.f32.mrf.mxu0
      %v3229 = vadd.f32 %v3159, %v3228
      %v3230 = vpop.f32.mrf.mxu0
      %v3231 = vadd.f32 %v3159, %v3230
      %3232 = vmatmul.bf16.gmra.mxu0 %v3128
      %v3233 = vpop.f32.mrf.mxu0
      %v3234 = vadd.f32 %v3159, %v3233
      %v3235 = vpop.f32.mrf.mxu0
      %v3236 = vadd.f32 %v3159, %v3235
      %3237 = vmatmul.bf16.gmra.mxu0 %v3129
      %v3238 = vpop.f32.mrf.mxu0
      %v3239 = vadd.f32 %v3159, %v3238
      %v3240 = vpop.f32.mrf.mxu0
      %v3241 = vadd.f32 %v3159, %v3240
      %3242 = vmatmul.bf16.gmra.mxu0 %v3130
      %v3243 = vpop.f32.mrf.mxu0
      %v3244 = vadd.f32 %v3159, %v3243
      %v3245 = vpop.f32.mrf.mxu0
      %v3246 = vadd.f32 %v3159, %v3245
      %3247 = vmatmul.bf16.gmra.mxu0 %v3131
      %v3248 = vpop.f32.mrf.mxu0
      %v3249 = vadd.f32 %v3159, %v3248
      %v3250 = vpop.f32.mrf.mxu0
      %v3251 = vadd.f32 %v3159, %v3250
      %3252 = vmatmul.bf16.gmra.mxu0 %v3132
      %v3253 = vpop.f32.mrf.mxu0
      %v3254 = vadd.f32 %v3159, %v3253
      %v3255 = vpop.f32.mrf.mxu0
      %v3256 = vadd.f32 %v3159, %v3255
      %3257 = vmatmul.bf16.gmra.mxu0 %v3133
      %v3258 = vpop.f32.mrf.mxu0
      %v3259 = vadd.f32 %v3159, %v3258
      %v3260 = vpop.f32.mrf.mxu0
      %v3261 = vadd.f32 %v3159, %v3260
      %3262 = vmatmul.bf16.gmra.mxu0 %v3134
      %v3263 = vpop.f32.mrf.mxu0
      %v3264 = vadd.f32 %v3159, %v3263
      %v3265 = vpop.f32.mrf.mxu0
      %v3266 = vadd.f32 %v3159, %v3265
      %3267 = vmatmul.bf16.gmra.mxu0 %v3135
      %v3268 = vpop.f32.mrf.mxu0
      %v3269 = vadd.f32 %v3159, %v3268
      %v3270 = vpop.f32.mrf.mxu0
      %v3271 = vadd.f32 %v3159, %v3270
      %3272 = vmatmul.bf16.gmra.mxu0 %v3136
      %v3273 = vpop.f32.mrf.mxu0
      %v3274 = vadd.f32 %v3159, %v3273
      %v3275 = vpop.f32.mrf.mxu0
      %v3276 = vadd.f32 %v3159, %v3275
      %3277 = vmatmul.bf16.gmra.mxu0 %v3137
      %v3278 = vpop.f32.mrf.mxu0
      %v3279 = vadd.f32 %v3159, %v3278
      %v3280 = vpop.f32.mrf.mxu0
      %v3281 = vadd.f32 %v3159, %v3280
      %3282 = vmatmul.bf16.gmra.mxu0 %v3138
      %v3283 = vpop.f32.mrf.mxu0
      %v3284 = vadd.f32 %v3159, %v3283
      %v3285 = vpop.f32.mrf.mxu0
      %v3286 = vadd.f32 %v3159, %v3285
      %3287 = vmatmul.bf16.gmra.mxu0 %v3139
      %v3288 = vpop.f32.mrf.mxu0
      %v3289 = vadd.f32 %v3159, %v3288
      %v3290 = vpop.f32.mrf.mxu0
      %v3291 = vadd.f32 %v3159, %v3290
      %3292 = vmatmul.bf16.gmra.mxu0 %v3140
      %v3293 = vpop.f32.mrf.mxu0
      %v3294 = vadd.f32 %v3159, %v3293
      %v3295 = vpop.f32.mrf.mxu0
      %v3296 = vadd.f32 %v3159, %v3295
      %3297 = vdwg.mxu0
      %3298 = vmax.xlane.f32.xlu0 %v3219
      %v3299 = vpop.xlane.xlu0 %3298
      %3300 = vmax.xlane.f32.xlu0 %v3221
      %v3301 = vpop.xlane.xlu0 %3300
      %3302 = vmax.xlane.f32.xlu0 %v3224
      %v3303 = vpop.xlane.xlu0 %3302
      %3304 = vmax.xlane.f32.xlu0 %v3226
      %v3305 = vpop.xlane.xlu0 %3304
      %3306 = vmax.xlane.f32.xlu0 %v3229
      %v3307 = vpop.xlane.xlu0 %3306
      %3308 = vmax.xlane.f32.xlu0 %v3231
      %v3309 = vpop.xlane.xlu0 %3308
      %3310 = vmax.xlane.f32.xlu0 %v3234
      %v3311 = vpop.xlane.xlu0 %3310
      %3312 = vmax.xlane.f32.xlu0 %v3236
      %v3313 = vpop.xlane.xlu0 %3312
      %3314 = vmax.xlane.f32.xlu0 %v3239
      %v3315 = vpop.xlane.xlu0 %3314
      %3316 = vmax.xlane.f32.xlu0 %v3241
      %v3317 = vpop.xlane.xlu0 %3316
      %3318 = vmax.xlane.f32.xlu0 %v3244
      %v3319 = vpop.xlane.xlu0 %3318
      %3320 = vmax.xlane.f32.xlu0 %v3246
      %v3321 = vpop.xlane.xlu0 %3320
      %3322 = vmax.xlane.f32.xlu0 %v3249
      %v3323 = vpop.xlane.xlu0 %3322
      %3324 = vmax.xlane.f32.xlu0 %v3251
      %v3325 = vpop.xlane.xlu0 %3324
      %3326 = vmax.xlane.f32.xlu0 %v3254
      %v3327 = vpop.xlane.xlu0 %3326
      %3328 = vmax.xlane.f32.xlu0 %v3256
      %v3329 = vpop.xlane.xlu0 %3328
      %3330 = vmax.xlane.f32.xlu0 %v3259
      %v3331 = vpop.xlane.xlu0 %3330
      %3332 = vmax.xlane.f32.xlu0 %v3261
      %v3333 = vpop.xlane.xlu0 %3332
      %3334 = vmax.xlane.f32.xlu0 %v3264
      %v3335 = vpop.xlane.xlu0 %3334
      %3336 = vmax.xlane.f32.xlu0 %v3266
      %v3337 = vpop.xlane.xlu0 %3336
      %3338 = vmax.xlane.f32.xlu0 %v3269
      %v3339 = vpop.xlane.xlu0 %3338
      %3340 = vmax.xlane.f32.xlu0 %v3271
      %v3341 = vpop.xlane.xlu0 %3340
      %3342 = vmax.xlane.f32.xlu0 %v3274
      %v3343 = vpop.xlane.xlu0 %3342
      %3344 = vmax.xlane.f32.xlu0 %v3276
      %v3345 = vpop.xlane.xlu0 %3344
      %3346 = vmax.xlane.f32.xlu0 %v3279
      %v3347 = vpop.xlane.xlu0 %3346
      %3348 = vmax.xlane.f32.xlu0 %v3281
      %v3349 = vpop.xlane.xlu0 %3348
      %3350 = vmax.xlane.f32.xlu0 %v3284
      %v3351 = vpop.xlane.xlu0 %3350
      %3352 = vmax.xlane.f32.xlu0 %v3286
      %v3353 = vpop.xlane.xlu0 %3352
      %3354 = vmax.xlane.f32.xlu0 %v3289
      %v3355 = vpop.xlane.xlu0 %3354
      %3356 = vmax.xlane.f32.xlu0 %v3291
      %v3357 = vpop.xlane.xlu0 %3356
      %3358 = vmax.xlane.f32.xlu0 %v3294
      %v3359 = vpop.xlane.xlu0 %3358
      %3360 = vmax.xlane.f32.xlu0 %v3296
      %v3361 = vpop.xlane.xlu0 %3360
      %v3362 = vsub.f32 %v3219, %v3299
      %v3363 = vsub.f32 %v3221, %v3301
      %v3364 = vsub.f32 %v3224, %v3303
      %v3365 = vsub.f32 %v3226, %v3305
      %v3366 = vsub.f32 %v3229, %v3307
      %v3367 = vsub.f32 %v3231, %v3309
      %v3368 = vsub.f32 %v3234, %v3311
      %v3369 = vsub.f32 %v3236, %v3313
      %v3370 = vsub.f32 %v3239, %v3315
      %v3371 = vsub.f32 %v3241, %v3317
      %v3372 = vsub.f32 %v3244, %v3319
      %v3373 = vsub.f32 %v3246, %v3321
      %v3374 = vsub.f32 %v3249, %v3323
      %v3375 = vsub.f32 %v3251, %v3325
      %v3376 = vsub.f32 %v3254, %v3327
      %v3377 = vsub.f32 %v3256, %v3329
      %v3378 = vsub.f32 %v3259, %v3331
      %v3379 = vsub.f32 %v3261, %v3333
      %v3380 = vsub.f32 %v3264, %v3335
      %v3381 = vsub.f32 %v3266, %v3337
      %v3382 = vsub.f32 %v3269, %v3339
      %v3383 = vsub.f32 %v3271, %v3341
      %v3384 = vsub.f32 %v3274, %v3343
      %v3385 = vsub.f32 %v3276, %v3345
      %v3386 = vsub.f32 %v3279, %v3347
      %v3387 = vsub.f32 %v3281, %v3349
      %v3388 = vsub.f32 %v3284, %v3351
      %v3389 = vsub.f32 %v3286, %v3353
      %v3390 = vsub.f32 %v3289, %v3355
      %v3391 = vsub.f32 %v3291, %v3357
      %v3392 = vsub.f32 %v3294, %v3359
      %v3393 = vsub.f32 %v3296, %v3361
      %v3394 = vmul.f32 %v3362, 1.442695
      %v3395 = vpow.pop %v3394
      %v3396 = vmul.f32 %v3363, 1.442695
      %v3397 = vpow.pop %v3396
      %v3398 = vmul.f32 %v3364, 1.442695
      %v3399 = vpow.pop %v3398
      %v3400 = vmul.f32 %v3365, 1.442695
      %v3401 = vpow.pop %v3400
      %v3402 = vmul.f32 %v3366, 1.442695
      %v3403 = vpow.pop %v3402
      %v3404 = vmul.f32 %v3367, 1.442695
      %v3405 = vpow.pop %v3404
      %v3406 = vmul.f32 %v3368, 1.442695
      %v3407 = vpow.pop %v3406
      %v3408 = vmul.f32 %v3369, 1.442695
      %v3409 = vpow.pop %v3408
      %v3410 = vmul.f32 %v3370, 1.442695
      %v3411 = vpow.pop %v3410
      %v3412 = vmul.f32 %v3371, 1.442695
      %v3413 = vpow.pop %v3412
      %v3414 = vmul.f32 %v3372, 1.442695
      %v3415 = vpow.pop %v3414
      %v3416 = vmul.f32 %v3373, 1.442695
      %v3417 = vpow.pop %v3416
      %v3418 = vmul.f32 %v3374, 1.442695
      %v3419 = vpow.pop %v3418
      %v3420 = vmul.f32 %v3375, 1.442695
      %v3421 = vpow.pop %v3420
      %v3422 = vmul.f32 %v3376, 1.442695
      %v3423 = vpow.pop %v3422
      %v3424 = vmul.f32 %v3377, 1.442695
      %v3425 = vpow.pop %v3424
      %v3426 = vmul.f32 %v3378, 1.442695
      %v3427 = vpow.pop %v3426
      %v3428 = vmul.f32 %v3379, 1.442695
      %v3429 = vpow.pop %v3428
      %v3430 = vmul.f32 %v3380, 1.442695
      %v3431 = vpow.pop %v3430
      %v3432 = vmul.f32 %v3381, 1.442695
      %v3433 = vpow.pop %v3432
      %v3434 = vmul.f32 %v3382, 1.442695
      %v3435 = vpow.pop %v3434
      %v3436 = vmul.f32 %v3383, 1.442695
      %v3437 = vpow.pop %v3436
      %v3438 = vmul.f32 %v3384, 1.442695
      %v3439 = vpow.pop %v3438
      %v3440 = vmul.f32 %v3385, 1.442695
      %v3441 = vpow.pop %v3440
      %v3442 = vmul.f32 %v3386, 1.442695
      %v3443 = vpow.pop %v3442
      %v3444 = vmul.f32 %v3387, 1.442695
      %v3445 = vpow.pop %v3444
      %v3446 = vmul.f32 %v3388, 1.442695
      %v3447 = vpow.pop %v3446
      %v3448 = vmul.f32 %v3389, 1.442695
      %v3449 = vpow.pop %v3448
      %v3450 = vmul.f32 %v3390, 1.442695
      %v3451 = vpow.pop %v3450
      %v3452 = vmul.f32 %v3391, 1.442695
      %v3453 = vpow.pop %v3452
      %v3454 = vmul.f32 %v3392, 1.442695
      %v3455 = vpow.pop %v3454
      %v3456 = vmul.f32 %v3393, 1.442695
      %v3457 = vpow.pop %v3456
      %3458 = vadd.xlane.f32.xlu0 %v3395
      %v3459 = vpop.xlane.xlu0 %3458
      %3460 = vadd.xlane.f32.xlu0 %v3397
      %v3461 = vpop.xlane.xlu0 %3460
      %3462 = vadd.xlane.f32.xlu0 %v3399
      %v3463 = vpop.xlane.xlu0 %3462
      %3464 = vadd.xlane.f32.xlu0 %v3401
      %v3465 = vpop.xlane.xlu0 %3464
      %3466 = vadd.xlane.f32.xlu0 %v3403
      %v3467 = vpop.xlane.xlu0 %3466
      %3468 = vadd.xlane.f32.xlu0 %v3405
      %v3469 = vpop.xlane.xlu0 %3468
      %3470 = vadd.xlane.f32.xlu0 %v3407
      %v3471 = vpop.xlane.xlu0 %3470
      %3472 = vadd.xlane.f32.xlu0 %v3409
      %v3473 = vpop.xlane.xlu0 %3472
      %3474 = vadd.xlane.f32.xlu0 %v3411
      %v3475 = vpop.xlane.xlu0 %3474
      %3476 = vadd.xlane.f32.xlu0 %v3413
      %v3477 = vpop.xlane.xlu0 %3476
      %3478 = vadd.xlane.f32.xlu0 %v3415
      %v3479 = vpop.xlane.xlu0 %3478
      %3480 = vadd.xlane.f32.xlu0 %v3417
      %v3481 = vpop.xlane.xlu0 %3480
      %3482 = vadd.xlane.f32.xlu0 %v3419
      %v3483 = vpop.xlane.xlu0 %3482
      %3484 = vadd.xlane.f32.xlu0 %v3421
      %v3485 = vpop.xlane.xlu0 %3484
      %3486 = vadd.xlane.f32.xlu0 %v3423
      %v3487 = vpop.xlane.xlu0 %3486
      %3488 = vadd.xlane.f32.xlu0 %v3425
      %v3489 = vpop.xlane.xlu0 %3488
      %3490 = vadd.xlane.f32.xlu0 %v3427
      %v3491 = vpop.xlane.xlu0 %3490
      %3492 = vadd.xlane.f32.xlu0 %v3429
      %v3493 = vpop.xlane.xlu0 %3492
      %3494 = vadd.xlane.f32.xlu0 %v3431
      %v3495 = vpop.xlane.xlu0 %3494
      %3496 = vadd.xlane.f32.xlu0 %v3433
      %v3497 = vpop.xlane.xlu0 %3496
      %3498 = vadd.xlane.f32.xlu0 %v3435
      %v3499 = vpop.xlane.xlu0 %3498
      %3500 = vadd.xlane.f32.xlu0 %v3437
      %v3501 = vpop.xlane.xlu0 %3500
      %3502 = vadd.xlane.f32.xlu0 %v3439
      %v3503 = vpop.xlane.xlu0 %3502
      %3504 = vadd.xlane.f32.xlu0 %v3441
      %v3505 = vpop.xlane.xlu0 %3504
      %3506 = vadd.xlane.f32.xlu0 %v3443
      %v3507 = vpop.xlane.xlu0 %3506
      %3508 = vadd.xlane.f32.xlu0 %v3445
      %v3509 = vpop.xlane.xlu0 %3508
      %3510 = vadd.xlane.f32.xlu0 %v3447
      %v3511 = vpop.xlane.xlu0 %3510
      %3512 = vadd.xlane.f32.xlu0 %v3449
      %v3513 = vpop.xlane.xlu0 %3512
      %3514 = vadd.xlane.f32.xlu0 %v3451
      %v3515 = vpop.xlane.xlu0 %3514
      %3516 = vadd.xlane.f32.xlu0 %v3453
      %v3517 = vpop.xlane.xlu0 %3516
      %3518 = vadd.xlane.f32.xlu0 %v3455
      %v3519 = vpop.xlane.xlu0 %3518
      %3520 = vadd.xlane.f32.xlu0 %v3457
      %v3521 = vpop.xlane.xlu0 %3520
      %v3522 = vlog2.pop %v3459
      %v3523 = vmul.f32 %v3522, 0.6931472
      %v3524 = vlog2.pop %v3461
      %v3525 = vmul.f32 %v3524, 0.6931472
      %v3526 = vlog2.pop %v3463
      %v3527 = vmul.f32 %v3526, 0.6931472
      %v3528 = vlog2.pop %v3465
      %v3529 = vmul.f32 %v3528, 0.6931472
      %v3530 = vlog2.pop %v3467
      %v3531 = vmul.f32 %v3530, 0.6931472
      %v3532 = vlog2.pop %v3469
      %v3533 = vmul.f32 %v3532, 0.6931472
      %v3534 = vlog2.pop %v3471
      %v3535 = vmul.f32 %v3534, 0.6931472
      %v3536 = vlog2.pop %v3473
      %v3537 = vmul.f32 %v3536, 0.6931472
      %v3538 = vlog2.pop %v3475
      %v3539 = vmul.f32 %v3538, 0.6931472
      %v3540 = vlog2.pop %v3477
      %v3541 = vmul.f32 %v3540, 0.6931472
      %v3542 = vlog2.pop %v3479
      %v3543 = vmul.f32 %v3542, 0.6931472
      %v3544 = vlog2.pop %v3481
      %v3545 = vmul.f32 %v3544, 0.6931472
      %v3546 = vlog2.pop %v3483
      %v3547 = vmul.f32 %v3546, 0.6931472
      %v3548 = vlog2.pop %v3485
      %v3549 = vmul.f32 %v3548, 0.6931472
      %v3550 = vlog2.pop %v3487
      %v3551 = vmul.f32 %v3550, 0.6931472
      %v3552 = vlog2.pop %v3489
      %v3553 = vmul.f32 %v3552, 0.6931472
      %v3554 = vlog2.pop %v3491
      %v3555 = vmul.f32 %v3554, 0.6931472
      %v3556 = vlog2.pop %v3493
      %v3557 = vmul.f32 %v3556, 0.6931472
      %v3558 = vlog2.pop %v3495
      %v3559 = vmul.f32 %v3558, 0.6931472
      %v3560 = vlog2.pop %v3497
      %v3561 = vmul.f32 %v3560, 0.6931472
      %v3562 = vlog2.pop %v3499
      %v3563 = vmul.f32 %v3562, 0.6931472
      %v3564 = vlog2.pop %v3501
      %v3565 = vmul.f32 %v3564, 0.6931472
      %v3566 = vlog2.pop %v3503
      %v3567 = vmul.f32 %v3566, 0.6931472
      %v3568 = vlog2.pop %v3505
      %v3569 = vmul.f32 %v3568, 0.6931472
      %v3570 = vlog2.pop %v3507
      %v3571 = vmul.f32 %v3570, 0.6931472
      %v3572 = vlog2.pop %v3509
      %v3573 = vmul.f32 %v3572, 0.6931472
      %v3574 = vlog2.pop %v3511
      %v3575 = vmul.f32 %v3574, 0.6931472
      %v3576 = vlog2.pop %v3513
      %v3577 = vmul.f32 %v3576, 0.6931472
      %v3578 = vlog2.pop %v3515
      %v3579 = vmul.f32 %v3578, 0.6931472
      %v3580 = vlog2.pop %v3517
      %v3581 = vmul.f32 %v3580, 0.6931472
      %v3582 = vlog2.pop %v3519
      %v3583 = vmul.f32 %v3582, 0.6931472
      %v3584 = vlog2.pop %v3521
      %v3585 = vmul.f32 %v3584, 0.6931472
      %v3586 = vadd.f32 %v3299, %v3523
      %v3587 = vadd.f32 %v3301, %v3525
      %v3588 = vadd.f32 %v3303, %v3527
      %v3589 = vadd.f32 %v3305, %v3529
      %v3590 = vadd.f32 %v3307, %v3531
      %v3591 = vadd.f32 %v3309, %v3533
      %v3592 = vadd.f32 %v3311, %v3535
      %v3593 = vadd.f32 %v3313, %v3537
      %v3594 = vadd.f32 %v3315, %v3539
      %v3595 = vadd.f32 %v3317, %v3541
      %v3596 = vadd.f32 %v3319, %v3543
      %v3597 = vadd.f32 %v3321, %v3545
      %v3598 = vadd.f32 %v3323, %v3547
      %v3599 = vadd.f32 %v3325, %v3549
      %v3600 = vadd.f32 %v3327, %v3551
      %v3601 = vadd.f32 %v3329, %v3553
      %v3602 = vadd.f32 %v3331, %v3555
      %v3603 = vadd.f32 %v3333, %v3557
      %v3604 = vadd.f32 %v3335, %v3559
      %v3605 = vadd.f32 %v3337, %v3561
      %v3606 = vadd.f32 %v3339, %v3563
      %v3607 = vadd.f32 %v3341, %v3565
      %v3608 = vadd.f32 %v3343, %v3567
      %v3609 = vadd.f32 %v3345, %v3569
      %v3610 = vadd.f32 %v3347, %v3571
      %v3611 = vadd.f32 %v3349, %v3573
      %v3612 = vadd.f32 %v3351, %v3575
      %v3613 = vadd.f32 %v3353, %v3577
      %v3614 = vadd.f32 %v3355, %v3579
      %v3615 = vadd.f32 %v3357, %v3581
      %v3616 = vadd.f32 %v3359, %v3583
      %v3617 = vadd.f32 %v3361, %v3585
      %v3618 = vsub.f32 %v3219, %v3586
      %v3619 = vsub.f32 %v3221, %v3587
      %v3620 = vsub.f32 %v3224, %v3588
      %v3621 = vsub.f32 %v3226, %v3589
      %v3622 = vsub.f32 %v3229, %v3590
      %v3623 = vsub.f32 %v3231, %v3591
      %v3624 = vsub.f32 %v3234, %v3592
      %v3625 = vsub.f32 %v3236, %v3593
      %v3626 = vsub.f32 %v3239, %v3594
      %v3627 = vsub.f32 %v3241, %v3595
      %v3628 = vsub.f32 %v3244, %v3596
      %v3629 = vsub.f32 %v3246, %v3597
      %v3630 = vsub.f32 %v3249, %v3598
      %v3631 = vsub.f32 %v3251, %v3599
      %v3632 = vsub.f32 %v3254, %v3600
      %v3633 = vsub.f32 %v3256, %v3601
      %v3634 = vsub.f32 %v3259, %v3602
      %v3635 = vsub.f32 %v3261, %v3603
      %v3636 = vsub.f32 %v3264, %v3604
      %v3637 = vsub.f32 %v3266, %v3605
      %v3638 = vsub.f32 %v3269, %v3606
      %v3639 = vsub.f32 %v3271, %v3607
      %v3640 = vsub.f32 %v3274, %v3608
      %v3641 = vsub.f32 %v3276, %v3609
      %v3642 = vsub.f32 %v3279, %v3610
      %v3643 = vsub.f32 %v3281, %v3611
      %v3644 = vsub.f32 %v3284, %v3612
      %v3645 = vsub.f32 %v3286, %v3613
      %v3646 = vsub.f32 %v3289, %v3614
      %v3647 = vsub.f32 %v3291, %v3615
      %v3648 = vsub.f32 %v3294, %v3616
      %v3649 = vsub.f32 %v3296, %v3617
      %v3650 = vlaneseq
      %v3651 = vand.u32 %v3650, 127
      %v3652 = vld [vmem:[%s325] sm:$0xff]
      %v3653 = vld [vmem:[%s325 + $0x8] sm:$0xff]
      %v3654 = vld [vmem:[%s325 + $0x10] sm:$0xff]
      %v3655 = vld [vmem:[%s325 + $0x18] sm:$0xff]
      %v3656 = vld [vmem:[%s325 + $0x20] sm:$0xff]
      %v3657 = vld [vmem:[%s325 + $0x28] sm:$0xff]
      %v3658 = vld [vmem:[%s325 + $0x30] sm:$0xff]
      %v3659 = vld [vmem:[%s325 + $0x38] sm:$0xff]
      %v3660 = vld [vmem:[%s325 + $0x40] sm:$0xff]
      %v3661 = vld [vmem:[%s325 + $0x48] sm:$0xff]
      %v3662 = vld [vmem:[%s325 + $0x50] sm:$0xff]
      %v3663 = vld [vmem:[%s325 + $0x58] sm:$0xff]
      %v3664 = vld [vmem:[%s325 + $0x60] sm:$0xff]
      %v3665 = vld [vmem:[%s325 + $0x68] sm:$0xff]
      %v3666 = vld [vmem:[%s325 + $0x70] sm:$0xff]
      %v3667 = vld [vmem:[%s325 + $0x78] sm:$0xff]
      %v3668 = vld [vmem:[%s325 + $0x80] sm:$0xff]
      %v3669 = vld [vmem:[%s325 + $0x88] sm:$0xff]
      %v3670 = vld [vmem:[%s325 + $0x90] sm:$0xff]
      %v3671 = vld [vmem:[%s325 + $0x98] sm:$0xff]
      %v3672 = vld [vmem:[%s325 + $0xa0] sm:$0xff]
      %v3673 = vld [vmem:[%s325 + $0xa8] sm:$0xff]
      %v3674 = vld [vmem:[%s325 + $0xb0] sm:$0xff]
      %v3675 = vld [vmem:[%s325 + $0xb8] sm:$0xff]
      %v3676 = vld [vmem:[%s325 + $0xc0] sm:$0xff]
      %v3677 = vld [vmem:[%s325 + $0xc8] sm:$0xff]
      %v3678 = vld [vmem:[%s325 + $0xd0] sm:$0xff]
      %v3679 = vld [vmem:[%s325 + $0xd8] sm:$0xff]
      %v3680 = vld [vmem:[%s325 + $0xe0] sm:$0xff]
      %v3681 = vld [vmem:[%s325 + $0xe8] sm:$0xff]
      %v3682 = vld [vmem:[%s325 + $0xf0] sm:$0xff]
      %v3683 = vld [vmem:[%s325 + $0xf8] sm:$0xff]
      %3684 = vset.pattern.permute.xlu0 0
      %3685 = vperm.xlu0 %3684, %v3652
      %v3686 = vpop.permute.xlu0 %3685
      %3687 = vset.pattern.permute.xlu0 0
      %3688 = vperm.xlu0 %3687, %v3653
      %v3689 = vpop.permute.xlu0 %3688
      %3690 = vset.pattern.permute.xlu0 0
      %3691 = vperm.xlu0 %3690, %v3654
      %v3692 = vpop.permute.xlu0 %3691
      %3693 = vset.pattern.permute.xlu0 0
      %3694 = vperm.xlu0 %3693, %v3655
      %v3695 = vpop.permute.xlu0 %3694
      %3696 = vset.pattern.permute.xlu0 0
      %3697 = vperm.xlu0 %3696, %v3656
      %v3698 = vpop.permute.xlu0 %3697
      %3699 = vset.pattern.permute.xlu0 0
      %3700 = vperm.xlu0 %3699, %v3657
      %v3701 = vpop.permute.xlu0 %3700
      %3702 = vset.pattern.permute.xlu0 0
      %3703 = vperm.xlu0 %3702, %v3658
      %v3704 = vpop.permute.xlu0 %3703
      %3705 = vset.pattern.permute.xlu0 0
      %3706 = vperm.xlu0 %3705, %v3659
      %v3707 = vpop.permute.xlu0 %3706
      %3708 = vset.pattern.permute.xlu0 0
      %3709 = vperm.xlu0 %3708, %v3660
      %v3710 = vpop.permute.xlu0 %3709
      %3711 = vset.pattern.permute.xlu0 0
      %3712 = vperm.xlu0 %3711, %v3661
      %v3713 = vpop.permute.xlu0 %3712
      %3714 = vset.pattern.permute.xlu0 0
      %3715 = vperm.xlu0 %3714, %v3662
      %v3716 = vpop.permute.xlu0 %3715
      %3717 = vset.pattern.permute.xlu0 0
      %3718 = vperm.xlu0 %3717, %v3663
      %v3719 = vpop.permute.xlu0 %3718
      %3720 = vset.pattern.permute.xlu0 0
      %3721 = vperm.xlu0 %3720, %v3664
      %v3722 = vpop.permute.xlu0 %3721
      %3723 = vset.pattern.permute.xlu0 0
      %3724 = vperm.xlu0 %3723, %v3665
      %v3725 = vpop.permute.xlu0 %3724
      %3726 = vset.pattern.permute.xlu0 0
      %3727 = vperm.xlu0 %3726, %v3666
      %v3728 = vpop.permute.xlu0 %3727
      %3729 = vset.pattern.permute.xlu0 0
      %3730 = vperm.xlu0 %3729, %v3667
      %v3731 = vpop.permute.xlu0 %3730
      %3732 = vset.pattern.permute.xlu0 0
      %3733 = vperm.xlu0 %3732, %v3668
      %v3734 = vpop.permute.xlu0 %3733
      %3735 = vset.pattern.permute.xlu0 0
      %3736 = vperm.xlu0 %3735, %v3669
      %v3737 = vpop.permute.xlu0 %3736
      %3738 = vset.pattern.permute.xlu0 0
      %3739 = vperm.xlu0 %3738, %v3670
      %v3740 = vpop.permute.xlu0 %3739
      %3741 = vset.pattern.permute.xlu0 0
      %3742 = vperm.xlu0 %3741, %v3671
      %v3743 = vpop.permute.xlu0 %3742
      %3744 = vset.pattern.permute.xlu0 0
      %3745 = vperm.xlu0 %3744, %v3672
      %v3746 = vpop.permute.xlu0 %3745
      %3747 = vset.pattern.permute.xlu0 0
      %3748 = vperm.xlu0 %3747, %v3673
      %v3749 = vpop.permute.xlu0 %3748
      %3750 = vset.pattern.permute.xlu0 0
      %3751 = vperm.xlu0 %3750, %v3674
      %v3752 = vpop.permute.xlu0 %3751
      %3753 = vset.pattern.permute.xlu0 0
      %3754 = vperm.xlu0 %3753, %v3675
      %v3755 = vpop.permute.xlu0 %3754
      %3756 = vset.pattern.permute.xlu0 0
      %3757 = vperm.xlu0 %3756, %v3676
      %v3758 = vpop.permute.xlu0 %3757
      %3759 = vset.pattern.permute.xlu0 0
      %3760 = vperm.xlu0 %3759, %v3677
      %v3761 = vpop.permute.xlu0 %3760
      %3762 = vset.pattern.permute.xlu0 0
      %3763 = vperm.xlu0 %3762, %v3678
      %v3764 = vpop.permute.xlu0 %3763
      %3765 = vset.pattern.permute.xlu0 0
      %3766 = vperm.xlu0 %3765, %v3679
      %v3767 = vpop.permute.xlu0 %3766
      %3768 = vset.pattern.permute.xlu0 0
      %3769 = vperm.xlu0 %3768, %v3680
      %v3770 = vpop.permute.xlu0 %3769
      %3771 = vset.pattern.permute.xlu0 0
      %3772 = vperm.xlu0 %3771, %v3681
      %v3773 = vpop.permute.xlu0 %3772
      %3774 = vset.pattern.permute.xlu0 0
      %3775 = vperm.xlu0 %3774, %v3682
      %v3776 = vpop.permute.xlu0 %3775
      %3777 = vset.pattern.permute.xlu0 0
      %3778 = vperm.xlu0 %3777, %v3683
      %v3779 = vpop.permute.xlu0 %3778
      %vm3780 = vcmp.eq.s32.totalorder %v3651, %v3686
      %vm3781 = vcmp.eq.s32.totalorder %v3651, %v3689
      %vm3782 = vcmp.eq.s32.totalorder %v3651, %v3692
      %vm3783 = vcmp.eq.s32.totalorder %v3651, %v3695
      %vm3784 = vcmp.eq.s32.totalorder %v3651, %v3698
      %vm3785 = vcmp.eq.s32.totalorder %v3651, %v3701
      %vm3786 = vcmp.eq.s32.totalorder %v3651, %v3704
      %vm3787 = vcmp.eq.s32.totalorder %v3651, %v3707
      %vm3788 = vcmp.eq.s32.totalorder %v3651, %v3710
      %vm3789 = vcmp.eq.s32.totalorder %v3651, %v3713
      %vm3790 = vcmp.eq.s32.totalorder %v3651, %v3716
      %vm3791 = vcmp.eq.s32.totalorder %v3651, %v3719
      %vm3792 = vcmp.eq.s32.totalorder %v3651, %v3722
      %vm3793 = vcmp.eq.s32.totalorder %v3651, %v3725
      %vm3794 = vcmp.eq.s32.totalorder %v3651, %v3728
      %vm3795 = vcmp.eq.s32.totalorder %v3651, %v3731
      %vm3796 = vcmp.eq.s32.totalorder %v3651, %v3734
      %vm3797 = vcmp.eq.s32.totalorder %v3651, %v3737
      %vm3798 = vcmp.eq.s32.totalorder %v3651, %v3740
      %vm3799 = vcmp.eq.s32.totalorder %v3651, %v3743
      %vm3800 = vcmp.eq.s32.totalorder %v3651, %v3746
      %vm3801 = vcmp.eq.s32.totalorder %v3651, %v3749
      %vm3802 = vcmp.eq.s32.totalorder %v3651, %v3752
      %vm3803 = vcmp.eq.s32.totalorder %v3651, %v3755
      %vm3804 = vcmp.eq.s32.totalorder %v3651, %v3758
      %vm3805 = vcmp.eq.s32.totalorder %v3651, %v3761
      %vm3806 = vcmp.eq.s32.totalorder %v3651, %v3764
      %vm3807 = vcmp.eq.s32.totalorder %v3651, %v3767
      %vm3808 = vcmp.eq.s32.totalorder %v3651, %v3770
      %vm3809 = vcmp.eq.s32.totalorder %v3651, %v3773
      %vm3810 = vcmp.eq.s32.totalorder %v3651, %v3776
      %vm3811 = vcmp.eq.s32.totalorder %v3651, %v3779
      %v3812 = vsub.f32 0.0, %v3618
      %v3813 = vsub.f32 0.0, %v3619
      %v3814 = vsub.f32 0.0, %v3620
      %v3815 = vsub.f32 0.0, %v3621
      %v3816 = vsub.f32 0.0, %v3622
      %v3817 = vsub.f32 0.0, %v3623
      %v3818 = vsub.f32 0.0, %v3624
      %v3819 = vsub.f32 0.0, %v3625
      %v3820 = vsub.f32 0.0, %v3626
      %v3821 = vsub.f32 0.0, %v3627
      %v3822 = vsub.f32 0.0, %v3628
      %v3823 = vsub.f32 0.0, %v3629
      %v3824 = vsub.f32 0.0, %v3630
      %v3825 = vsub.f32 0.0, %v3631
      %v3826 = vsub.f32 0.0, %v3632
      %v3827 = vsub.f32 0.0, %v3633
      %v3828 = vsub.f32 0.0, %v3634
      %v3829 = vsub.f32 0.0, %v3635
      %v3830 = vsub.f32 0.0, %v3636
      %v3831 = vsub.f32 0.0, %v3637
      %v3832 = vsub.f32 0.0, %v3638
      %v3833 = vsub.f32 0.0, %v3639
      %v3834 = vsub.f32 0.0, %v3640
      %v3835 = vsub.f32 0.0, %v3641
      %v3836 = vsub.f32 0.0, %v3642
      %v3837 = vsub.f32 0.0, %v3643
      %v3838 = vsub.f32 0.0, %v3644
      %v3839 = vsub.f32 0.0, %v3645
      %v3840 = vsub.f32 0.0, %v3646
      %v3841 = vsub.f32 0.0, %v3647
      %v3842 = vsub.f32 0.0, %v3648
      %v3843 = vsub.f32 0.0, %v3649
      %v3844 = vsel %vm3780, %v3812, 0.0
      %v3845 = vsel %vm3781, %v3813, 0.0
      %v3846 = vsel %vm3782, %v3814, 0.0
      %v3847 = vsel %vm3783, %v3815, 0.0
      %v3848 = vsel %vm3784, %v3816, 0.0
      %v3849 = vsel %vm3785, %v3817, 0.0
      %v3850 = vsel %vm3786, %v3818, 0.0
      %v3851 = vsel %vm3787, %v3819, 0.0
      %v3852 = vsel %vm3788, %v3820, 0.0
      %v3853 = vsel %vm3789, %v3821, 0.0
      %v3854 = vsel %vm3790, %v3822, 0.0
      %v3855 = vsel %vm3791, %v3823, 0.0
      %v3856 = vsel %vm3792, %v3824, 0.0
      %v3857 = vsel %vm3793, %v3825, 0.0
      %v3858 = vsel %vm3794, %v3826, 0.0
      %v3859 = vsel %vm3795, %v3827, 0.0
      %v3860 = vsel %vm3796, %v3828, 0.0
      %v3861 = vsel %vm3797, %v3829, 0.0
      %v3862 = vsel %vm3798, %v3830, 0.0
      %v3863 = vsel %vm3799, %v3831, 0.0
      %v3864 = vsel %vm3800, %v3832, 0.0
      %v3865 = vsel %vm3801, %v3833, 0.0
      %v3866 = vsel %vm3802, %v3834, 0.0
      %v3867 = vsel %vm3803, %v3835, 0.0
      %v3868 = vsel %vm3804, %v3836, 0.0
      %v3869 = vsel %vm3805, %v3837, 0.0
      %v3870 = vsel %vm3806, %v3838, 0.0
      %v3871 = vsel %vm3807, %v3839, 0.0
      %v3872 = vsel %vm3808, %v3840, 0.0
      %v3873 = vsel %vm3809, %v3841, 0.0
      %v3874 = vsel %vm3810, %v3842, 0.0
      %v3875 = vsel %vm3811, %v3843, 0.0
      %v3876 = vadd.f32 %v3844, %v3845
      %v3877 = vadd.f32 %v3876, %v3846
      %v3878 = vadd.f32 %v3877, %v3847
      %v3879 = vadd.f32 %v3878, %v3848
      %v3880 = vadd.f32 %v3879, %v3849
      %v3881 = vadd.f32 %v3880, %v3850
      %v3882 = vadd.f32 %v3881, %v3851
      %v3883 = vadd.f32 %v3882, %v3852
      %v3884 = vadd.f32 %v3883, %v3853
      %v3885 = vadd.f32 %v3884, %v3854
      %v3886 = vadd.f32 %v3885, %v3855
      %v3887 = vadd.f32 %v3886, %v3856
      %v3888 = vadd.f32 %v3887, %v3857
      %v3889 = vadd.f32 %v3888, %v3858
      %v3890 = vadd.f32 %v3889, %v3859
      %v3891 = vadd.f32 %v3890, %v3860
      %v3892 = vadd.f32 %v3891, %v3861
      %v3893 = vadd.f32 %v3892, %v3862
      %v3894 = vadd.f32 %v3893, %v3863
      %v3895 = vadd.f32 %v3894, %v3864
      %v3896 = vadd.f32 %v3895, %v3865
      %v3897 = vadd.f32 %v3896, %v3866
      %v3898 = vadd.f32 %v3897, %v3867
      %v3899 = vadd.f32 %v3898, %v3868
      %v3900 = vadd.f32 %v3899, %v3869
      %v3901 = vadd.f32 %v3900, %v3870
      %v3902 = vadd.f32 %v3901, %v3871
      %v3903 = vadd.f32 %v3902, %v3872
      %v3904 = vadd.f32 %v3903, %v3873
      %v3905 = vadd.f32 %v3904, %v3874
      %v3906 = vadd.f32 %v3905, %v3875
      %v3907 = vrot.slane %v3906, 4
      %v3908 = vadd.f32 %v3906, %v3907
      %v3909 = vrot.slane %v3908, 2
      %v3910 = vadd.f32 %v3908, %v3909
      %v3911 = vrot.slane %v3910, 1
      %v3912 = vadd.f32 %v3910, %v3911
      %v3913 = vlaneseq
      %v3914 = vshrl.u32 %v3913, 7
      %vm3915 = vcmp.eq.s32.totalorder %v3914, 0
      %v3916 = vsel %vm3915, %v3912, 0.0
      %3917 = vst [vmem:[%s330] sm:$0xff] %v3916
      %p3918 = scmp.lt.s32.totalorder %s19, 1
      %s3919 = scalar_select %p3918, %s19, 1
      %s3920 = smul.addr %s3919, 8
      %s3921 = scalar_lea.vmem %s8, %s3920
      // Predicated region
      $region53: #{mnist_loss.1} parent=51 // pred_check
        %p3922 = pneg %p215
      $region54: #{mnist_loss.1} parent=51 // pred_check_branch
        %3924 = sbr.rel (%p3922) target = $region56
      $region55: #{mnist_loss.1} parent=51 // pred_region
        _
      $region56: #{mnist_loss.1} parent=51 // pred_fallthru
        _
    $region52: #{mnist_loss.1} parent=5 // pred_fallthru
      _
    %p3925 = scmp.le.s32.totalorder 2, %s14
    // Predicated region
    $region57: #{mnist_loss.1} parent=5 // pred_check
      %p3926 = pneg %p3925
    $region58: #{mnist_loss.1} parent=5 // pred_check_branch
      %3928 = sbr.rel (%p3926) target = $region60
    $region59: #{mnist_loss.1} parent=5 // pred_region
      %s3929 = ssub.s32 %s14, 2
      // Predicated region
      $region61: #{mnist_loss.1} parent=59 // pred_check
        %p3930 = pneg %p221
      $region62: #{mnist_loss.1} parent=59 // pred_check_branch
        %3932 = sbr.rel (%p3930) target = $region64
      $region63: #{mnist_loss.1} parent=59 // pred_region
        %p3933 = scmp.lt.s32.totalorder %s20, 1
        %s3934 = scalar_select %p3933, %s20, 1
        %s3935 = smul.addr %s3934, 8
        %s3936 = scalar_lea.vmem %s8, %s3935
      $region64: #{mnist_loss.1} parent=59 // pred_fallthru
        _
    $region60: #{mnist_loss.1} parent=5 // pred_fallthru
      _
  $region6: #{mnist_loss.1} parent=0 // loop_footer
    %s18 = sadd.s32 1, %s14
  $region7: #{mnist_loss.1} parent=0 // loop_footer_branch
    %13 = sbr.rel target = $region3
  $region8: #{mnist_loss.1} parent=0 // loop_exit
    _

</llo_original>
